<compile_context>
chip_gen: v5e
topology: v5e:2x2
jax: 0.10.0
libtpu: 0.0.40
codegen_flags: <defaults>
</compile_context>

<pallas_src>
import functools

import numpy as np
import jax
import jax.numpy as jnp
from jax import lax
from jax.experimental import pallas as pl
from jax.experimental.pallas import tpu as pltpu

BN_EPS = 1e-5
K_CONV = 5       # conv kernel size
STRIDE = 2       # conv stride
KP1 = 32         # conv1 GEMM K: 25 patch values + 1 bias column + pad
NPAD = 128       # head output padded to a full lane width


def _round_up(x, m):
    return -(-x // m) * m


def _conv_out(s):
    return (s - (K_CONV - 1) - 1) // STRIDE + 1


# ---------------------------------------------------------------------------
# Fused Pallas kernel: conv1+bn1+relu -> conv2+bn2+relu -> head linear
# ---------------------------------------------------------------------------
def _dqn_fused_kernel(p1_ref, w1_ref, w2_ref, sh2_ref, wh_ref, bh_ref, o_ref,
                      z_scr, y2_scr, h_scr, *, nk, ns, batch, c1):
    """All refs are full-array VMEM blocks (single grid step).

    p1_ref : [nk, R, KP1]     bf16  conv1 input patches per conv2 tap
                                    (col 25 is a constant 1.0 bias column)
    w1_ref : [KP1, C1]        bf16  conv1 GEMM weight (BN scale + bias folded)
    w2_ref : [nk*C1, C2]      bf16  conv2 deep-K GEMM weight (BN scale folded)
    sh2_ref: [1, C2]          f32   conv2 bias + BN shift
    wh_ref : [ns*C2, NPAD]    bf16  head weight, rows ordered (s, c2)
    bh_ref : [1, NPAD]        f32   head bias (zero padded)
    o_ref  : [mb, NPAD]       f32   padded logits (lane-dense, unmasked store)

    z_scr  : [R, nk*C1]  f32  conv2 GEMM operand (lane-dense)
    y2_scr : [R, C2]     f32  conv2 activation, rows ordered (s, b)
    h_scr  : [mb, ns*C2] f32  head GEMM operand, rows = batch (lane-dense)
    """
    c2 = w2_ref.shape[1]

    # conv1 (bias/BN folded into the GEMM via the ones column); each tap's 16
    # output channels go straight into their lane slice of the conv2 operand,
    # so no f32 accumulator chain and no long-lived lane-sparse values.
    w1 = w1_ref[...]
    for p in range(nk):                                        # static unroll
        y1p = jnp.dot(p1_ref[p], w1, preferred_element_type=jnp.float32)
        z_scr[:, p * c1:(p + 1) * c1] = jnp.maximum(y1p, 0.0)  # relu(bn1(conv1))

    # conv2 as ONE deep-K GEMM: [R, 400] @ [400, 32]
    zv = z_scr[...].astype(w2_ref.dtype)
    y2 = jnp.dot(zv, w2_ref[...], preferred_element_type=jnp.float32)
    y2_scr[...] = jnp.maximum(y2 + sh2_ref[...], 0.0)          # relu(bn2(conv2))

    # Re-pack conv2 activation batch-major for a single deep-K head GEMM:
    # h[b, s*C2 + c] = y2[(s, b), c]   (small masked loads/stores)
    h_scr[...] = jnp.zeros_like(h_scr)
    for s in range(ns):                                        # static unroll
        h_scr[0:batch, s * c2:(s + 1) * c2] = y2_scr[s * batch:(s + 1) * batch, :]

    # head: ONE GEMM [mb, 800] @ [800, 128]
    hv = h_scr[...].astype(wh_ref.dtype)
    out = jnp.dot(hv, wh_ref[...], preferred_element_type=jnp.float32)
    o_ref[...] = out + bh_ref[...]


def _full_spec(shape):
    return pl.BlockSpec(shape, lambda i: (0,) * len(shape))


def _fused_call(p1, w1, w2, sh2, wh, bh, *, mb, nk, ns, batch, c1):
    rpad = p1.shape[1]
    kcat = w2.shape[0]
    c2 = w2.shape[1]
    npad = wh.shape[1]

    flops = 2 * (nk * rpad * p1.shape[2] * c1      # conv1
                 + rpad * kcat * c2                # conv2
                 + mb * wh.shape[0] * npad)        # head
    bytes_accessed = (sum(int(a.size) * a.dtype.itemsize
                          for a in (p1, w1, w2, sh2, wh, bh))
                      + mb * npad * 4)

    kernel = functools.partial(_dqn_fused_kernel, nk=nk, ns=ns, batch=batch,
                               c1=c1)
    return pl.pallas_call(
        kernel,
        grid=(1,),
        in_specs=[_full_spec(a.shape) for a in (p1, w1, w2, sh2, wh, bh)],
        out_specs=_full_spec((mb, npad)),
        out_shape=jax.ShapeDtypeStruct((mb, npad), jnp.float32),
        scratch_shapes=[
            pltpu.VMEM((rpad, kcat), jnp.float32),      # conv2 operand
            pltpu.VMEM((rpad, c2), jnp.float32),        # conv2 activation
            pltpu.VMEM((mb, ns * c2), jnp.float32),     # head operand
        ],
        compiler_params=pltpu.CompilerParams(dimension_semantics=("arbitrary",)),
        cost_estimate=pl.CostEstimate(flops=flops, transcendentals=0,
                                      bytes_accessed=bytes_accessed),
    )(p1, w1, w2, sh2, wh, bh)


# ---------------------------------------------------------------------------
# Wrapper-side plumbing
# ---------------------------------------------------------------------------
def _build_patches(x_nchw, rpad):
    """-> [nk, rpad, KP1] bf16 conv1 input patches, one block per conv2 tap.

    Row order within a tap is (oh2, ow2, b); column 25 is a constant 1.0 used
    to fold the conv1 bias + BN shift into the GEMM.  Built with a single
    static-index gather (few XLA ops, ~100 KB at B=2).
    """
    B, _, H, W = x_nchw.shape
    ho2, wo2 = _conv_out(_conv_out(H)), _conv_out(_conv_out(W))
    nk = K_CONV * K_CONV
    x2d = x_nchw[:, 0, :, :]                                   # Cin = 1

    # row = 4*oh2 + 2*ki + di ; col = 4*ow2 + 2*kj + dj   (all static)
    ki, kj = np.divmod(np.arange(nk), K_CONV)                  # conv2 tap p
    di, dj = np.divmod(np.arange(nk), K_CONV)                  # conv1 patch k
    oh = np.arange(ho2)
    ow = np.arange(wo2)
    ri = (STRIDE * STRIDE) * oh[None, :, None] + STRIDE * ki[:, None, None] \
        + di[None, None, :]                                    # [nk, ho2, nk]
    ci = (STRIDE * STRIDE) * ow[None, :, None] + STRIDE * kj[:, None, None] \
        + dj[None, None, :]                                    # [nk, wo2, nk]

    P = x2d[:, ri[:, :, None, :], ci[:, None, :, :]]           # [B,nk,ho2,wo2,nk]
    P = jnp.transpose(P, (1, 2, 3, 0, 4))                      # [nk,ho2,wo2,B,nk]
    P = P.reshape(nk, ho2 * wo2 * B, nk)
    ones = jnp.ones((nk, ho2 * wo2 * B, 1), P.dtype)           # bias column
    P = jnp.concatenate([P, ones], axis=-1)
    P = jnp.pad(P, ((0, 0), (0, rpad - ho2 * wo2 * B), (0, KP1 - nk - 1)))
    return P.astype(jnp.bfloat16)


def fold_bn(gamma, beta, mean, var):
    scale = gamma / jnp.sqrt(var + BN_EPS)
    shift = beta - mean * scale
    return scale, shift


def prepare_params(params, h, w, outputs):
    """One-time prep: fold BN into weights, permute/pad to kernel layouts."""
    ho2, wo2 = _conv_out(_conv_out(h)), _conv_out(_conv_out(w))
    ns = ho2 * wo2
    nk = K_CONV * K_CONV
    c1 = params["w1"].shape[0]
    c2 = params["w2"].shape[0]

    s1, b1s = fold_bn(*params["bn1"])
    s2, b2s = fold_bn(*params["bn2"])

    # conv1: [C1,1,5,5] -> [25, C1] (BN scale folded) + bias row (ones-column
    # trick) + zero pad to KP1 rows.
    w1g = jnp.transpose(params["w1"], (2, 3, 1, 0)).reshape(nk, c1) * s1[None, :]
    sh1 = (params["b1"] * s1 + b1s)[None, :]
    w1g = jnp.concatenate([w1g, sh1], axis=0)
    w1g = jnp.pad(w1g, ((0, KP1 - nk - 1), (0, 0))).astype(jnp.bfloat16)

    # conv2: [C2,C1,5,5] -> deep-K GEMM weight [25*C1, C2], BN scale folded.
    w2g = jnp.transpose(params["w2"], (2, 3, 1, 0)).reshape(nk * c1, c2)
    w2g = (w2g * s2[None, :]).astype(jnp.bfloat16)
    sh2 = (params["b2"] * s2 + b2s)[None, :].astype(jnp.float32)

    # head: wh[o, c2*ns + s] (PyTorch NCHW flatten) -> [s*C2 + c2, o], o padded
    # to a full 128-lane width.
    whs = jnp.transpose(params["wh"].reshape(outputs, c2, ns), (2, 1, 0))
    whs = whs.reshape(ns * c2, outputs)
    whs = jnp.pad(whs, ((0, 0), (0, NPAD - outputs))).astype(jnp.bfloat16)
    bh = jnp.pad(params["bh"], (0, NPAD - outputs))[None, :].astype(jnp.float32)

    return {"w1": w1g, "w2": w2g, "sh2": sh2, "wh": whs, "bh": bh}


@functools.partial(jax.jit, static_argnames=("outputs",))
def dqn_cnn2layer_forward(x_nchw, prep, *, outputs):
    B, _, H, W = x_nchw.shape
    ho2, wo2 = _conv_out(_conv_out(H)), _conv_out(_conv_out(W))
    nk = K_CONV * K_CONV
    ns = ho2 * wo2
    c1 = prep["w1"].shape[1]
    rpad = _round_up(ns * B, 16)        # bf16-friendly row padding
    mb = _round_up(B, 8)                # head/output rows (sublane multiple)

    p1 = _build_patches(x_nchw, rpad)
    out = _fused_call(p1, prep["w1"], prep["w2"], prep["sh2"], prep["wh"],
                      prep["bh"], mb=mb, nk=nk, ns=ns, batch=B, c1=c1)
    return out[:B, :outputs]


# ---------------------------------------------------------------------------
# Pure-JAX reference (correctness check only)
# ---------------------------------------------------------------------------
def reference_forward(x_nchw, params):
    def conv(x, w, b):
        y = lax.conv_general_dilated(x, w, (STRIDE, STRIDE), "VALID",
                                     dimension_numbers=("NCHW", "OIHW", "NCHW"))
        return y + b[None, :, None, None]

    def bn(x, gamma, beta, mean, var):
        return (gamma[None, :, None, None] * (x - mean[None, :, None, None])
                / jnp.sqrt(var[None, :, None, None] + BN_EPS)
                + beta[None, :, None, None])

    x = jax.nn.relu(bn(conv(x_nchw, params["w1"], params["b1"]), *params["bn1"]))
    x = jax.nn.relu(bn(conv(x, params["w2"], params["b2"]), *params["bn2"]))
    x = x.reshape(x.shape[0], -1)
    return x @ params["wh"].T + params["bh"]


# ---------------------------------------------------------------------------
def make_params(key, outputs, lin_in):
    ks = jax.random.split(key, 16)
    f = jnp.float32
    return {
        "w1": 0.1 * jax.random.normal(ks[0], (16, 1, 5, 5), f),
        "b1": 0.1 * jax.random.normal(ks[1], (16,), f),
        "bn1": (1.0 + 0.1 * jax.random.normal(ks[2], (16,), f),           # gamma
                0.1 * jax.random.normal(ks[3], (16,), f),                 # beta
                0.05 * jax.random.normal(ks[4], (16,), f),                # mean
                1.0 + 0.1 * jnp.abs(jax.random.normal(ks[5], (16,), f))),  # var
        "w2": 0.05 * jax.random.normal(ks[6], (32, 16, 5, 5), f),
        "b2": 0.1 * jax.random.normal(ks[7], (32,), f),
        "bn2": (1.0 + 0.1 * jax.random.normal(ks[8], (32,), f),
                0.1 * jax.random.normal(ks[9], (32,), f),
                0.05 * jax.random.normal(ks[10], (32,), f),
                1.0 + 0.1 * jnp.abs(jax.random.normal(ks[11], (32,), f))),
        "wh": 0.05 * jax.random.normal(ks[12], (outputs, lin_in), f),
        "bh": 0.05 * jax.random.normal(ks[13], (outputs,), f),
    }


if __name__ == "__main__":
    # cnn-2layer DQN: B=2, single-channel 32x32 board, outputs=4 actions.
    B, H, W, outputs = 2, 32, 32, 4

    def conv2d_size_out(size, kernel_size=5, stride=2):
        return (size - (kernel_size - 1) - 1) // stride + 1

    convw = conv2d_size_out(conv2d_size_out(W))
    convh = conv2d_size_out(conv2d_size_out(H))
    lin_in = convw * convh * 32

    key = jax.random.PRNGKey(0)
    k_x, k_p = jax.random.split(key)
    x = jax.random.normal(k_x, (B, 1, H, W), jnp.float32)
    params = make_params(k_p, outputs, lin_in)

    prep = prepare_params(params, H, W, outputs)          # one-time weight prep
    out = dqn_cnn2layer_forward(x, prep, outputs=outputs)
    out = jax.block_until_ready(out)

    ref = jax.block_until_ready(reference_forward(x, params))
    assert out.shape == (B, outputs), out.shape
    # bf16 matmul operands with f32 accumulation -> slightly looser tolerance.
    assert jnp.allclose(out, ref, rtol=2e-2, atol=2e-2), (out, ref)

    print("KERNEL_OK")
</pallas_src>

<mosaic_0001>
module attributes {stable_mosaic.version = 11 : i64} {
  func.func @_dqn_fused_kernel(%arg0: i32, %arg1: memref<25x64x32xbf16, #tpu.memory_space<vmem>>, %arg2: memref<32x16xbf16, #tpu.memory_space<vmem>>, %arg3: memref<400x32xbf16, #tpu.memory_space<vmem>>, %arg4: memref<1x32xf32, #tpu.memory_space<vmem>>, %arg5: memref<800x128xbf16, #tpu.memory_space<vmem>>, %arg6: memref<1x128xf32, #tpu.memory_space<vmem>>, %arg7: memref<8x128xf32, #tpu.memory_space<vmem>>, %arg8: memref<64x400xf32, #tpu.memory_space<vmem>>, %arg9: memref<64x32xf32, #tpu.memory_space<vmem>>, %arg10: memref<8x800xf32, #tpu.memory_space<vmem>>) attributes {dimension_semantics = [#tpu.dimension_semantics<arbitrary>], iteration_bounds = array<i64: 1>, scalar_prefetch = 0 : i64, scratch_operands = 3 : i64, tpu.core_type = #tpu.core_type<tc>, window_params = [{pipeline_mode = #tpu.pipeline_mode<synchronous>, transform_indices = @transform_0, window_bounds = array<i64: 25, 64, 32>}, {pipeline_mode = #tpu.pipeline_mode<synchronous>, transform_indices = @transform_1, window_bounds = array<i64: 32, 16>}, {pipeline_mode = #tpu.pipeline_mode<synchronous>, transform_indices = @transform_2, window_bounds = array<i64: 400, 32>}, {pipeline_mode = #tpu.pipeline_mode<synchronous>, transform_indices = @transform_3, window_bounds = array<i64: 1, 32>}, {pipeline_mode = #tpu.pipeline_mode<synchronous>, transform_indices = @transform_4, window_bounds = array<i64: 800, 128>}, {pipeline_mode = #tpu.pipeline_mode<synchronous>, transform_indices = @transform_5, window_bounds = array<i64: 1, 128>}, {pipeline_mode = #tpu.pipeline_mode<synchronous>, transform_indices = @transform_6, window_bounds = array<i64: 8, 128>}]} {
    %c0 = arith.constant 0 : index
    %c0_0 = arith.constant 0 : index
    %0 = vector.load %arg2[%c0, %c0_0] : memref<32x16xbf16, #tpu.memory_space<vmem>>, vector<32x16xbf16>
    %c0_1 = arith.constant 0 : index
    %c0_2 = arith.constant 0 : index
    %c0_3 = arith.constant 0 : index
    %1 = vector.load %arg1[%c0_1, %c0_2, %c0_3] : memref<25x64x32xbf16, #tpu.memory_space<vmem>>, vector<1x64x32xbf16>
    %2 = vector.shape_cast %1 : vector<1x64x32xbf16> to vector<64x32xbf16>
    %cst = arith.constant dense<0.000000e+00> : vector<64x16xf32>
    %3 = tpu.matmul %2, %0, %cst {dimension_numbers = #tpu.dot_dimension_numbers<[1], [0], [0], [1], [0, 0, 1, 1], [], []>} : vector<64x32xbf16>, vector<32x16xbf16>, vector<64x16xf32> -> vector<64x16xf32>
    %cst_4 = arith.constant 0.000000e+00 : f32
    %4 = vector.broadcast %cst_4 : f32 to vector<64x16xf32>
    %5 = arith.maximumf %3, %4 : vector<64x16xf32>
    %c0_5 = arith.constant 0 : index
    %c0_6 = arith.constant 0 : index
    %6 = vector.load %arg8[%c0_5, %c0_6] : memref<64x400xf32, #tpu.memory_space<vmem>>, vector<64x16xf32>
    tpu.vector_store %arg8[%c0_5, %c0_6], %5 {strides = array<i32>} : memref<64x400xf32, #tpu.memory_space<vmem>>, vector<64x16xf32>,
    %c1 = arith.constant 1 : index
    %c0_7 = arith.constant 0 : index
    %c0_8 = arith.constant 0 : index
    %7 = vector.load %arg1[%c1, %c0_7, %c0_8] : memref<25x64x32xbf16, #tpu.memory_space<vmem>>, vector<1x64x32xbf16>
    %8 = vector.shape_cast %7 : vector<1x64x32xbf16> to vector<64x32xbf16>
    %cst_9 = arith.constant dense<0.000000e+00> : vector<64x16xf32>
    %9 = tpu.matmul %8, %0, %cst_9 {dimension_numbers = #tpu.dot_dimension_numbers<[1], [0], [0], [1], [0, 0, 1, 1], [], []>} : vector<64x32xbf16>, vector<32x16xbf16>, vector<64x16xf32> -> vector<64x16xf32>
    %cst_10 = arith.constant 0.000000e+00 : f32
    %10 = vector.broadcast %cst_10 : f32 to vector<64x16xf32>
    %11 = arith.maximumf %9, %10 : vector<64x16xf32>
    %c0_11 = arith.constant 0 : index
    %c16 = arith.constant 16 : index
    %12 = vector.load %arg8[%c0_11, %c16] : memref<64x400xf32, #tpu.memory_space<vmem>>, vector<64x16xf32>
    tpu.vector_store %arg8[%c0_11, %c16], %11 {strides = array<i32>} : memref<64x400xf32, #tpu.memory_space<vmem>>, vector<64x16xf32>,
    %c2 = arith.constant 2 : index
    %c0_12 = arith.constant 0 : index
    %c0_13 = arith.constant 0 : index
    %13 = vector.load %arg1[%c2, %c0_12, %c0_13] : memref<25x64x32xbf16, #tpu.memory_space<vmem>>, vector<1x64x32xbf16>
    %14 = vector.shape_cast %13 : vector<1x64x32xbf16> to vector<64x32xbf16>
    %cst_14 = arith.constant dense<0.000000e+00> : vector<64x16xf32>
    %15 = tpu.matmul %14, %0, %cst_14 {dimension_numbers = #tpu.dot_dimension_numbers<[1], [0], [0], [1], [0, 0, 1, 1], [], []>} : vector<64x32xbf16>, vector<32x16xbf16>, vector<64x16xf32> -> vector<64x16xf32>
    %cst_15 = arith.constant 0.000000e+00 : f32
    %16 = vector.broadcast %cst_15 : f32 to vector<64x16xf32>
    %17 = arith.maximumf %15, %16 : vector<64x16xf32>
    %c0_16 = arith.constant 0 : index
    %c32 = arith.constant 32 : index
    %18 = vector.load %arg8[%c0_16, %c32] : memref<64x400xf32, #tpu.memory_space<vmem>>, vector<64x16xf32>
    tpu.vector_store %arg8[%c0_16, %c32], %17 {strides = array<i32>} : memref<64x400xf32, #tpu.memory_space<vmem>>, vector<64x16xf32>,
    %c3 = arith.constant 3 : index
    %c0_17 = arith.constant 0 : index
    %c0_18 = arith.constant 0 : index
    %19 = vector.load %arg1[%c3, %c0_17, %c0_18] : memref<25x64x32xbf16, #tpu.memory_space<vmem>>, vector<1x64x32xbf16>
    %20 = vector.shape_cast %19 : vector<1x64x32xbf16> to vector<64x32xbf16>
    %cst_19 = arith.constant dense<0.000000e+00> : vector<64x16xf32>
    %21 = tpu.matmul %20, %0, %cst_19 {dimension_numbers = #tpu.dot_dimension_numbers<[1], [0], [0], [1], [0, 0, 1, 1], [], []>} : vector<64x32xbf16>, vector<32x16xbf16>, vector<64x16xf32> -> vector<64x16xf32>
    %cst_20 = arith.constant 0.000000e+00 : f32
    %22 = vector.broadcast %cst_20 : f32 to vector<64x16xf32>
    %23 = arith.maximumf %21, %22 : vector<64x16xf32>
    %c0_21 = arith.constant 0 : index
    %c48 = arith.constant 48 : index
    %24 = vector.load %arg8[%c0_21, %c48] : memref<64x400xf32, #tpu.memory_space<vmem>>, vector<64x16xf32>
    tpu.vector_store %arg8[%c0_21, %c48], %23 {strides = array<i32>} : memref<64x400xf32, #tpu.memory_space<vmem>>, vector<64x16xf32>,
    %c4 = arith.constant 4 : index
    %c0_22 = arith.constant 0 : index
    %c0_23 = arith.constant 0 : index
    %25 = vector.load %arg1[%c4, %c0_22, %c0_23] : memref<25x64x32xbf16, #tpu.memory_space<vmem>>, vector<1x64x32xbf16>
    %26 = vector.shape_cast %25 : vector<1x64x32xbf16> to vector<64x32xbf16>
    %cst_24 = arith.constant dense<0.000000e+00> : vector<64x16xf32>
    %27 = tpu.matmul %26, %0, %cst_24 {dimension_numbers = #tpu.dot_dimension_numbers<[1], [0], [0], [1], [0, 0, 1, 1], [], []>} : vector<64x32xbf16>, vector<32x16xbf16>, vector<64x16xf32> -> vector<64x16xf32>
    %cst_25 = arith.constant 0.000000e+00 : f32
    %28 = vector.broadcast %cst_25 : f32 to vector<64x16xf32>
    %29 = arith.maximumf %27, %28 : vector<64x16xf32>
    %c0_26 = arith.constant 0 : index
    %c64 = arith.constant 64 : index
    %30 = vector.load %arg8[%c0_26, %c64] : memref<64x400xf32, #tpu.memory_space<vmem>>, vector<64x16xf32>
    tpu.vector_store %arg8[%c0_26, %c64], %29 {strides = array<i32>} : memref<64x400xf32, #tpu.memory_space<vmem>>, vector<64x16xf32>,
    %c5 = arith.constant 5 : index
    %c0_27 = arith.constant 0 : index
    %c0_28 = arith.constant 0 : index
    %31 = vector.load %arg1[%c5, %c0_27, %c0_28] : memref<25x64x32xbf16, #tpu.memory_space<vmem>>, vector<1x64x32xbf16>
    %32 = vector.shape_cast %31 : vector<1x64x32xbf16> to vector<64x32xbf16>
    %cst_29 = arith.constant dense<0.000000e+00> : vector<64x16xf32>
    %33 = tpu.matmul %32, %0, %cst_29 {dimension_numbers = #tpu.dot_dimension_numbers<[1], [0], [0], [1], [0, 0, 1, 1], [], []>} : vector<64x32xbf16>, vector<32x16xbf16>, vector<64x16xf32> -> vector<64x16xf32>
    %cst_30 = arith.constant 0.000000e+00 : f32
    %34 = vector.broadcast %cst_30 : f32 to vector<64x16xf32>
    %35 = arith.maximumf %33, %34 : vector<64x16xf32>
    %c0_31 = arith.constant 0 : index
    %c80 = arith.constant 80 : index
    %36 = vector.load %arg8[%c0_31, %c80] : memref<64x400xf32, #tpu.memory_space<vmem>>, vector<64x16xf32>
    tpu.vector_store %arg8[%c0_31, %c80], %35 {strides = array<i32>} : memref<64x400xf32, #tpu.memory_space<vmem>>, vector<64x16xf32>,
    %c6 = arith.constant 6 : index
    %c0_32 = arith.constant 0 : index
    %c0_33 = arith.constant 0 : index
    %37 = vector.load %arg1[%c6, %c0_32, %c0_33] : memref<25x64x32xbf16, #tpu.memory_space<vmem>>, vector<1x64x32xbf16>
    %38 = vector.shape_cast %37 : vector<1x64x32xbf16> to vector<64x32xbf16>
    %cst_34 = arith.constant dense<0.000000e+00> : vector<64x16xf32>
    %39 = tpu.matmul %38, %0, %cst_34 {dimension_numbers = #tpu.dot_dimension_numbers<[1], [0], [0], [1], [0, 0, 1, 1], [], []>} : vector<64x32xbf16>, vector<32x16xbf16>, vector<64x16xf32> -> vector<64x16xf32>
    %cst_35 = arith.constant 0.000000e+00 : f32
    %40 = vector.broadcast %cst_35 : f32 to vector<64x16xf32>
    %41 = arith.maximumf %39, %40 : vector<64x16xf32>
    %c0_36 = arith.constant 0 : index
    %c96 = arith.constant 96 : index
    %42 = vector.load %arg8[%c0_36, %c96] : memref<64x400xf32, #tpu.memory_space<vmem>>, vector<64x16xf32>
    tpu.vector_store %arg8[%c0_36, %c96], %41 {strides = array<i32>} : memref<64x400xf32, #tpu.memory_space<vmem>>, vector<64x16xf32>,
    %c7 = arith.constant 7 : index
    %c0_37 = arith.constant 0 : index
    %c0_38 = arith.constant 0 : index
    %43 = vector.load %arg1[%c7, %c0_37, %c0_38] : memref<25x64x32xbf16, #tpu.memory_space<vmem>>, vector<1x64x32xbf16>
    %44 = vector.shape_cast %43 : vector<1x64x32xbf16> to vector<64x32xbf16>
    %cst_39 = arith.constant dense<0.000000e+00> : vector<64x16xf32>
    %45 = tpu.matmul %44, %0, %cst_39 {dimension_numbers = #tpu.dot_dimension_numbers<[1], [0], [0], [1], [0, 0, 1, 1], [], []>} : vector<64x32xbf16>, vector<32x16xbf16>, vector<64x16xf32> -> vector<64x16xf32>
    %cst_40 = arith.constant 0.000000e+00 : f32
    %46 = vector.broadcast %cst_40 : f32 to vector<64x16xf32>
    %47 = arith.maximumf %45, %46 : vector<64x16xf32>
    %c0_41 = arith.constant 0 : index
    %c112 = arith.constant 112 : index
    %48 = vector.load %arg8[%c0_41, %c112] : memref<64x400xf32, #tpu.memory_space<vmem>>, vector<64x16xf32>
    tpu.vector_store %arg8[%c0_41, %c112], %47 {strides = array<i32>} : memref<64x400xf32, #tpu.memory_space<vmem>>, vector<64x16xf32>,
    %c8 = arith.constant 8 : index
    %c0_42 = arith.constant 0 : index
    %c0_43 = arith.constant 0 : index
    %49 = vector.load %arg1[%c8, %c0_42, %c0_43] : memref<25x64x32xbf16, #tpu.memory_space<vmem>>, vector<1x64x32xbf16>
    %50 = vector.shape_cast %49 : vector<1x64x32xbf16> to vector<64x32xbf16>
    %cst_44 = arith.constant dense<0.000000e+00> : vector<64x16xf32>
    %51 = tpu.matmul %50, %0, %cst_44 {dimension_numbers = #tpu.dot_dimension_numbers<[1], [0], [0], [1], [0, 0, 1, 1], [], []>} : vector<64x32xbf16>, vector<32x16xbf16>, vector<64x16xf32> -> vector<64x16xf32>
    %cst_45 = arith.constant 0.000000e+00 : f32
    %52 = vector.broadcast %cst_45 : f32 to vector<64x16xf32>
    %53 = arith.maximumf %51, %52 : vector<64x16xf32>
    %c0_46 = arith.constant 0 : index
    %c128 = arith.constant 128 : index
    %54 = vector.load %arg8[%c0_46, %c128] : memref<64x400xf32, #tpu.memory_space<vmem>>, vector<64x16xf32>
    tpu.vector_store %arg8[%c0_46, %c128], %53 {strides = array<i32>} : memref<64x400xf32, #tpu.memory_space<vmem>>, vector<64x16xf32>,
    %c9 = arith.constant 9 : index
    %c0_47 = arith.constant 0 : index
    %c0_48 = arith.constant 0 : index
    %55 = vector.load %arg1[%c9, %c0_47, %c0_48] : memref<25x64x32xbf16, #tpu.memory_space<vmem>>, vector<1x64x32xbf16>
    %56 = vector.shape_cast %55 : vector<1x64x32xbf16> to vector<64x32xbf16>
    %cst_49 = arith.constant dense<0.000000e+00> : vector<64x16xf32>
    %57 = tpu.matmul %56, %0, %cst_49 {dimension_numbers = #tpu.dot_dimension_numbers<[1], [0], [0], [1], [0, 0, 1, 1], [], []>} : vector<64x32xbf16>, vector<32x16xbf16>, vector<64x16xf32> -> vector<64x16xf32>
    %cst_50 = arith.constant 0.000000e+00 : f32
    %58 = vector.broadcast %cst_50 : f32 to vector<64x16xf32>
    %59 = arith.maximumf %57, %58 : vector<64x16xf32>
    %c0_51 = arith.constant 0 : index
    %c144 = arith.constant 144 : index
    %60 = vector.load %arg8[%c0_51, %c144] : memref<64x400xf32, #tpu.memory_space<vmem>>, vector<64x16xf32>
    tpu.vector_store %arg8[%c0_51, %c144], %59 {strides = array<i32>} : memref<64x400xf32, #tpu.memory_space<vmem>>, vector<64x16xf32>,
    %c10 = arith.constant 10 : index
    %c0_52 = arith.constant 0 : index
    %c0_53 = arith.constant 0 : index
    %61 = vector.load %arg1[%c10, %c0_52, %c0_53] : memref<25x64x32xbf16, #tpu.memory_space<vmem>>, vector<1x64x32xbf16>
    %62 = vector.shape_cast %61 : vector<1x64x32xbf16> to vector<64x32xbf16>
    %cst_54 = arith.constant dense<0.000000e+00> : vector<64x16xf32>
    %63 = tpu.matmul %62, %0, %cst_54 {dimension_numbers = #tpu.dot_dimension_numbers<[1], [0], [0], [1], [0, 0, 1, 1], [], []>} : vector<64x32xbf16>, vector<32x16xbf16>, vector<64x16xf32> -> vector<64x16xf32>
    %cst_55 = arith.constant 0.000000e+00 : f32
    %64 = vector.broadcast %cst_55 : f32 to vector<64x16xf32>
    %65 = arith.maximumf %63, %64 : vector<64x16xf32>
    %c0_56 = arith.constant 0 : index
    %c160 = arith.constant 160 : index
    %66 = vector.load %arg8[%c0_56, %c160] : memref<64x400xf32, #tpu.memory_space<vmem>>, vector<64x16xf32>
    tpu.vector_store %arg8[%c0_56, %c160], %65 {strides = array<i32>} : memref<64x400xf32, #tpu.memory_space<vmem>>, vector<64x16xf32>,
    %c11 = arith.constant 11 : index
    %c0_57 = arith.constant 0 : index
    %c0_58 = arith.constant 0 : index
    %67 = vector.load %arg1[%c11, %c0_57, %c0_58] : memref<25x64x32xbf16, #tpu.memory_space<vmem>>, vector<1x64x32xbf16>
    %68 = vector.shape_cast %67 : vector<1x64x32xbf16> to vector<64x32xbf16>
    %cst_59 = arith.constant dense<0.000000e+00> : vector<64x16xf32>
    %69 = tpu.matmul %68, %0, %cst_59 {dimension_numbers = #tpu.dot_dimension_numbers<[1], [0], [0], [1], [0, 0, 1, 1], [], []>} : vector<64x32xbf16>, vector<32x16xbf16>, vector<64x16xf32> -> vector<64x16xf32>
    %cst_60 = arith.constant 0.000000e+00 : f32
    %70 = vector.broadcast %cst_60 : f32 to vector<64x16xf32>
    %71 = arith.maximumf %69, %70 : vector<64x16xf32>
    %c0_61 = arith.constant 0 : index
    %c176 = arith.constant 176 : index
    %72 = vector.load %arg8[%c0_61, %c176] : memref<64x400xf32, #tpu.memory_space<vmem>>, vector<64x16xf32>
    tpu.vector_store %arg8[%c0_61, %c176], %71 {strides = array<i32>} : memref<64x400xf32, #tpu.memory_space<vmem>>, vector<64x16xf32>,
    %c12 = arith.constant 12 : index
    %c0_62 = arith.constant 0 : index
    %c0_63 = arith.constant 0 : index
    %73 = vector.load %arg1[%c12, %c0_62, %c0_63] : memref<25x64x32xbf16, #tpu.memory_space<vmem>>, vector<1x64x32xbf16>
    %74 = vector.shape_cast %73 : vector<1x64x32xbf16> to vector<64x32xbf16>
    %cst_64 = arith.constant dense<0.000000e+00> : vector<64x16xf32>
    %75 = tpu.matmul %74, %0, %cst_64 {dimension_numbers = #tpu.dot_dimension_numbers<[1], [0], [0], [1], [0, 0, 1, 1], [], []>} : vector<64x32xbf16>, vector<32x16xbf16>, vector<64x16xf32> -> vector<64x16xf32>
    %cst_65 = arith.constant 0.000000e+00 : f32
    %76 = vector.broadcast %cst_65 : f32 to vector<64x16xf32>
    %77 = arith.maximumf %75, %76 : vector<64x16xf32>
    %c0_66 = arith.constant 0 : index
    %c192 = arith.constant 192 : index
    %78 = vector.load %arg8[%c0_66, %c192] : memref<64x400xf32, #tpu.memory_space<vmem>>, vector<64x16xf32>
    tpu.vector_store %arg8[%c0_66, %c192], %77 {strides = array<i32>} : memref<64x400xf32, #tpu.memory_space<vmem>>, vector<64x16xf32>,
    %c13 = arith.constant 13 : index
    %c0_67 = arith.constant 0 : index
    %c0_68 = arith.constant 0 : index
    %79 = vector.load %arg1[%c13, %c0_67, %c0_68] : memref<25x64x32xbf16, #tpu.memory_space<vmem>>, vector<1x64x32xbf16>
    %80 = vector.shape_cast %79 : vector<1x64x32xbf16> to vector<64x32xbf16>
    %cst_69 = arith.constant dense<0.000000e+00> : vector<64x16xf32>
    %81 = tpu.matmul %80, %0, %cst_69 {dimension_numbers = #tpu.dot_dimension_numbers<[1], [0], [0], [1], [0, 0, 1, 1], [], []>} : vector<64x32xbf16>, vector<32x16xbf16>, vector<64x16xf32> -> vector<64x16xf32>
    %cst_70 = arith.constant 0.000000e+00 : f32
    %82 = vector.broadcast %cst_70 : f32 to vector<64x16xf32>
    %83 = arith.maximumf %81, %82 : vector<64x16xf32>
    %c0_71 = arith.constant 0 : index
    %c208 = arith.constant 208 : index
    %84 = vector.load %arg8[%c0_71, %c208] : memref<64x400xf32, #tpu.memory_space<vmem>>, vector<64x16xf32>
    tpu.vector_store %arg8[%c0_71, %c208], %83 {strides = array<i32>} : memref<64x400xf32, #tpu.memory_space<vmem>>, vector<64x16xf32>,
    %c14 = arith.constant 14 : index
    %c0_72 = arith.constant 0 : index
    %c0_73 = arith.constant 0 : index
    %85 = vector.load %arg1[%c14, %c0_72, %c0_73] : memref<25x64x32xbf16, #tpu.memory_space<vmem>>, vector<1x64x32xbf16>
    %86 = vector.shape_cast %85 : vector<1x64x32xbf16> to vector<64x32xbf16>
    %cst_74 = arith.constant dense<0.000000e+00> : vector<64x16xf32>
    %87 = tpu.matmul %86, %0, %cst_74 {dimension_numbers = #tpu.dot_dimension_numbers<[1], [0], [0], [1], [0, 0, 1, 1], [], []>} : vector<64x32xbf16>, vector<32x16xbf16>, vector<64x16xf32> -> vector<64x16xf32>
    %cst_75 = arith.constant 0.000000e+00 : f32
    %88 = vector.broadcast %cst_75 : f32 to vector<64x16xf32>
    %89 = arith.maximumf %87, %88 : vector<64x16xf32>
    %c0_76 = arith.constant 0 : index
    %c224 = arith.constant 224 : index
    %90 = vector.load %arg8[%c0_76, %c224] : memref<64x400xf32, #tpu.memory_space<vmem>>, vector<64x16xf32>
    tpu.vector_store %arg8[%c0_76, %c224], %89 {strides = array<i32>} : memref<64x400xf32, #tpu.memory_space<vmem>>, vector<64x16xf32>,
    %c15 = arith.constant 15 : index
    %c0_77 = arith.constant 0 : index
    %c0_78 = arith.constant 0 : index
    %91 = vector.load %arg1[%c15, %c0_77, %c0_78] : memref<25x64x32xbf16, #tpu.memory_space<vmem>>, vector<1x64x32xbf16>
    %92 = vector.shape_cast %91 : vector<1x64x32xbf16> to vector<64x32xbf16>
    %cst_79 = arith.constant dense<0.000000e+00> : vector<64x16xf32>
    %93 = tpu.matmul %92, %0, %cst_79 {dimension_numbers = #tpu.dot_dimension_numbers<[1], [0], [0], [1], [0, 0, 1, 1], [], []>} : vector<64x32xbf16>, vector<32x16xbf16>, vector<64x16xf32> -> vector<64x16xf32>
    %cst_80 = arith.constant 0.000000e+00 : f32
    %94 = vector.broadcast %cst_80 : f32 to vector<64x16xf32>
    %95 = arith.maximumf %93, %94 : vector<64x16xf32>
    %c0_81 = arith.constant 0 : index
    %c240 = arith.constant 240 : index
    %96 = vector.load %arg8[%c0_81, %c240] : memref<64x400xf32, #tpu.memory_space<vmem>>, vector<64x16xf32>
    tpu.vector_store %arg8[%c0_81, %c240], %95 {strides = array<i32>} : memref<64x400xf32, #tpu.memory_space<vmem>>, vector<64x16xf32>,
    %c16_82 = arith.constant 16 : index
    %c0_83 = arith.constant 0 : index
    %c0_84 = arith.constant 0 : index
    %97 = vector.load %arg1[%c16_82, %c0_83, %c0_84] : memref<25x64x32xbf16, #tpu.memory_space<vmem>>, vector<1x64x32xbf16>
    %98 = vector.shape_cast %97 : vector<1x64x32xbf16> to vector<64x32xbf16>
    %cst_85 = arith.constant dense<0.000000e+00> : vector<64x16xf32>
    %99 = tpu.matmul %98, %0, %cst_85 {dimension_numbers = #tpu.dot_dimension_numbers<[1], [0], [0], [1], [0, 0, 1, 1], [], []>} : vector<64x32xbf16>, vector<32x16xbf16>, vector<64x16xf32> -> vector<64x16xf32>
    %cst_86 = arith.constant 0.000000e+00 : f32
    %100 = vector.broadcast %cst_86 : f32 to vector<64x16xf32>
    %101 = arith.maximumf %99, %100 : vector<64x16xf32>
    %c0_87 = arith.constant 0 : index
    %c256 = arith.constant 256 : index
    %102 = vector.load %arg8[%c0_87, %c256] : memref<64x400xf32, #tpu.memory_space<vmem>>, vector<64x16xf32>
    tpu.vector_store %arg8[%c0_87, %c256], %101 {strides = array<i32>} : memref<64x400xf32, #tpu.memory_space<vmem>>, vector<64x16xf32>,
    %c17 = arith.constant 17 : index
    %c0_88 = arith.constant 0 : index
    %c0_89 = arith.constant 0 : index
    %103 = vector.load %arg1[%c17, %c0_88, %c0_89] : memref<25x64x32xbf16, #tpu.memory_space<vmem>>, vector<1x64x32xbf16>
    %104 = vector.shape_cast %103 : vector<1x64x32xbf16> to vector<64x32xbf16>
    %cst_90 = arith.constant dense<0.000000e+00> : vector<64x16xf32>
    %105 = tpu.matmul %104, %0, %cst_90 {dimension_numbers = #tpu.dot_dimension_numbers<[1], [0], [0], [1], [0, 0, 1, 1], [], []>} : vector<64x32xbf16>, vector<32x16xbf16>, vector<64x16xf32> -> vector<64x16xf32>
    %cst_91 = arith.constant 0.000000e+00 : f32
    %106 = vector.broadcast %cst_91 : f32 to vector<64x16xf32>
    %107 = arith.maximumf %105, %106 : vector<64x16xf32>
    %c0_92 = arith.constant 0 : index
    %c272 = arith.constant 272 : index
    %108 = vector.load %arg8[%c0_92, %c272] : memref<64x400xf32, #tpu.memory_space<vmem>>, vector<64x16xf32>
    tpu.vector_store %arg8[%c0_92, %c272], %107 {strides = array<i32>} : memref<64x400xf32, #tpu.memory_space<vmem>>, vector<64x16xf32>,
    %c18 = arith.constant 18 : index
    %c0_93 = arith.constant 0 : index
    %c0_94 = arith.constant 0 : index
    %109 = vector.load %arg1[%c18, %c0_93, %c0_94] : memref<25x64x32xbf16, #tpu.memory_space<vmem>>, vector<1x64x32xbf16>
    %110 = vector.shape_cast %109 : vector<1x64x32xbf16> to vector<64x32xbf16>
    %cst_95 = arith.constant dense<0.000000e+00> : vector<64x16xf32>
    %111 = tpu.matmul %110, %0, %cst_95 {dimension_numbers = #tpu.dot_dimension_numbers<[1], [0], [0], [1], [0, 0, 1, 1], [], []>} : vector<64x32xbf16>, vector<32x16xbf16>, vector<64x16xf32> -> vector<64x16xf32>
    %cst_96 = arith.constant 0.000000e+00 : f32
    %112 = vector.broadcast %cst_96 : f32 to vector<64x16xf32>
    %113 = arith.maximumf %111, %112 : vector<64x16xf32>
    %c0_97 = arith.constant 0 : index
    %c288 = arith.constant 288 : index
    %114 = vector.load %arg8[%c0_97, %c288] : memref<64x400xf32, #tpu.memory_space<vmem>>, vector<64x16xf32>
    tpu.vector_store %arg8[%c0_97, %c288], %113 {strides = array<i32>} : memref<64x400xf32, #tpu.memory_space<vmem>>, vector<64x16xf32>,
    %c19 = arith.constant 19 : index
    %c0_98 = arith.constant 0 : index
    %c0_99 = arith.constant 0 : index
    %115 = vector.load %arg1[%c19, %c0_98, %c0_99] : memref<25x64x32xbf16, #tpu.memory_space<vmem>>, vector<1x64x32xbf16>
    %116 = vector.shape_cast %115 : vector<1x64x32xbf16> to vector<64x32xbf16>
    %cst_100 = arith.constant dense<0.000000e+00> : vector<64x16xf32>
    %117 = tpu.matmul %116, %0, %cst_100 {dimension_numbers = #tpu.dot_dimension_numbers<[1], [0], [0], [1], [0, 0, 1, 1], [], []>} : vector<64x32xbf16>, vector<32x16xbf16>, vector<64x16xf32> -> vector<64x16xf32>
    %cst_101 = arith.constant 0.000000e+00 : f32
    %118 = vector.broadcast %cst_101 : f32 to vector<64x16xf32>
    %119 = arith.maximumf %117, %118 : vector<64x16xf32>
    %c0_102 = arith.constant 0 : index
    %c304 = arith.constant 304 : index
    %120 = vector.load %arg8[%c0_102, %c304] : memref<64x400xf32, #tpu.memory_space<vmem>>, vector<64x16xf32>
    tpu.vector_store %arg8[%c0_102, %c304], %119 {strides = array<i32>} : memref<64x400xf32, #tpu.memory_space<vmem>>, vector<64x16xf32>,
    %c20 = arith.constant 20 : index
    %c0_103 = arith.constant 0 : index
    %c0_104 = arith.constant 0 : index
    %121 = vector.load %arg1[%c20, %c0_103, %c0_104] : memref<25x64x32xbf16, #tpu.memory_space<vmem>>, vector<1x64x32xbf16>
    %122 = vector.shape_cast %121 : vector<1x64x32xbf16> to vector<64x32xbf16>
    %cst_105 = arith.constant dense<0.000000e+00> : vector<64x16xf32>
    %123 = tpu.matmul %122, %0, %cst_105 {dimension_numbers = #tpu.dot_dimension_numbers<[1], [0], [0], [1], [0, 0, 1, 1], [], []>} : vector<64x32xbf16>, vector<32x16xbf16>, vector<64x16xf32> -> vector<64x16xf32>
    %cst_106 = arith.constant 0.000000e+00 : f32
    %124 = vector.broadcast %cst_106 : f32 to vector<64x16xf32>
    %125 = arith.maximumf %123, %124 : vector<64x16xf32>
    %c0_107 = arith.constant 0 : index
    %c320 = arith.constant 320 : index
    %126 = vector.load %arg8[%c0_107, %c320] : memref<64x400xf32, #tpu.memory_space<vmem>>, vector<64x16xf32>
    tpu.vector_store %arg8[%c0_107, %c320], %125 {strides = array<i32>} : memref<64x400xf32, #tpu.memory_space<vmem>>, vector<64x16xf32>,
    %c21 = arith.constant 21 : index
    %c0_108 = arith.constant 0 : index
    %c0_109 = arith.constant 0 : index
    %127 = vector.load %arg1[%c21, %c0_108, %c0_109] : memref<25x64x32xbf16, #tpu.memory_space<vmem>>, vector<1x64x32xbf16>
    %128 = vector.shape_cast %127 : vector<1x64x32xbf16> to vector<64x32xbf16>
    %cst_110 = arith.constant dense<0.000000e+00> : vector<64x16xf32>
    %129 = tpu.matmul %128, %0, %cst_110 {dimension_numbers = #tpu.dot_dimension_numbers<[1], [0], [0], [1], [0, 0, 1, 1], [], []>} : vector<64x32xbf16>, vector<32x16xbf16>, vector<64x16xf32> -> vector<64x16xf32>
    %cst_111 = arith.constant 0.000000e+00 : f32
    %130 = vector.broadcast %cst_111 : f32 to vector<64x16xf32>
    %131 = arith.maximumf %129, %130 : vector<64x16xf32>
    %c0_112 = arith.constant 0 : index
    %c336 = arith.constant 336 : index
    %132 = vector.load %arg8[%c0_112, %c336] : memref<64x400xf32, #tpu.memory_space<vmem>>, vector<64x16xf32>
    tpu.vector_store %arg8[%c0_112, %c336], %131 {strides = array<i32>} : memref<64x400xf32, #tpu.memory_space<vmem>>, vector<64x16xf32>,
    %c22 = arith.constant 22 : index
    %c0_113 = arith.constant 0 : index
    %c0_114 = arith.constant 0 : index
    %133 = vector.load %arg1[%c22, %c0_113, %c0_114] : memref<25x64x32xbf16, #tpu.memory_space<vmem>>, vector<1x64x32xbf16>
    %134 = vector.shape_cast %133 : vector<1x64x32xbf16> to vector<64x32xbf16>
    %cst_115 = arith.constant dense<0.000000e+00> : vector<64x16xf32>
    %135 = tpu.matmul %134, %0, %cst_115 {dimension_numbers = #tpu.dot_dimension_numbers<[1], [0], [0], [1], [0, 0, 1, 1], [], []>} : vector<64x32xbf16>, vector<32x16xbf16>, vector<64x16xf32> -> vector<64x16xf32>
    %cst_116 = arith.constant 0.000000e+00 : f32
    %136 = vector.broadcast %cst_116 : f32 to vector<64x16xf32>
    %137 = arith.maximumf %135, %136 : vector<64x16xf32>
    %c0_117 = arith.constant 0 : index
    %c352 = arith.constant 352 : index
    %138 = vector.load %arg8[%c0_117, %c352] : memref<64x400xf32, #tpu.memory_space<vmem>>, vector<64x16xf32>
    tpu.vector_store %arg8[%c0_117, %c352], %137 {strides = array<i32>} : memref<64x400xf32, #tpu.memory_space<vmem>>, vector<64x16xf32>,
    %c23 = arith.constant 23 : index
    %c0_118 = arith.constant 0 : index
    %c0_119 = arith.constant 0 : index
    %139 = vector.load %arg1[%c23, %c0_118, %c0_119] : memref<25x64x32xbf16, #tpu.memory_space<vmem>>, vector<1x64x32xbf16>
    %140 = vector.shape_cast %139 : vector<1x64x32xbf16> to vector<64x32xbf16>
    %cst_120 = arith.constant dense<0.000000e+00> : vector<64x16xf32>
    %141 = tpu.matmul %140, %0, %cst_120 {dimension_numbers = #tpu.dot_dimension_numbers<[1], [0], [0], [1], [0, 0, 1, 1], [], []>} : vector<64x32xbf16>, vector<32x16xbf16>, vector<64x16xf32> -> vector<64x16xf32>
    %cst_121 = arith.constant 0.000000e+00 : f32
    %142 = vector.broadcast %cst_121 : f32 to vector<64x16xf32>
    %143 = arith.maximumf %141, %142 : vector<64x16xf32>
    %c0_122 = arith.constant 0 : index
    %c368 = arith.constant 368 : index
    %144 = vector.load %arg8[%c0_122, %c368] : memref<64x400xf32, #tpu.memory_space<vmem>>, vector<64x16xf32>
    tpu.vector_store %arg8[%c0_122, %c368], %143 {strides = array<i32>} : memref<64x400xf32, #tpu.memory_space<vmem>>, vector<64x16xf32>,
    %c24 = arith.constant 24 : index
    %c0_123 = arith.constant 0 : index
    %c0_124 = arith.constant 0 : index
    %145 = vector.load %arg1[%c24, %c0_123, %c0_124] : memref<25x64x32xbf16, #tpu.memory_space<vmem>>, vector<1x64x32xbf16>
    %146 = vector.shape_cast %145 : vector<1x64x32xbf16> to vector<64x32xbf16>
    %cst_125 = arith.constant dense<0.000000e+00> : vector<64x16xf32>
    %147 = tpu.matmul %146, %0, %cst_125 {dimension_numbers = #tpu.dot_dimension_numbers<[1], [0], [0], [1], [0, 0, 1, 1], [], []>} : vector<64x32xbf16>, vector<32x16xbf16>, vector<64x16xf32> -> vector<64x16xf32>
    %cst_126 = arith.constant 0.000000e+00 : f32
    %148 = vector.broadcast %cst_126 : f32 to vector<64x16xf32>
    %149 = arith.maximumf %147, %148 : vector<64x16xf32>
    %c0_127 = arith.constant 0 : index
    %c384 = arith.constant 384 : index
    %150 = vector.load %arg8[%c0_127, %c384] : memref<64x400xf32, #tpu.memory_space<vmem>>, vector<64x16xf32>
    tpu.vector_store %arg8[%c0_127, %c384], %149 {strides = array<i32>} : memref<64x400xf32, #tpu.memory_space<vmem>>, vector<64x16xf32>,
    %c0_128 = arith.constant 0 : index
    %c0_129 = arith.constant 0 : index
    %151 = vector.load %arg8[%c0_128, %c0_129] : memref<64x400xf32, #tpu.memory_space<vmem>>, vector<64x400xf32>
    %152 = arith.truncf %151 : vector<64x400xf32> to vector<64x400xbf16>
    %c0_130 = arith.constant 0 : index
    %c0_131 = arith.constant 0 : index
    %153 = vector.load %arg3[%c0_130, %c0_131] : memref<400x32xbf16, #tpu.memory_space<vmem>>, vector<400x32xbf16>
    %cst_132 = arith.constant dense<0.000000e+00> : vector<64x32xf32>
    %154 = tpu.matmul %152, %153, %cst_132 {dimension_numbers = #tpu.dot_dimension_numbers<[1], [0], [0], [1], [0, 0, 1, 1], [], []>} : vector<64x400xbf16>, vector<400x32xbf16>, vector<64x32xf32> -> vector<64x32xf32>
    %c0_133 = arith.constant 0 : index
    %c0_134 = arith.constant 0 : index
    %155 = vector.load %arg4[%c0_133, %c0_134] : memref<1x32xf32, #tpu.memory_space<vmem>>, vector<1x32xf32>
    %156 = vector.broadcast %155 : vector<1x32xf32> to vector<64x32xf32>
    %157 = arith.addf %154, %156 : vector<64x32xf32>
    %cst_135 = arith.constant 0.000000e+00 : f32
    %158 = vector.broadcast %cst_135 : f32 to vector<64x32xf32>
    %159 = arith.maximumf %157, %158 : vector<64x32xf32>
    %c0_136 = arith.constant 0 : index
    %c0_137 = arith.constant 0 : index
    %160 = vector.load %arg9[%c0_136, %c0_137] : memref<64x32xf32, #tpu.memory_space<vmem>>, vector<64x32xf32>
    tpu.vector_store %arg9[%c0_136, %c0_137], %159 {strides = array<i32>} : memref<64x32xf32, #tpu.memory_space<vmem>>, vector<64x32xf32>,
    %cst_138 = arith.constant 0.000000e+00 : f32
    %161 = vector.broadcast %cst_138 : f32 to vector<8x800xf32>
    %c0_139 = arith.constant 0 : index
    %c0_140 = arith.constant 0 : index
    %162 = vector.load %arg10[%c0_139, %c0_140] : memref<8x800xf32, #tpu.memory_space<vmem>>, vector<8x800xf32>
    tpu.vector_store %arg10[%c0_139, %c0_140], %161 {strides = array<i32>} : memref<8x800xf32, #tpu.memory_space<vmem>>, vector<8x800xf32>,
    %c0_141 = arith.constant 0 : index
    %c0_142 = arith.constant 0 : index
    %163 = vector.load %arg9[%c0_141, %c0_142] : memref<64x32xf32, #tpu.memory_space<vmem>>, vector<2x32xf32>
    %c0_143 = arith.constant 0 : index
    %c0_144 = arith.constant 0 : index
    %164 = vector.load %arg10[%c0_143, %c0_144] : memref<8x800xf32, #tpu.memory_space<vmem>>, vector<2x32xf32>
    tpu.vector_store %arg10[%c0_143, %c0_144], %163 {strides = array<i32>} : memref<8x800xf32, #tpu.memory_space<vmem>>, vector<2x32xf32>,
    %c2_145 = arith.constant 2 : index
    %c0_146 = arith.constant 0 : index
    %165 = vector.load %arg9[%c2_145, %c0_146] : memref<64x32xf32, #tpu.memory_space<vmem>>, vector<2x32xf32>
    %c0_147 = arith.constant 0 : index
    %c32_148 = arith.constant 32 : index
    %166 = vector.load %arg10[%c0_147, %c32_148] : memref<8x800xf32, #tpu.memory_space<vmem>>, vector<2x32xf32>
    tpu.vector_store %arg10[%c0_147, %c32_148], %165 {strides = array<i32>} : memref<8x800xf32, #tpu.memory_space<vmem>>, vector<2x32xf32>,
    %c4_149 = arith.constant 4 : index
    %c0_150 = arith.constant 0 : index
    %167 = vector.load %arg9[%c4_149, %c0_150] : memref<64x32xf32, #tpu.memory_space<vmem>>, vector<2x32xf32>
    %c0_151 = arith.constant 0 : index
    %c64_152 = arith.constant 64 : index
    %168 = vector.load %arg10[%c0_151, %c64_152] : memref<8x800xf32, #tpu.memory_space<vmem>>, vector<2x32xf32>
    tpu.vector_store %arg10[%c0_151, %c64_152], %167 {strides = array<i32>} : memref<8x800xf32, #tpu.memory_space<vmem>>, vector<2x32xf32>,
    %c6_153 = arith.constant 6 : index
    %c0_154 = arith.constant 0 : index
    %169 = vector.load %arg9[%c6_153, %c0_154] : memref<64x32xf32, #tpu.memory_space<vmem>>, vector<2x32xf32>
    %c0_155 = arith.constant 0 : index
    %c96_156 = arith.constant 96 : index
    %170 = vector.load %arg10[%c0_155, %c96_156] : memref<8x800xf32, #tpu.memory_space<vmem>>, vector<2x32xf32>
    tpu.vector_store %arg10[%c0_155, %c96_156], %169 {strides = array<i32>} : memref<8x800xf32, #tpu.memory_space<vmem>>, vector<2x32xf32>,
    %c8_157 = arith.constant 8 : index
    %c0_158 = arith.constant 0 : index
    %171 = vector.load %arg9[%c8_157, %c0_158] : memref<64x32xf32, #tpu.memory_space<vmem>>, vector<2x32xf32>
    %c0_159 = arith.constant 0 : index
    %c128_160 = arith.constant 128 : index
    %172 = vector.load %arg10[%c0_159, %c128_160] : memref<8x800xf32, #tpu.memory_space<vmem>>, vector<2x32xf32>
    tpu.vector_store %arg10[%c0_159, %c128_160], %171 {strides = array<i32>} : memref<8x800xf32, #tpu.memory_space<vmem>>, vector<2x32xf32>,
    %c10_161 = arith.constant 10 : index
    %c0_162 = arith.constant 0 : index
    %173 = vector.load %arg9[%c10_161, %c0_162] : memref<64x32xf32, #tpu.memory_space<vmem>>, vector<2x32xf32>
    %c0_163 = arith.constant 0 : index
    %c160_164 = arith.constant 160 : index
    %174 = vector.load %arg10[%c0_163, %c160_164] : memref<8x800xf32, #tpu.memory_space<vmem>>, vector<2x32xf32>
    tpu.vector_store %arg10[%c0_163, %c160_164], %173 {strides = array<i32>} : memref<8x800xf32, #tpu.memory_space<vmem>>, vector<2x32xf32>,
    %c12_165 = arith.constant 12 : index
    %c0_166 = arith.constant 0 : index
    %175 = vector.load %arg9[%c12_165, %c0_166] : memref<64x32xf32, #tpu.memory_space<vmem>>, vector<2x32xf32>
    %c0_167 = arith.constant 0 : index
    %c192_168 = arith.constant 192 : index
    %176 = vector.load %arg10[%c0_167, %c192_168] : memref<8x800xf32, #tpu.memory_space<vmem>>, vector<2x32xf32>
    tpu.vector_store %arg10[%c0_167, %c192_168], %175 {strides = array<i32>} : memref<8x800xf32, #tpu.memory_space<vmem>>, vector<2x32xf32>,
    %c14_169 = arith.constant 14 : index
    %c0_170 = arith.constant 0 : index
    %177 = vector.load %arg9[%c14_169, %c0_170] : memref<64x32xf32, #tpu.memory_space<vmem>>, vector<2x32xf32>
    %c0_171 = arith.constant 0 : index
    %c224_172 = arith.constant 224 : index
    %178 = vector.load %arg10[%c0_171, %c224_172] : memref<8x800xf32, #tpu.memory_space<vmem>>, vector<2x32xf32>
    tpu.vector_store %arg10[%c0_171, %c224_172], %177 {strides = array<i32>} : memref<8x800xf32, #tpu.memory_space<vmem>>, vector<2x32xf32>,
    %c16_173 = arith.constant 16 : index
    %c0_174 = arith.constant 0 : index
    %179 = vector.load %arg9[%c16_173, %c0_174] : memref<64x32xf32, #tpu.memory_space<vmem>>, vector<2x32xf32>
    %c0_175 = arith.constant 0 : index
    %c256_176 = arith.constant 256 : index
    %180 = vector.load %arg10[%c0_175, %c256_176] : memref<8x800xf32, #tpu.memory_space<vmem>>, vector<2x32xf32>
    tpu.vector_store %arg10[%c0_175, %c256_176], %179 {strides = array<i32>} : memref<8x800xf32, #tpu.memory_space<vmem>>, vector<2x32xf32>,
    %c18_177 = arith.constant 18 : index
    %c0_178 = arith.constant 0 : index
    %181 = vector.load %arg9[%c18_177, %c0_178] : memref<64x32xf32, #tpu.memory_space<vmem>>, vector<2x32xf32>
    %c0_179 = arith.constant 0 : index
    %c288_180 = arith.constant 288 : index
    %182 = vector.load %arg10[%c0_179, %c288_180] : memref<8x800xf32, #tpu.memory_space<vmem>>, vector<2x32xf32>
    tpu.vector_store %arg10[%c0_179, %c288_180], %181 {strides = array<i32>} : memref<8x800xf32, #tpu.memory_space<vmem>>, vector<2x32xf32>,
    %c20_181 = arith.constant 20 : index
    %c0_182 = arith.constant 0 : index
    %183 = vector.load %arg9[%c20_181, %c0_182] : memref<64x32xf32, #tpu.memory_space<vmem>>, vector<2x32xf32>
    %c0_183 = arith.constant 0 : index
    %c320_184 = arith.constant 320 : index
    %184 = vector.load %arg10[%c0_183, %c320_184] : memref<8x800xf32, #tpu.memory_space<vmem>>, vector<2x32xf32>
    tpu.vector_store %arg10[%c0_183, %c320_184], %183 {strides = array<i32>} : memref<8x800xf32, #tpu.memory_space<vmem>>, vector<2x32xf32>,
    %c22_185 = arith.constant 22 : index
    %c0_186 = arith.constant 0 : index
    %185 = vector.load %arg9[%c22_185, %c0_186] : memref<64x32xf32, #tpu.memory_space<vmem>>, vector<2x32xf32>
    %c0_187 = arith.constant 0 : index
    %c352_188 = arith.constant 352 : index
    %186 = vector.load %arg10[%c0_187, %c352_188] : memref<8x800xf32, #tpu.memory_space<vmem>>, vector<2x32xf32>
    tpu.vector_store %arg10[%c0_187, %c352_188], %185 {strides = array<i32>} : memref<8x800xf32, #tpu.memory_space<vmem>>, vector<2x32xf32>,
    %c24_189 = arith.constant 24 : index
    %c0_190 = arith.constant 0 : index
    %187 = vector.load %arg9[%c24_189, %c0_190] : memref<64x32xf32, #tpu.memory_space<vmem>>, vector<2x32xf32>
    %c0_191 = arith.constant 0 : index
    %c384_192 = arith.constant 384 : index
    %188 = vector.load %arg10[%c0_191, %c384_192] : memref<8x800xf32, #tpu.memory_space<vmem>>, vector<2x32xf32>
    tpu.vector_store %arg10[%c0_191, %c384_192], %187 {strides = array<i32>} : memref<8x800xf32, #tpu.memory_space<vmem>>, vector<2x32xf32>,
    %c26 = arith.constant 26 : index
    %c0_193 = arith.constant 0 : index
    %189 = vector.load %arg9[%c26, %c0_193] : memref<64x32xf32, #tpu.memory_space<vmem>>, vector<2x32xf32>
    %c0_194 = arith.constant 0 : index
    %c416 = arith.constant 416 : index
    %190 = vector.load %arg10[%c0_194, %c416] : memref<8x800xf32, #tpu.memory_space<vmem>>, vector<2x32xf32>
    tpu.vector_store %arg10[%c0_194, %c416], %189 {strides = array<i32>} : memref<8x800xf32, #tpu.memory_space<vmem>>, vector<2x32xf32>,
    %c28 = arith.constant 28 : index
    %c0_195 = arith.constant 0 : index
    %191 = vector.load %arg9[%c28, %c0_195] : memref<64x32xf32, #tpu.memory_space<vmem>>, vector<2x32xf32>
    %c0_196 = arith.constant 0 : index
    %c448 = arith.constant 448 : index
    %192 = vector.load %arg10[%c0_196, %c448] : memref<8x800xf32, #tpu.memory_space<vmem>>, vector<2x32xf32>
    tpu.vector_store %arg10[%c0_196, %c448], %191 {strides = array<i32>} : memref<8x800xf32, #tpu.memory_space<vmem>>, vector<2x32xf32>,
    %c30 = arith.constant 30 : index
    %c0_197 = arith.constant 0 : index
    %193 = vector.load %arg9[%c30, %c0_197] : memref<64x32xf32, #tpu.memory_space<vmem>>, vector<2x32xf32>
    %c0_198 = arith.constant 0 : index
    %c480 = arith.constant 480 : index
    %194 = vector.load %arg10[%c0_198, %c480] : memref<8x800xf32, #tpu.memory_space<vmem>>, vector<2x32xf32>
    tpu.vector_store %arg10[%c0_198, %c480], %193 {strides = array<i32>} : memref<8x800xf32, #tpu.memory_space<vmem>>, vector<2x32xf32>,
    %c32_199 = arith.constant 32 : index
    %c0_200 = arith.constant 0 : index
    %195 = vector.load %arg9[%c32_199, %c0_200] : memref<64x32xf32, #tpu.memory_space<vmem>>, vector<2x32xf32>
    %c0_201 = arith.constant 0 : index
    %c512 = arith.constant 512 : index
    %196 = vector.load %arg10[%c0_201, %c512] : memref<8x800xf32, #tpu.memory_space<vmem>>, vector<2x32xf32>
    tpu.vector_store %arg10[%c0_201, %c512], %195 {strides = array<i32>} : memref<8x800xf32, #tpu.memory_space<vmem>>, vector<2x32xf32>,
    %c34 = arith.constant 34 : index
    %c0_202 = arith.constant 0 : index
    %197 = vector.load %arg9[%c34, %c0_202] : memref<64x32xf32, #tpu.memory_space<vmem>>, vector<2x32xf32>
    %c0_203 = arith.constant 0 : index
    %c544 = arith.constant 544 : index
    %198 = vector.load %arg10[%c0_203, %c544] : memref<8x800xf32, #tpu.memory_space<vmem>>, vector<2x32xf32>
    tpu.vector_store %arg10[%c0_203, %c544], %197 {strides = array<i32>} : memref<8x800xf32, #tpu.memory_space<vmem>>, vector<2x32xf32>,
    %c36 = arith.constant 36 : index
    %c0_204 = arith.constant 0 : index
    %199 = vector.load %arg9[%c36, %c0_204] : memref<64x32xf32, #tpu.memory_space<vmem>>, vector<2x32xf32>
    %c0_205 = arith.constant 0 : index
    %c576 = arith.constant 576 : index
    %200 = vector.load %arg10[%c0_205, %c576] : memref<8x800xf32, #tpu.memory_space<vmem>>, vector<2x32xf32>
    tpu.vector_store %arg10[%c0_205, %c576], %199 {strides = array<i32>} : memref<8x800xf32, #tpu.memory_space<vmem>>, vector<2x32xf32>,
    %c38 = arith.constant 38 : index
    %c0_206 = arith.constant 0 : index
    %201 = vector.load %arg9[%c38, %c0_206] : memref<64x32xf32, #tpu.memory_space<vmem>>, vector<2x32xf32>
    %c0_207 = arith.constant 0 : index
    %c608 = arith.constant 608 : index
    %202 = vector.load %arg10[%c0_207, %c608] : memref<8x800xf32, #tpu.memory_space<vmem>>, vector<2x32xf32>
    tpu.vector_store %arg10[%c0_207, %c608], %201 {strides = array<i32>} : memref<8x800xf32, #tpu.memory_space<vmem>>, vector<2x32xf32>,
    %c40 = arith.constant 40 : index
    %c0_208 = arith.constant 0 : index
    %203 = vector.load %arg9[%c40, %c0_208] : memref<64x32xf32, #tpu.memory_space<vmem>>, vector<2x32xf32>
    %c0_209 = arith.constant 0 : index
    %c640 = arith.constant 640 : index
    %204 = vector.load %arg10[%c0_209, %c640] : memref<8x800xf32, #tpu.memory_space<vmem>>, vector<2x32xf32>
    tpu.vector_store %arg10[%c0_209, %c640], %203 {strides = array<i32>} : memref<8x800xf32, #tpu.memory_space<vmem>>, vector<2x32xf32>,
    %c42 = arith.constant 42 : index
    %c0_210 = arith.constant 0 : index
    %205 = vector.load %arg9[%c42, %c0_210] : memref<64x32xf32, #tpu.memory_space<vmem>>, vector<2x32xf32>
    %c0_211 = arith.constant 0 : index
    %c672 = arith.constant 672 : index
    %206 = vector.load %arg10[%c0_211, %c672] : memref<8x800xf32, #tpu.memory_space<vmem>>, vector<2x32xf32>
    tpu.vector_store %arg10[%c0_211, %c672], %205 {strides = array<i32>} : memref<8x800xf32, #tpu.memory_space<vmem>>, vector<2x32xf32>,
    %c44 = arith.constant 44 : index
    %c0_212 = arith.constant 0 : index
    %207 = vector.load %arg9[%c44, %c0_212] : memref<64x32xf32, #tpu.memory_space<vmem>>, vector<2x32xf32>
    %c0_213 = arith.constant 0 : index
    %c704 = arith.constant 704 : index
    %208 = vector.load %arg10[%c0_213, %c704] : memref<8x800xf32, #tpu.memory_space<vmem>>, vector<2x32xf32>
    tpu.vector_store %arg10[%c0_213, %c704], %207 {strides = array<i32>} : memref<8x800xf32, #tpu.memory_space<vmem>>, vector<2x32xf32>,
    %c46 = arith.constant 46 : index
    %c0_214 = arith.constant 0 : index
    %209 = vector.load %arg9[%c46, %c0_214] : memref<64x32xf32, #tpu.memory_space<vmem>>, vector<2x32xf32>
    %c0_215 = arith.constant 0 : index
    %c736 = arith.constant 736 : index
    %210 = vector.load %arg10[%c0_215, %c736] : memref<8x800xf32, #tpu.memory_space<vmem>>, vector<2x32xf32>
    tpu.vector_store %arg10[%c0_215, %c736], %209 {strides = array<i32>} : memref<8x800xf32, #tpu.memory_space<vmem>>, vector<2x32xf32>,
    %c48_216 = arith.constant 48 : index
    %c0_217 = arith.constant 0 : index
    %211 = vector.load %arg9[%c48_216, %c0_217] : memref<64x32xf32, #tpu.memory_space<vmem>>, vector<2x32xf32>
    %c0_218 = arith.constant 0 : index
    %c768 = arith.constant 768 : index
    %212 = vector.load %arg10[%c0_218, %c768] : memref<8x800xf32, #tpu.memory_space<vmem>>, vector<2x32xf32>
    tpu.vector_store %arg10[%c0_218, %c768], %211 {strides = array<i32>} : memref<8x800xf32, #tpu.memory_space<vmem>>, vector<2x32xf32>,
    %c0_219 = arith.constant 0 : index
    %c0_220 = arith.constant 0 : index
    %213 = vector.load %arg10[%c0_219, %c0_220] : memref<8x800xf32, #tpu.memory_space<vmem>>, vector<8x800xf32>
    %214 = arith.truncf %213 : vector<8x800xf32> to vector<8x800xbf16>
    %c0_221 = arith.constant 0 : index
    %c0_222 = arith.constant 0 : index
    %215 = vector.load %arg5[%c0_221, %c0_222] : memref<800x128xbf16, #tpu.memory_space<vmem>>, vector<800x128xbf16>
    %cst_223 = arith.constant dense<0.000000e+00> : vector<8x128xf32>
    %216 = tpu.matmul %214, %215, %cst_223 {dimension_numbers = #tpu.dot_dimension_numbers<[1], [0], [0], [1], [0, 0, 1, 1], [], []>} : vector<8x800xbf16>, vector<800x128xbf16>, vector<8x128xf32> -> vector<8x128xf32>
    %c0_224 = arith.constant 0 : index
    %c0_225 = arith.constant 0 : index
    %217 = vector.load %arg6[%c0_224, %c0_225] : memref<1x128xf32, #tpu.memory_space<vmem>>, vector<1x128xf32>
    %218 = vector.broadcast %217 : vector<1x128xf32> to vector<8x128xf32>
    %219 = arith.addf %216, %218 : vector<8x128xf32>
    %c0_226 = arith.constant 0 : index
    %c0_227 = arith.constant 0 : index
    %220 = vector.load %arg7[%c0_226, %c0_227] : memref<8x128xf32, #tpu.memory_space<vmem>>, vector<8x128xf32>
    tpu.vector_store %arg7[%c0_226, %c0_227], %219 {strides = array<i32>} : memref<8x128xf32, #tpu.memory_space<vmem>>, vector<8x128xf32>,
    return
  }
  func.func @transform_0(%arg0: i32) -> (i32, i32, i32) {
    %c0_i32 = arith.constant 0 : i32
    %c0_i32_0 = arith.constant 0 : i32
    %c0_i32_1 = arith.constant 0 : i32
    %c0_i32_2 = arith.constant 0 : i32
    return %c0_i32, %c0_i32_0, %c0_i32_1 : i32, i32, i32
  }
  func.func @transform_1(%arg0: i32) -> (i32, i32) {
    %c0_i32 = arith.constant 0 : i32
    %c0_i32_0 = arith.constant 0 : i32
    %c0_i32_1 = arith.constant 0 : i32
    return %c0_i32, %c0_i32_0 : i32, i32
  }
  func.func @transform_2(%arg0: i32) -> (i32, i32) {
    %c0_i32 = arith.constant 0 : i32
    %c0_i32_0 = arith.constant 0 : i32
    %c0_i32_1 = arith.constant 0 : i32
    return %c0_i32, %c0_i32_0 : i32, i32
  }
  func.func @transform_3(%arg0: i32) -> (i32, i32) {
    %c0_i32 = arith.constant 0 : i32
    %c0_i32_0 = arith.constant 0 : i32
    %c0_i32_1 = arith.constant 0 : i32
    return %c0_i32, %c0_i32_0 : i32, i32
  }
  func.func @transform_4(%arg0: i32) -> (i32, i32) {
    %c0_i32 = arith.constant 0 : i32
    %c0_i32_0 = arith.constant 0 : i32
    %c0_i32_1 = arith.constant 0 : i32
    return %c0_i32, %c0_i32_0 : i32, i32
  }
  func.func @transform_5(%arg0: i32) -> (i32, i32) {
    %c0_i32 = arith.constant 0 : i32
    %c0_i32_0 = arith.constant 0 : i32
    %c0_i32_1 = arith.constant 0 : i32
    return %c0_i32, %c0_i32_0 : i32, i32
  }
  func.func @transform_6(%arg0: i32) -> (i32, i32) {
    %c0_i32 = arith.constant 0 : i32
    %c0_i32_0 = arith.constant 0 : i32
    %c0_i32_1 = arith.constant 0 : i32
    return %c0_i32, %c0_i32_0 : i32, i32
  }
}

</mosaic_0001>

<llo_original>
// kernel: dqn_cnn2layer_forward.1
$region0: #{dqn_cnn2layer_forward.1}
  #allocation0 [shape = 'u32[]', space=smem, size = 0x4, offset = 0x4, fixed_abs, tag = 'smem constant byte address 0x4 - core index']
  #allocation1 [shape = 'u32[72,128]{1,0:T(1,128)}', space=vmem, size = 0x9000, scoped, tag = 'internal scratch']
  #allocation2 [shape = 'f32[64,400]{1,0:T(8,128)}', space=vmem, size = 0x20000, scoped, tag = 'scratch operand']
  #allocation3 [shape = 'f32[64,32]{1,0:T(8,128)}', space=vmem, size = 0x8000, scoped, tag = 'scratch operand']
  #allocation4 [shape = 'f32[8,800]{1,0:T(8,128)}', space=vmem, size = 0x7000, scoped, tag = 'scratch operand']
  %s0 = inlined_call_operand.vmem [shape: bf16[25,64,32], index: 0, kind: input, shape index: {}]
  %s1 = inlined_call_operand.vmem [shape: bf16[32,16], index: 1, kind: input, shape index: {}]
  %s2 = inlined_call_operand.vmem [shape: bf16[400,32], index: 2, kind: input, shape index: {}]
  %s3 = inlined_call_operand.vmem [shape: f32[1,32], index: 3, kind: input, shape index: {}]
  %s4 = inlined_call_operand.vmem [shape: bf16[800,128], index: 4, kind: input, shape index: {}]
  %s5 = inlined_call_operand.vmem [shape: f32[1,128], index: 5, kind: input, shape index: {}]
  %s6 = inlined_call_operand.vmem [shape: f32[8,128], index: 6, kind: output, shape index: {}]
  %s7 = sld [smem:[#allocation0]]
  $region34: #{dqn_cnn2layer_forward.1} parent=0
    _
  %s9 = ssub.s32 1, %s7
  %s10 = scalar_select 0, %s9, %s7
  // Predicated region
  $region2: #{dqn_cnn2layer_forward.1} parent=0 // pred_check
    _
  $region3: #{dqn_cnn2layer_forward.1} parent=0 // pred_check_branch
    %12 = sbr.rel (0) target = $region5
  $region4: #{dqn_cnn2layer_forward.1} parent=0 // pred_region
    _
  $region5: #{dqn_cnn2layer_forward.1} parent=0 // pred_fallthru
    _
  // Predicated region
  $region6: #{dqn_cnn2layer_forward.1} parent=0 // pred_check
    _
  $region7: #{dqn_cnn2layer_forward.1} parent=0 // pred_check_branch
    %14 = sbr.rel (0) target = $region9
  $region8: #{dqn_cnn2layer_forward.1} parent=0 // pred_region
    _
  $region9: #{dqn_cnn2layer_forward.1} parent=0 // pred_fallthru
    _
  // Predicated region
  $region10: #{dqn_cnn2layer_forward.1} parent=0 // pred_check
    _
  $region11: #{dqn_cnn2layer_forward.1} parent=0 // pred_check_branch
    %16 = sbr.rel (0) target = $region13
  $region12: #{dqn_cnn2layer_forward.1} parent=0 // pred_region
    _
  $region13: #{dqn_cnn2layer_forward.1} parent=0 // pred_fallthru
    _
  // Predicated region
  $region14: #{dqn_cnn2layer_forward.1} parent=0 // pred_check
    _
  $region15: #{dqn_cnn2layer_forward.1} parent=0 // pred_check_branch
    %18 = sbr.rel (0) target = $region17
  $region16: #{dqn_cnn2layer_forward.1} parent=0 // pred_region
    _
  $region17: #{dqn_cnn2layer_forward.1} parent=0 // pred_fallthru
    _
  // Predicated region
  $region18: #{dqn_cnn2layer_forward.1} parent=0 // pred_check
    _
  $region19: #{dqn_cnn2layer_forward.1} parent=0 // pred_check_branch
    %20 = sbr.rel (0) target = $region21
  $region20: #{dqn_cnn2layer_forward.1} parent=0 // pred_region
    _
  $region21: #{dqn_cnn2layer_forward.1} parent=0 // pred_fallthru
    _
  // Predicated region
  $region22: #{dqn_cnn2layer_forward.1} parent=0 // pred_check
    _
  $region23: #{dqn_cnn2layer_forward.1} parent=0 // pred_check_branch
    %22 = sbr.rel (0) target = $region25
  $region24: #{dqn_cnn2layer_forward.1} parent=0 // pred_region
    _
  $region25: #{dqn_cnn2layer_forward.1} parent=0 // pred_fallthru
    _
  %v24 = vld [vmem:[%s1] sm:$0xf]
  %v25 = vld [vmem:[%s1 + $0x4] sm:$0xf]
  %v26 = vld [vmem:[%s1 + $0x8] sm:$0xf]
  %v27 = vld [vmem:[%s1 + $0xc] sm:$0xf]
  %v28 = vld [vmem:[%s0] sm:$0xf]
  %v29 = vld [vmem:[%s0 + $0x4] sm:$0xf]
  %v30 = vld [vmem:[%s0 + $0x8] sm:$0xf]
  %v31 = vld [vmem:[%s0 + $0xc] sm:$0xf]
  %v32 = vld [vmem:[%s0 + $0x10] sm:$0xf]
  %v33 = vld [vmem:[%s0 + $0x14] sm:$0xf]
  %v34 = vld [vmem:[%s0 + $0x18] sm:$0xf]
  %v35 = vld [vmem:[%s0 + $0x1c] sm:$0xf]
  %v44 = vunpack.c.l.b16 %v28
  %v45 = vunpack.c.l.b16 %v29
  %v46 = vunpack.c.l.b16 %v30
  %v47 = vunpack.c.l.b16 %v31
  %v48 = vunpack.c.l.b16 %v32
  %v49 = vunpack.c.l.b16 %v33
  %v50 = vunpack.c.l.b16 %v34
  %v51 = vunpack.c.l.b16 %v35
  %v52 = vpack.c.b16 %v45, %v44
  %v53 = vpack.c.b16 %v47, %v46
  %v54 = vpack.c.b16 %v49, %v48
  %v55 = vpack.c.b16 %v51, %v50
  %v60 = vunpack.c.l.b16 %v24
  %v61 = vunpack.c.l.b16 %v25
  %v62 = vunpack.c.l.b16 %v26
  %v63 = vunpack.c.l.b16 %v27
  %v64 = vpack.c.b16 %v61, %v60
  %v65 = vpack.c.b16 %v63, %v62
  %vm68 = vcmask 261120
  %v70 = vsel %vm68, %v52, 0
  %v73 = vsel %vm68, %v53, 0
  %v76 = vsel %vm68, %v54, 0
  %v79 = vsel %vm68, %v55, 0
  %81 = vmatpush.bf16.msra.mxu0 0
  %82 = vmatpush.bf16.msra.mxu0 0
  %83 = vmatpush.bf16.msra.mxu0 0
  %84 = vmatpush.bf16.msra.mxu0 0
  %85 = vmatpush.bf16.msra.mxu0 0
  %86 = vmatpush.bf16.msra.mxu0 0
  %87 = vmatpush.bf16.msra.mxu0 %v65
  %88 = vmatpush.bf16.msra.mxu0 %v64
  %89 = vmatmul.bf16.gmra.mxu0 %v70
  %v90 = vpop.f32.mrf.mxu0
  %v91 = vadd.f32 0.0, %v90
  %v92 = vpop.f32.mrf.mxu0
  %v93 = vadd.f32 0.0, %v92
  %94 = vmatmul.bf16.gmra.mxu0 %v73
  %v95 = vpop.f32.mrf.mxu0
  %v96 = vadd.f32 0.0, %v95
  %v97 = vpop.f32.mrf.mxu0
  %v98 = vadd.f32 0.0, %v97
  %99 = vmatmul.bf16.gmra.mxu0 %v76
  %v100 = vpop.f32.mrf.mxu0
  %v101 = vadd.f32 0.0, %v100
  %v102 = vpop.f32.mrf.mxu0
  %v103 = vadd.f32 0.0, %v102
  %104 = vmatmul.bf16.gmra.mxu0 %v79
  %v105 = vpop.f32.mrf.mxu0
  %v106 = vadd.f32 0.0, %v105
  %v107 = vpop.f32.mrf.mxu0
  %v108 = vadd.f32 0.0, %v107
  %109 = vdwg.mxu0
  %v110 = vmax.f32 %v91, 0.0
  %v111 = vmax.f32 %v93, 0.0
  %v112 = vmax.f32 %v96, 0.0
  %v113 = vmax.f32 %v98, 0.0
  %v114 = vmax.f32 %v101, 0.0
  %v115 = vmax.f32 %v103, 0.0
  %v116 = vmax.f32 %v106, 0.0
  %v117 = vmax.f32 %v108, 0.0
  %vm118 = vcmask 130048
  %119 = vst.msk [vmem:[#allocation2] sm:$0xff] %vm118, %v110
  %120 = vst.msk [vmem:[#allocation2 + $0x20] sm:$0xff] %vm118, %v111
  %121 = vst.msk [vmem:[#allocation2 + $0x40] sm:$0xff] %vm118, %v112
  %122 = vst.msk [vmem:[#allocation2 + $0x60] sm:$0xff] %vm118, %v113
  %123 = vst.msk [vmem:[#allocation2 + $0x80] sm:$0xff] %vm118, %v114
  %124 = vst.msk [vmem:[#allocation2 + $0xa0] sm:$0xff] %vm118, %v115
  %125 = vst.msk [vmem:[#allocation2 + $0xc0] sm:$0xff] %vm118, %v116
  %126 = vst.msk [vmem:[#allocation2 + $0xe0] sm:$0xff] %vm118, %v117
  %s127 = scalar_lea.vmem %s0, 32
  %v128 = vld [vmem:[%s127] sm:$0xf]
  %v129 = vld [vmem:[%s127 + $0x4] sm:$0xf]
  %v130 = vld [vmem:[%s127 + $0x8] sm:$0xf]
  %v131 = vld [vmem:[%s127 + $0xc] sm:$0xf]
  %v132 = vld [vmem:[%s127 + $0x10] sm:$0xf]
  %v133 = vld [vmem:[%s127 + $0x14] sm:$0xf]
  %v134 = vld [vmem:[%s127 + $0x18] sm:$0xf]
  %v135 = vld [vmem:[%s127 + $0x1c] sm:$0xf]
  %v144 = vunpack.c.l.b16 %v128
  %v145 = vunpack.c.l.b16 %v129
  %v146 = vunpack.c.l.b16 %v130
  %v147 = vunpack.c.l.b16 %v131
  %v148 = vunpack.c.l.b16 %v132
  %v149 = vunpack.c.l.b16 %v133
  %v150 = vunpack.c.l.b16 %v134
  %v151 = vunpack.c.l.b16 %v135
  %v152 = vpack.c.b16 %v145, %v144
  %v153 = vpack.c.b16 %v147, %v146
  %v154 = vpack.c.b16 %v149, %v148
  %v155 = vpack.c.b16 %v151, %v150
  %v157 = vsel %vm68, %v152, 0
  %v160 = vsel %vm68, %v153, 0
  %v163 = vsel %vm68, %v154, 0
  %v166 = vsel %vm68, %v155, 0
  %168 = vmatpush.bf16.msra.mxu0 0
  %169 = vmatpush.bf16.msra.mxu0 0
  %170 = vmatpush.bf16.msra.mxu0 0
  %171 = vmatpush.bf16.msra.mxu0 0
  %172 = vmatpush.bf16.msra.mxu0 0
  %173 = vmatpush.bf16.msra.mxu0 0
  %174 = vmatpush.bf16.msra.mxu0 %v65
  %175 = vmatpush.bf16.msra.mxu0 %v64
  %176 = vmatmul.bf16.gmra.mxu0 %v157
  %v177 = vpop.f32.mrf.mxu0
  %v178 = vadd.f32 0.0, %v177
  %v179 = vpop.f32.mrf.mxu0
  %v180 = vadd.f32 0.0, %v179
  %181 = vmatmul.bf16.gmra.mxu0 %v160
  %v182 = vpop.f32.mrf.mxu0
  %v183 = vadd.f32 0.0, %v182
  %v184 = vpop.f32.mrf.mxu0
  %v185 = vadd.f32 0.0, %v184
  %186 = vmatmul.bf16.gmra.mxu0 %v163
  %v187 = vpop.f32.mrf.mxu0
  %v188 = vadd.f32 0.0, %v187
  %v189 = vpop.f32.mrf.mxu0
  %v190 = vadd.f32 0.0, %v189
  %191 = vmatmul.bf16.gmra.mxu0 %v166
  %v192 = vpop.f32.mrf.mxu0
  %v193 = vadd.f32 0.0, %v192
  %v194 = vpop.f32.mrf.mxu0
  %v195 = vadd.f32 0.0, %v194
  %196 = vdwg.mxu0
  %v197 = vmax.f32 %v178, 0.0
  %v198 = vmax.f32 %v180, 0.0
  %v199 = vmax.f32 %v183, 0.0
  %v200 = vmax.f32 %v185, 0.0
  %v201 = vmax.f32 %v188, 0.0
  %v202 = vmax.f32 %v190, 0.0
  %v203 = vmax.f32 %v193, 0.0
  %v204 = vmax.f32 %v195, 0.0
  %213 = vrot.lane.b32.xlu0 %v197, 16
  %v214 = vpop.permute.xlu0 %213
  %215 = vrot.lane.b32.xlu0 %v198, 16
  %v216 = vpop.permute.xlu0 %215
  %217 = vrot.lane.b32.xlu0 %v199, 16
  %v218 = vpop.permute.xlu0 %217
  %219 = vrot.lane.b32.xlu0 %v200, 16
  %v220 = vpop.permute.xlu0 %219
  %221 = vrot.lane.b32.xlu0 %v201, 16
  %v222 = vpop.permute.xlu0 %221
  %223 = vrot.lane.b32.xlu0 %v202, 16
  %v224 = vpop.permute.xlu0 %223
  %225 = vrot.lane.b32.xlu0 %v203, 16
  %v226 = vpop.permute.xlu0 %225
  %227 = vrot.lane.b32.xlu0 %v204, 16
  %v228 = vpop.permute.xlu0 %227
  %vm237 = vcmask 261248
  %238 = vst.msk [vmem:[#allocation2] sm:$0xff] %vm237, %v214
  %239 = vst.msk [vmem:[#allocation2 + $0x20] sm:$0xff] %vm237, %v216
  %240 = vst.msk [vmem:[#allocation2 + $0x40] sm:$0xff] %vm237, %v218
  %241 = vst.msk [vmem:[#allocation2 + $0x60] sm:$0xff] %vm237, %v220
  %242 = vst.msk [vmem:[#allocation2 + $0x80] sm:$0xff] %vm237, %v222
  %243 = vst.msk [vmem:[#allocation2 + $0xa0] sm:$0xff] %vm237, %v224
  %244 = vst.msk [vmem:[#allocation2 + $0xc0] sm:$0xff] %vm237, %v226
  %245 = vst.msk [vmem:[#allocation2 + $0xe0] sm:$0xff] %vm237, %v228
  %s246 = scalar_lea.vmem %s0, 64
  %v247 = vld [vmem:[%s246] sm:$0xf]
  %v248 = vld [vmem:[%s246 + $0x4] sm:$0xf]
  %v249 = vld [vmem:[%s246 + $0x8] sm:$0xf]
  %v250 = vld [vmem:[%s246 + $0xc] sm:$0xf]
  %v251 = vld [vmem:[%s246 + $0x10] sm:$0xf]
  %v252 = vld [vmem:[%s246 + $0x14] sm:$0xf]
  %v253 = vld [vmem:[%s246 + $0x18] sm:$0xf]
  %v254 = vld [vmem:[%s246 + $0x1c] sm:$0xf]
  %v263 = vunpack.c.l.b16 %v247
  %v264 = vunpack.c.l.b16 %v248
  %v265 = vunpack.c.l.b16 %v249
  %v266 = vunpack.c.l.b16 %v250
  %v267 = vunpack.c.l.b16 %v251
  %v268 = vunpack.c.l.b16 %v252
  %v269 = vunpack.c.l.b16 %v253
  %v270 = vunpack.c.l.b16 %v254
  %v271 = vpack.c.b16 %v264, %v263
  %v272 = vpack.c.b16 %v266, %v265
  %v273 = vpack.c.b16 %v268, %v267
  %v274 = vpack.c.b16 %v270, %v269
  %v276 = vsel %vm68, %v271, 0
  %v279 = vsel %vm68, %v272, 0
  %v282 = vsel %vm68, %v273, 0
  %v285 = vsel %vm68, %v274, 0
  %287 = vmatpush.bf16.msra.mxu0 0
  %288 = vmatpush.bf16.msra.mxu0 0
  %289 = vmatpush.bf16.msra.mxu0 0
  %290 = vmatpush.bf16.msra.mxu0 0
  %291 = vmatpush.bf16.msra.mxu0 0
  %292 = vmatpush.bf16.msra.mxu0 0
  %293 = vmatpush.bf16.msra.mxu0 %v65
  %294 = vmatpush.bf16.msra.mxu0 %v64
  %295 = vmatmul.bf16.gmra.mxu0 %v276
  %v296 = vpop.f32.mrf.mxu0
  %v297 = vadd.f32 0.0, %v296
  %v298 = vpop.f32.mrf.mxu0
  %v299 = vadd.f32 0.0, %v298
  %300 = vmatmul.bf16.gmra.mxu0 %v279
  %v301 = vpop.f32.mrf.mxu0
  %v302 = vadd.f32 0.0, %v301
  %v303 = vpop.f32.mrf.mxu0
  %v304 = vadd.f32 0.0, %v303
  %305 = vmatmul.bf16.gmra.mxu0 %v282
  %v306 = vpop.f32.mrf.mxu0
  %v307 = vadd.f32 0.0, %v306
  %v308 = vpop.f32.mrf.mxu0
  %v309 = vadd.f32 0.0, %v308
  %310 = vmatmul.bf16.gmra.mxu0 %v285
  %v311 = vpop.f32.mrf.mxu0
  %v312 = vadd.f32 0.0, %v311
  %v313 = vpop.f32.mrf.mxu0
  %v314 = vadd.f32 0.0, %v313
  %315 = vdwg.mxu0
  %v316 = vmax.f32 %v297, 0.0
  %v317 = vmax.f32 %v299, 0.0
  %v318 = vmax.f32 %v302, 0.0
  %v319 = vmax.f32 %v304, 0.0
  %v320 = vmax.f32 %v307, 0.0
  %v321 = vmax.f32 %v309, 0.0
  %v322 = vmax.f32 %v312, 0.0
  %v323 = vmax.f32 %v314, 0.0
  %332 = vrot.lane.b32.xlu0 %v316, 32
  %v333 = vpop.permute.xlu0 %332
  %334 = vrot.lane.b32.xlu0 %v317, 32
  %v335 = vpop.permute.xlu0 %334
  %336 = vrot.lane.b32.xlu0 %v318, 32
  %v337 = vpop.permute.xlu0 %336
  %338 = vrot.lane.b32.xlu0 %v319, 32
  %v339 = vpop.permute.xlu0 %338
  %340 = vrot.lane.b32.xlu0 %v320, 32
  %v341 = vpop.permute.xlu0 %340
  %342 = vrot.lane.b32.xlu0 %v321, 32
  %v343 = vpop.permute.xlu0 %342
  %344 = vrot.lane.b32.xlu0 %v322, 32
  %v345 = vpop.permute.xlu0 %344
  %346 = vrot.lane.b32.xlu0 %v323, 32
  %v347 = vpop.permute.xlu0 %346
  %vm356 = vcmask 392448
  %357 = vst.msk [vmem:[#allocation2] sm:$0xff] %vm356, %v333
  %358 = vst.msk [vmem:[#allocation2 + $0x20] sm:$0xff] %vm356, %v335
  %359 = vst.msk [vmem:[#allocation2 + $0x40] sm:$0xff] %vm356, %v337
  %360 = vst.msk [vmem:[#allocation2 + $0x60] sm:$0xff] %vm356, %v339
  %361 = vst.msk [vmem:[#allocation2 + $0x80] sm:$0xff] %vm356, %v341
  %362 = vst.msk [vmem:[#allocation2 + $0xa0] sm:$0xff] %vm356, %v343
  %363 = vst.msk [vmem:[#allocation2 + $0xc0] sm:$0xff] %vm356, %v345
  %364 = vst.msk [vmem:[#allocation2 + $0xe0] sm:$0xff] %vm356, %v347
  %s365 = scalar_lea.vmem %s0, 96
  %v366 = vld [vmem:[%s365] sm:$0xf]
  %v367 = vld [vmem:[%s365 + $0x4] sm:$0xf]
  %v368 = vld [vmem:[%s365 + $0x8] sm:$0xf]
  %v369 = vld [vmem:[%s365 + $0xc] sm:$0xf]
  %v370 = vld [vmem:[%s365 + $0x10] sm:$0xf]
  %v371 = vld [vmem:[%s365 + $0x14] sm:$0xf]
  %v372 = vld [vmem:[%s365 + $0x18] sm:$0xf]
  %v373 = vld [vmem:[%s365 + $0x1c] sm:$0xf]
  %v382 = vunpack.c.l.b16 %v366
  %v383 = vunpack.c.l.b16 %v367
  %v384 = vunpack.c.l.b16 %v368
  %v385 = vunpack.c.l.b16 %v369
  %v386 = vunpack.c.l.b16 %v370
  %v387 = vunpack.c.l.b16 %v371
  %v388 = vunpack.c.l.b16 %v372
  %v389 = vunpack.c.l.b16 %v373
  %v390 = vpack.c.b16 %v383, %v382
  %v391 = vpack.c.b16 %v385, %v384
  %v392 = vpack.c.b16 %v387, %v386
  %v393 = vpack.c.b16 %v389, %v388
  %v395 = vsel %vm68, %v390, 0
  %v398 = vsel %vm68, %v391, 0
  %v401 = vsel %vm68, %v392, 0
  %v404 = vsel %vm68, %v393, 0
  %406 = vmatpush.bf16.msra.mxu0 0
  %407 = vmatpush.bf16.msra.mxu0 0
  %408 = vmatpush.bf16.msra.mxu0 0
  %409 = vmatpush.bf16.msra.mxu0 0
  %410 = vmatpush.bf16.msra.mxu0 0
  %411 = vmatpush.bf16.msra.mxu0 0
  %412 = vmatpush.bf16.msra.mxu0 %v65
  %413 = vmatpush.bf16.msra.mxu0 %v64
  %414 = vmatmul.bf16.gmra.mxu0 %v395
  %v415 = vpop.f32.mrf.mxu0
  %v416 = vadd.f32 0.0, %v415
  %v417 = vpop.f32.mrf.mxu0
  %v418 = vadd.f32 0.0, %v417
  %419 = vmatmul.bf16.gmra.mxu0 %v398
  %v420 = vpop.f32.mrf.mxu0
  %v421 = vadd.f32 0.0, %v420
  %v422 = vpop.f32.mrf.mxu0
  %v423 = vadd.f32 0.0, %v422
  %424 = vmatmul.bf16.gmra.mxu0 %v401
  %v425 = vpop.f32.mrf.mxu0
  %v426 = vadd.f32 0.0, %v425
  %v427 = vpop.f32.mrf.mxu0
  %v428 = vadd.f32 0.0, %v427
  %429 = vmatmul.bf16.gmra.mxu0 %v404
  %v430 = vpop.f32.mrf.mxu0
  %v431 = vadd.f32 0.0, %v430
  %v432 = vpop.f32.mrf.mxu0
  %v433 = vadd.f32 0.0, %v432
  %434 = vdwg.mxu0
  %v435 = vmax.f32 %v416, 0.0
  %v436 = vmax.f32 %v418, 0.0
  %v437 = vmax.f32 %v421, 0.0
  %v438 = vmax.f32 %v423, 0.0
  %v439 = vmax.f32 %v426, 0.0
  %v440 = vmax.f32 %v428, 0.0
  %v441 = vmax.f32 %v431, 0.0
  %v442 = vmax.f32 %v433, 0.0
  %451 = vrot.lane.b32.xlu0 %v435, 48
  %v452 = vpop.permute.xlu0 %451
  %453 = vrot.lane.b32.xlu0 %v436, 48
  %v454 = vpop.permute.xlu0 %453
  %455 = vrot.lane.b32.xlu0 %v437, 48
  %v456 = vpop.permute.xlu0 %455
  %457 = vrot.lane.b32.xlu0 %v438, 48
  %v458 = vpop.permute.xlu0 %457
  %459 = vrot.lane.b32.xlu0 %v439, 48
  %v460 = vpop.permute.xlu0 %459
  %461 = vrot.lane.b32.xlu0 %v440, 48
  %v462 = vpop.permute.xlu0 %461
  %463 = vrot.lane.b32.xlu0 %v441, 48
  %v464 = vpop.permute.xlu0 %463
  %465 = vrot.lane.b32.xlu0 %v442, 48
  %v466 = vpop.permute.xlu0 %465
  %vm475 = vcmask 523648
  %476 = vst.msk [vmem:[#allocation2] sm:$0xff] %vm475, %v452
  %477 = vst.msk [vmem:[#allocation2 + $0x20] sm:$0xff] %vm475, %v454
  %478 = vst.msk [vmem:[#allocation2 + $0x40] sm:$0xff] %vm475, %v456
  %479 = vst.msk [vmem:[#allocation2 + $0x60] sm:$0xff] %vm475, %v458
  %480 = vst.msk [vmem:[#allocation2 + $0x80] sm:$0xff] %vm475, %v460
  %481 = vst.msk [vmem:[#allocation2 + $0xa0] sm:$0xff] %vm475, %v462
  %482 = vst.msk [vmem:[#allocation2 + $0xc0] sm:$0xff] %vm475, %v464
  %483 = vst.msk [vmem:[#allocation2 + $0xe0] sm:$0xff] %vm475, %v466
  %s484 = scalar_lea.vmem %s0, 128
  %v485 = vld [vmem:[%s484] sm:$0xf]
  %v486 = vld [vmem:[%s484 + $0x4] sm:$0xf]
  %v487 = vld [vmem:[%s484 + $0x8] sm:$0xf]
  %v488 = vld [vmem:[%s484 + $0xc] sm:$0xf]
  %v489 = vld [vmem:[%s484 + $0x10] sm:$0xf]
  %v490 = vld [vmem:[%s484 + $0x14] sm:$0xf]
  %v491 = vld [vmem:[%s484 + $0x18] sm:$0xf]
  %v492 = vld [vmem:[%s484 + $0x1c] sm:$0xf]
  %v501 = vunpack.c.l.b16 %v485
  %v502 = vunpack.c.l.b16 %v486
  %v503 = vunpack.c.l.b16 %v487
  %v504 = vunpack.c.l.b16 %v488
  %v505 = vunpack.c.l.b16 %v489
  %v506 = vunpack.c.l.b16 %v490
  %v507 = vunpack.c.l.b16 %v491
  %v508 = vunpack.c.l.b16 %v492
  %v509 = vpack.c.b16 %v502, %v501
  %v510 = vpack.c.b16 %v504, %v503
  %v511 = vpack.c.b16 %v506, %v505
  %v512 = vpack.c.b16 %v508, %v507
  %v514 = vsel %vm68, %v509, 0
  %v517 = vsel %vm68, %v510, 0
  %v520 = vsel %vm68, %v511, 0
  %v523 = vsel %vm68, %v512, 0
  %525 = vmatpush.bf16.msra.mxu0 0
  %526 = vmatpush.bf16.msra.mxu0 0
  %527 = vmatpush.bf16.msra.mxu0 0
  %528 = vmatpush.bf16.msra.mxu0 0
  %529 = vmatpush.bf16.msra.mxu0 0
  %530 = vmatpush.bf16.msra.mxu0 0
  %531 = vmatpush.bf16.msra.mxu0 %v65
  %532 = vmatpush.bf16.msra.mxu0 %v64
  %533 = vmatmul.bf16.gmra.mxu0 %v514
  %v534 = vpop.f32.mrf.mxu0
  %v535 = vadd.f32 0.0, %v534
  %v536 = vpop.f32.mrf.mxu0
  %v537 = vadd.f32 0.0, %v536
  %538 = vmatmul.bf16.gmra.mxu0 %v517
  %v539 = vpop.f32.mrf.mxu0
  %v540 = vadd.f32 0.0, %v539
  %v541 = vpop.f32.mrf.mxu0
  %v542 = vadd.f32 0.0, %v541
  %543 = vmatmul.bf16.gmra.mxu0 %v520
  %v544 = vpop.f32.mrf.mxu0
  %v545 = vadd.f32 0.0, %v544
  %v546 = vpop.f32.mrf.mxu0
  %v547 = vadd.f32 0.0, %v546
  %548 = vmatmul.bf16.gmra.mxu0 %v523
  %v549 = vpop.f32.mrf.mxu0
  %v550 = vadd.f32 0.0, %v549
  %v551 = vpop.f32.mrf.mxu0
  %v552 = vadd.f32 0.0, %v551
  %553 = vdwg.mxu0
  %v554 = vmax.f32 %v535, 0.0
  %v555 = vmax.f32 %v537, 0.0
  %v556 = vmax.f32 %v540, 0.0
  %v557 = vmax.f32 %v542, 0.0
  %v558 = vmax.f32 %v545, 0.0
  %v559 = vmax.f32 %v547, 0.0
  %v560 = vmax.f32 %v550, 0.0
  %v561 = vmax.f32 %v552, 0.0
  %570 = vrot.lane.b32.xlu0 %v554, 64
  %v571 = vpop.permute.xlu0 %570
  %572 = vrot.lane.b32.xlu0 %v555, 64
  %v573 = vpop.permute.xlu0 %572
  %574 = vrot.lane.b32.xlu0 %v556, 64
  %v575 = vpop.permute.xlu0 %574
  %576 = vrot.lane.b32.xlu0 %v557, 64
  %v577 = vpop.permute.xlu0 %576
  %578 = vrot.lane.b32.xlu0 %v558, 64
  %v579 = vpop.permute.xlu0 %578
  %580 = vrot.lane.b32.xlu0 %v559, 64
  %v581 = vpop.permute.xlu0 %580
  %582 = vrot.lane.b32.xlu0 %v560, 64
  %v583 = vpop.permute.xlu0 %582
  %584 = vrot.lane.b32.xlu0 %v561, 64
  %v585 = vpop.permute.xlu0 %584
  %vm594 = vcmask 654848
  %595 = vst.msk [vmem:[#allocation2] sm:$0xff] %vm594, %v571
  %596 = vst.msk [vmem:[#allocation2 + $0x20] sm:$0xff] %vm594, %v573
  %597 = vst.msk [vmem:[#allocation2 + $0x40] sm:$0xff] %vm594, %v575
  %598 = vst.msk [vmem:[#allocation2 + $0x60] sm:$0xff] %vm594, %v577
  %599 = vst.msk [vmem:[#allocation2 + $0x80] sm:$0xff] %vm594, %v579
  %600 = vst.msk [vmem:[#allocation2 + $0xa0] sm:$0xff] %vm594, %v581
  %601 = vst.msk [vmem:[#allocation2 + $0xc0] sm:$0xff] %vm594, %v583
  %602 = vst.msk [vmem:[#allocation2 + $0xe0] sm:$0xff] %vm594, %v585
  %s603 = scalar_lea.vmem %s0, 160
  %v604 = vld [vmem:[%s603] sm:$0xf]
  %v605 = vld [vmem:[%s603 + $0x4] sm:$0xf]
  %v606 = vld [vmem:[%s603 + $0x8] sm:$0xf]
  %v607 = vld [vmem:[%s603 + $0xc] sm:$0xf]
  %v608 = vld [vmem:[%s603 + $0x10] sm:$0xf]
  %v609 = vld [vmem:[%s603 + $0x14] sm:$0xf]
  %v610 = vld [vmem:[%s603 + $0x18] sm:$0xf]
  %v611 = vld [vmem:[%s603 + $0x1c] sm:$0xf]
  %v620 = vunpack.c.l.b16 %v604
  %v621 = vunpack.c.l.b16 %v605
  %v622 = vunpack.c.l.b16 %v606
  %v623 = vunpack.c.l.b16 %v607
  %v624 = vunpack.c.l.b16 %v608
  %v625 = vunpack.c.l.b16 %v609
  %v626 = vunpack.c.l.b16 %v610
  %v627 = vunpack.c.l.b16 %v611
  %v628 = vpack.c.b16 %v621, %v620
  %v629 = vpack.c.b16 %v623, %v622
  %v630 = vpack.c.b16 %v625, %v624
  %v631 = vpack.c.b16 %v627, %v626
  %v633 = vsel %vm68, %v628, 0
  %v636 = vsel %vm68, %v629, 0
  %v639 = vsel %vm68, %v630, 0
  %v642 = vsel %vm68, %v631, 0
  %644 = vmatpush.bf16.msra.mxu0 0
  %645 = vmatpush.bf16.msra.mxu0 0
  %646 = vmatpush.bf16.msra.mxu0 0
  %647 = vmatpush.bf16.msra.mxu0 0
  %648 = vmatpush.bf16.msra.mxu0 0
  %649 = vmatpush.bf16.msra.mxu0 0
  %650 = vmatpush.bf16.msra.mxu0 %v65
  %651 = vmatpush.bf16.msra.mxu0 %v64
  %652 = vmatmul.bf16.gmra.mxu0 %v633
  %v653 = vpop.f32.mrf.mxu0
  %v654 = vadd.f32 0.0, %v653
  %v655 = vpop.f32.mrf.mxu0
  %v656 = vadd.f32 0.0, %v655
  %657 = vmatmul.bf16.gmra.mxu0 %v636
  %v658 = vpop.f32.mrf.mxu0
  %v659 = vadd.f32 0.0, %v658
  %v660 = vpop.f32.mrf.mxu0
  %v661 = vadd.f32 0.0, %v660
  %662 = vmatmul.bf16.gmra.mxu0 %v639
  %v663 = vpop.f32.mrf.mxu0
  %v664 = vadd.f32 0.0, %v663
  %v665 = vpop.f32.mrf.mxu0
  %v666 = vadd.f32 0.0, %v665
  %667 = vmatmul.bf16.gmra.mxu0 %v642
  %v668 = vpop.f32.mrf.mxu0
  %v669 = vadd.f32 0.0, %v668
  %v670 = vpop.f32.mrf.mxu0
  %v671 = vadd.f32 0.0, %v670
  %672 = vdwg.mxu0
  %v673 = vmax.f32 %v654, 0.0
  %v674 = vmax.f32 %v656, 0.0
  %v675 = vmax.f32 %v659, 0.0
  %v676 = vmax.f32 %v661, 0.0
  %v677 = vmax.f32 %v664, 0.0
  %v678 = vmax.f32 %v666, 0.0
  %v679 = vmax.f32 %v669, 0.0
  %v680 = vmax.f32 %v671, 0.0
  %689 = vrot.lane.b32.xlu0 %v673, 80
  %v690 = vpop.permute.xlu0 %689
  %691 = vrot.lane.b32.xlu0 %v674, 80
  %v692 = vpop.permute.xlu0 %691
  %693 = vrot.lane.b32.xlu0 %v675, 80
  %v694 = vpop.permute.xlu0 %693
  %695 = vrot.lane.b32.xlu0 %v676, 80
  %v696 = vpop.permute.xlu0 %695
  %697 = vrot.lane.b32.xlu0 %v677, 80
  %v698 = vpop.permute.xlu0 %697
  %699 = vrot.lane.b32.xlu0 %v678, 80
  %v700 = vpop.permute.xlu0 %699
  %701 = vrot.lane.b32.xlu0 %v679, 80
  %v702 = vpop.permute.xlu0 %701
  %703 = vrot.lane.b32.xlu0 %v680, 80
  %v704 = vpop.permute.xlu0 %703
  %vm713 = vcmask 786048
  %714 = vst.msk [vmem:[#allocation2] sm:$0xff] %vm713, %v690
  %715 = vst.msk [vmem:[#allocation2 + $0x20] sm:$0xff] %vm713, %v692
  %716 = vst.msk [vmem:[#allocation2 + $0x40] sm:$0xff] %vm713, %v694
  %717 = vst.msk [vmem:[#allocation2 + $0x60] sm:$0xff] %vm713, %v696
  %718 = vst.msk [vmem:[#allocation2 + $0x80] sm:$0xff] %vm713, %v698
  %719 = vst.msk [vmem:[#allocation2 + $0xa0] sm:$0xff] %vm713, %v700
  %720 = vst.msk [vmem:[#allocation2 + $0xc0] sm:$0xff] %vm713, %v702
  %721 = vst.msk [vmem:[#allocation2 + $0xe0] sm:$0xff] %vm713, %v704
  %s722 = scalar_lea.vmem %s0, 192
  %v723 = vld [vmem:[%s722] sm:$0xf]
  %v724 = vld [vmem:[%s722 + $0x4] sm:$0xf]
  %v725 = vld [vmem:[%s722 + $0x8] sm:$0xf]
  %v726 = vld [vmem:[%s722 + $0xc] sm:$0xf]
  %v727 = vld [vmem:[%s722 + $0x10] sm:$0xf]
  %v728 = vld [vmem:[%s722 + $0x14] sm:$0xf]
  %v729 = vld [vmem:[%s722 + $0x18] sm:$0xf]
  %v730 = vld [vmem:[%s722 + $0x1c] sm:$0xf]
  %v739 = vunpack.c.l.b16 %v723
  %v740 = vunpack.c.l.b16 %v724
  %v741 = vunpack.c.l.b16 %v725
  %v742 = vunpack.c.l.b16 %v726
  %v743 = vunpack.c.l.b16 %v727
  %v744 = vunpack.c.l.b16 %v728
  %v745 = vunpack.c.l.b16 %v729
  %v746 = vunpack.c.l.b16 %v730
  %v747 = vpack.c.b16 %v740, %v739
  %v748 = vpack.c.b16 %v742, %v741
  %v749 = vpack.c.b16 %v744, %v743
  %v750 = vpack.c.b16 %v746, %v745
  %v752 = vsel %vm68, %v747, 0
  %v755 = vsel %vm68, %v748, 0
  %v758 = vsel %vm68, %v749, 0
  %v761 = vsel %vm68, %v750, 0
  %763 = vmatpush.bf16.msra.mxu0 0
  %764 = vmatpush.bf16.msra.mxu0 0
  %765 = vmatpush.bf16.msra.mxu0 0
  %766 = vmatpush.bf16.msra.mxu0 0
  %767 = vmatpush.bf16.msra.mxu0 0
  %768 = vmatpush.bf16.msra.mxu0 0
  %769 = vmatpush.bf16.msra.mxu0 %v65
  %770 = vmatpush.bf16.msra.mxu0 %v64
  %771 = vmatmul.bf16.gmra.mxu0 %v752
  %v772 = vpop.f32.mrf.mxu0
  %v773 = vadd.f32 0.0, %v772
  %v774 = vpop.f32.mrf.mxu0
  %v775 = vadd.f32 0.0, %v774
  %776 = vmatmul.bf16.gmra.mxu0 %v755
  %v777 = vpop.f32.mrf.mxu0
  %v778 = vadd.f32 0.0, %v777
  %v779 = vpop.f32.mrf.mxu0
  %v780 = vadd.f32 0.0, %v779
  %781 = vmatmul.bf16.gmra.mxu0 %v758
  %v782 = vpop.f32.mrf.mxu0
  %v783 = vadd.f32 0.0, %v782
  %v784 = vpop.f32.mrf.mxu0
  %v785 = vadd.f32 0.0, %v784
  %786 = vmatmul.bf16.gmra.mxu0 %v761
  %v787 = vpop.f32.mrf.mxu0
  %v788 = vadd.f32 0.0, %v787
  %v789 = vpop.f32.mrf.mxu0
  %v790 = vadd.f32 0.0, %v789
  %791 = vdwg.mxu0
  %v792 = vmax.f32 %v773, 0.0
  %v793 = vmax.f32 %v775, 0.0
  %v794 = vmax.f32 %v778, 0.0
  %v795 = vmax.f32 %v780, 0.0
  %v796 = vmax.f32 %v783, 0.0
  %v797 = vmax.f32 %v785, 0.0
  %v798 = vmax.f32 %v788, 0.0
  %v799 = vmax.f32 %v790, 0.0
  %808 = vrot.lane.b32.xlu0 %v792, 96
  %v809 = vpop.permute.xlu0 %808
  %810 = vrot.lane.b32.xlu0 %v793, 96
  %v811 = vpop.permute.xlu0 %810
  %812 = vrot.lane.b32.xlu0 %v794, 96
  %v813 = vpop.permute.xlu0 %812
  %814 = vrot.lane.b32.xlu0 %v795, 96
  %v815 = vpop.permute.xlu0 %814
  %816 = vrot.lane.b32.xlu0 %v796, 96
  %v817 = vpop.permute.xlu0 %816
  %818 = vrot.lane.b32.xlu0 %v797, 96
  %v819 = vpop.permute.xlu0 %818
  %820 = vrot.lane.b32.xlu0 %v798, 96
  %v821 = vpop.permute.xlu0 %820
  %822 = vrot.lane.b32.xlu0 %v799, 96
  %v823 = vpop.permute.xlu0 %822
  %vm832 = vcmask 917248
  %833 = vst.msk [vmem:[#allocation2] sm:$0xff] %vm832, %v809
  %834 = vst.msk [vmem:[#allocation2 + $0x20] sm:$0xff] %vm832, %v811
  %835 = vst.msk [vmem:[#allocation2 + $0x40] sm:$0xff] %vm832, %v813
  %836 = vst.msk [vmem:[#allocation2 + $0x60] sm:$0xff] %vm832, %v815
  %837 = vst.msk [vmem:[#allocation2 + $0x80] sm:$0xff] %vm832, %v817
  %838 = vst.msk [vmem:[#allocation2 + $0xa0] sm:$0xff] %vm832, %v819
  %839 = vst.msk [vmem:[#allocation2 + $0xc0] sm:$0xff] %vm832, %v821
  %840 = vst.msk [vmem:[#allocation2 + $0xe0] sm:$0xff] %vm832, %v823
  %s841 = scalar_lea.vmem %s0, 224
  %v842 = vld [vmem:[%s841] sm:$0xf]
  %v843 = vld [vmem:[%s841 + $0x4] sm:$0xf]
  %v844 = vld [vmem:[%s841 + $0x8] sm:$0xf]
  %v845 = vld [vmem:[%s841 + $0xc] sm:$0xf]
  %v846 = vld [vmem:[%s841 + $0x10] sm:$0xf]
  %v847 = vld [vmem:[%s841 + $0x14] sm:$0xf]
  %v848 = vld [vmem:[%s841 + $0x18] sm:$0xf]
  %v849 = vld [vmem:[%s841 + $0x1c] sm:$0xf]
  %v858 = vunpack.c.l.b16 %v842
  %v859 = vunpack.c.l.b16 %v843
  %v860 = vunpack.c.l.b16 %v844
  %v861 = vunpack.c.l.b16 %v845
  %v862 = vunpack.c.l.b16 %v846
  %v863 = vunpack.c.l.b16 %v847
  %v864 = vunpack.c.l.b16 %v848
  %v865 = vunpack.c.l.b16 %v849
  %v866 = vpack.c.b16 %v859, %v858
  %v867 = vpack.c.b16 %v861, %v860
  %v868 = vpack.c.b16 %v863, %v862
  %v869 = vpack.c.b16 %v865, %v864
  %v871 = vsel %vm68, %v866, 0
  %v874 = vsel %vm68, %v867, 0
  %v877 = vsel %vm68, %v868, 0
  %v880 = vsel %vm68, %v869, 0
  %882 = vmatpush.bf16.msra.mxu0 0
  %883 = vmatpush.bf16.msra.mxu0 0
  %884 = vmatpush.bf16.msra.mxu0 0
  %885 = vmatpush.bf16.msra.mxu0 0
  %886 = vmatpush.bf16.msra.mxu0 0
  %887 = vmatpush.bf16.msra.mxu0 0
  %888 = vmatpush.bf16.msra.mxu0 %v65
  %889 = vmatpush.bf16.msra.mxu0 %v64
  %890 = vmatmul.bf16.gmra.mxu0 %v871
  %v891 = vpop.f32.mrf.mxu0
  %v892 = vadd.f32 0.0, %v891
  %v893 = vpop.f32.mrf.mxu0
  %v894 = vadd.f32 0.0, %v893
  %895 = vmatmul.bf16.gmra.mxu0 %v874
  %v896 = vpop.f32.mrf.mxu0
  %v897 = vadd.f32 0.0, %v896
  %v898 = vpop.f32.mrf.mxu0
  %v899 = vadd.f32 0.0, %v898
  %900 = vmatmul.bf16.gmra.mxu0 %v877
  %v901 = vpop.f32.mrf.mxu0
  %v902 = vadd.f32 0.0, %v901
  %v903 = vpop.f32.mrf.mxu0
  %v904 = vadd.f32 0.0, %v903
  %905 = vmatmul.bf16.gmra.mxu0 %v880
  %v906 = vpop.f32.mrf.mxu0
  %v907 = vadd.f32 0.0, %v906
  %v908 = vpop.f32.mrf.mxu0
  %v909 = vadd.f32 0.0, %v908
  %910 = vdwg.mxu0
  %v911 = vmax.f32 %v892, 0.0
  %v912 = vmax.f32 %v894, 0.0
  %v913 = vmax.f32 %v897, 0.0
  %v914 = vmax.f32 %v899, 0.0
  %v915 = vmax.f32 %v902, 0.0
  %v916 = vmax.f32 %v904, 0.0
  %v917 = vmax.f32 %v907, 0.0
  %v918 = vmax.f32 %v909, 0.0
  %927 = vrot.lane.b32.xlu0 %v911, 112
  %v928 = vpop.permute.xlu0 %927
  %929 = vrot.lane.b32.xlu0 %v912, 112
  %v930 = vpop.permute.xlu0 %929
  %931 = vrot.lane.b32.xlu0 %v913, 112
  %v932 = vpop.permute.xlu0 %931
  %933 = vrot.lane.b32.xlu0 %v914, 112
  %v934 = vpop.permute.xlu0 %933
  %935 = vrot.lane.b32.xlu0 %v915, 112
  %v936 = vpop.permute.xlu0 %935
  %937 = vrot.lane.b32.xlu0 %v916, 112
  %v938 = vpop.permute.xlu0 %937
  %939 = vrot.lane.b32.xlu0 %v917, 112
  %v940 = vpop.permute.xlu0 %939
  %941 = vrot.lane.b32.xlu0 %v918, 112
  %v942 = vpop.permute.xlu0 %941
  %vm951 = vcmask 1048448
  %952 = vst.msk [vmem:[#allocation2] sm:$0xff] %vm951, %v928
  %953 = vst.msk [vmem:[#allocation2 + $0x20] sm:$0xff] %vm951, %v930
  %954 = vst.msk [vmem:[#allocation2 + $0x40] sm:$0xff] %vm951, %v932
  %955 = vst.msk [vmem:[#allocation2 + $0x60] sm:$0xff] %vm951, %v934
  %956 = vst.msk [vmem:[#allocation2 + $0x80] sm:$0xff] %vm951, %v936
  %957 = vst.msk [vmem:[#allocation2 + $0xa0] sm:$0xff] %vm951, %v938
  %958 = vst.msk [vmem:[#allocation2 + $0xc0] sm:$0xff] %vm951, %v940
  %959 = vst.msk [vmem:[#allocation2 + $0xe0] sm:$0xff] %vm951, %v942
  %s960 = scalar_lea.vmem %s0, 256
  %v961 = vld [vmem:[%s960] sm:$0xf]
  %v962 = vld [vmem:[%s960 + $0x4] sm:$0xf]
  %v963 = vld [vmem:[%s960 + $0x8] sm:$0xf]
  %v964 = vld [vmem:[%s960 + $0xc] sm:$0xf]
  %v965 = vld [vmem:[%s960 + $0x10] sm:$0xf]
  %v966 = vld [vmem:[%s960 + $0x14] sm:$0xf]
  %v967 = vld [vmem:[%s960 + $0x18] sm:$0xf]
  %v968 = vld [vmem:[%s960 + $0x1c] sm:$0xf]
  %v977 = vunpack.c.l.b16 %v961
  %v978 = vunpack.c.l.b16 %v962
  %v979 = vunpack.c.l.b16 %v963
  %v980 = vunpack.c.l.b16 %v964
  %v981 = vunpack.c.l.b16 %v965
  %v982 = vunpack.c.l.b16 %v966
  %v983 = vunpack.c.l.b16 %v967
  %v984 = vunpack.c.l.b16 %v968
  %v985 = vpack.c.b16 %v978, %v977
  %v986 = vpack.c.b16 %v980, %v979
  %v987 = vpack.c.b16 %v982, %v981
  %v988 = vpack.c.b16 %v984, %v983
  %v990 = vsel %vm68, %v985, 0
  %v993 = vsel %vm68, %v986, 0
  %v996 = vsel %vm68, %v987, 0
  %v999 = vsel %vm68, %v988, 0
  %1001 = vmatpush.bf16.msra.mxu0 0
  %1002 = vmatpush.bf16.msra.mxu0 0
  %1003 = vmatpush.bf16.msra.mxu0 0
  %1004 = vmatpush.bf16.msra.mxu0 0
  %1005 = vmatpush.bf16.msra.mxu0 0
  %1006 = vmatpush.bf16.msra.mxu0 0
  %1007 = vmatpush.bf16.msra.mxu0 %v65
  %1008 = vmatpush.bf16.msra.mxu0 %v64
  %1009 = vmatmul.bf16.gmra.mxu0 %v990
  %v1010 = vpop.f32.mrf.mxu0
  %v1011 = vadd.f32 0.0, %v1010
  %v1012 = vpop.f32.mrf.mxu0
  %v1013 = vadd.f32 0.0, %v1012
  %1014 = vmatmul.bf16.gmra.mxu0 %v993
  %v1015 = vpop.f32.mrf.mxu0
  %v1016 = vadd.f32 0.0, %v1015
  %v1017 = vpop.f32.mrf.mxu0
  %v1018 = vadd.f32 0.0, %v1017
  %1019 = vmatmul.bf16.gmra.mxu0 %v996
  %v1020 = vpop.f32.mrf.mxu0
  %v1021 = vadd.f32 0.0, %v1020
  %v1022 = vpop.f32.mrf.mxu0
  %v1023 = vadd.f32 0.0, %v1022
  %1024 = vmatmul.bf16.gmra.mxu0 %v999
  %v1025 = vpop.f32.mrf.mxu0
  %v1026 = vadd.f32 0.0, %v1025
  %v1027 = vpop.f32.mrf.mxu0
  %v1028 = vadd.f32 0.0, %v1027
  %1029 = vdwg.mxu0
  %v1030 = vmax.f32 %v1011, 0.0
  %v1031 = vmax.f32 %v1013, 0.0
  %v1032 = vmax.f32 %v1016, 0.0
  %v1033 = vmax.f32 %v1018, 0.0
  %v1034 = vmax.f32 %v1021, 0.0
  %v1035 = vmax.f32 %v1023, 0.0
  %v1036 = vmax.f32 %v1026, 0.0
  %v1037 = vmax.f32 %v1028, 0.0
  %1038 = vst.msk [vmem:[#allocation2 + $0x8] sm:$0xff] %vm118, %v1030
  %1039 = vst.msk [vmem:[#allocation2 + $0x28] sm:$0xff] %vm118, %v1031
  %1040 = vst.msk [vmem:[#allocation2 + $0x48] sm:$0xff] %vm118, %v1032
  %1041 = vst.msk [vmem:[#allocation2 + $0x68] sm:$0xff] %vm118, %v1033
  %1042 = vst.msk [vmem:[#allocation2 + $0x88] sm:$0xff] %vm118, %v1034
  %1043 = vst.msk [vmem:[#allocation2 + $0xa8] sm:$0xff] %vm118, %v1035
  %1044 = vst.msk [vmem:[#allocation2 + $0xc8] sm:$0xff] %vm118, %v1036
  %1045 = vst.msk [vmem:[#allocation2 + $0xe8] sm:$0xff] %vm118, %v1037
  %s1046 = scalar_lea.vmem %s0, 288
  %v1047 = vld [vmem:[%s1046] sm:$0xf]
  %v1048 = vld [vmem:[%s1046 + $0x4] sm:$0xf]
  %v1049 = vld [vmem:[%s1046 + $0x8] sm:$0xf]
  %v1050 = vld [vmem:[%s1046 + $0xc] sm:$0xf]
  %v1051 = vld [vmem:[%s1046 + $0x10] sm:$0xf]
  %v1052 = vld [vmem:[%s1046 + $0x14] sm:$0xf]
  %v1053 = vld [vmem:[%s1046 + $0x18] sm:$0xf]
  %v1054 = vld [vmem:[%s1046 + $0x1c] sm:$0xf]
  %v1063 = vunpack.c.l.b16 %v1047
  %v1064 = vunpack.c.l.b16 %v1048
  %v1065 = vunpack.c.l.b16 %v1049
  %v1066 = vunpack.c.l.b16 %v1050
  %v1067 = vunpack.c.l.b16 %v1051
  %v1068 = vunpack.c.l.b16 %v1052
  %v1069 = vunpack.c.l.b16 %v1053
  %v1070 = vunpack.c.l.b16 %v1054
  %v1071 = vpack.c.b16 %v1064, %v1063
  %v1072 = vpack.c.b16 %v1066, %v1065
  %v1073 = vpack.c.b16 %v1068, %v1067
  %v1074 = vpack.c.b16 %v1070, %v1069
  %v1076 = vsel %vm68, %v1071, 0
  %v1079 = vsel %vm68, %v1072, 0
  %v1082 = vsel %vm68, %v1073, 0
  %v1085 = vsel %vm68, %v1074, 0
  %1087 = vmatpush.bf16.msra.mxu0 0
  %1088 = vmatpush.bf16.msra.mxu0 0
  %1089 = vmatpush.bf16.msra.mxu0 0
  %1090 = vmatpush.bf16.msra.mxu0 0
  %1091 = vmatpush.bf16.msra.mxu0 0
  %1092 = vmatpush.bf16.msra.mxu0 0
  %1093 = vmatpush.bf16.msra.mxu0 %v65
  %1094 = vmatpush.bf16.msra.mxu0 %v64
  %1095 = vmatmul.bf16.gmra.mxu0 %v1076
  %v1096 = vpop.f32.mrf.mxu0
  %v1097 = vadd.f32 0.0, %v1096
  %v1098 = vpop.f32.mrf.mxu0
  %v1099 = vadd.f32 0.0, %v1098
  %1100 = vmatmul.bf16.gmra.mxu0 %v1079
  %v1101 = vpop.f32.mrf.mxu0
  %v1102 = vadd.f32 0.0, %v1101
  %v1103 = vpop.f32.mrf.mxu0
  %v1104 = vadd.f32 0.0, %v1103
  %1105 = vmatmul.bf16.gmra.mxu0 %v1082
  %v1106 = vpop.f32.mrf.mxu0
  %v1107 = vadd.f32 0.0, %v1106
  %v1108 = vpop.f32.mrf.mxu0
  %v1109 = vadd.f32 0.0, %v1108
  %1110 = vmatmul.bf16.gmra.mxu0 %v1085
  %v1111 = vpop.f32.mrf.mxu0
  %v1112 = vadd.f32 0.0, %v1111
  %v1113 = vpop.f32.mrf.mxu0
  %v1114 = vadd.f32 0.0, %v1113
  %1115 = vdwg.mxu0
  %v1116 = vmax.f32 %v1097, 0.0
  %v1117 = vmax.f32 %v1099, 0.0
  %v1118 = vmax.f32 %v1102, 0.0
  %v1119 = vmax.f32 %v1104, 0.0
  %v1120 = vmax.f32 %v1107, 0.0
  %v1121 = vmax.f32 %v1109, 0.0
  %v1122 = vmax.f32 %v1112, 0.0
  %v1123 = vmax.f32 %v1114, 0.0
  %1132 = vrot.lane.b32.xlu0 %v1116, 16
  %v1133 = vpop.permute.xlu0 %1132
  %1134 = vrot.lane.b32.xlu0 %v1117, 16
  %v1135 = vpop.permute.xlu0 %1134
  %1136 = vrot.lane.b32.xlu0 %v1118, 16
  %v1137 = vpop.permute.xlu0 %1136
  %1138 = vrot.lane.b32.xlu0 %v1119, 16
  %v1139 = vpop.permute.xlu0 %1138
  %1140 = vrot.lane.b32.xlu0 %v1120, 16
  %v1141 = vpop.permute.xlu0 %1140
  %1142 = vrot.lane.b32.xlu0 %v1121, 16
  %v1143 = vpop.permute.xlu0 %1142
  %1144 = vrot.lane.b32.xlu0 %v1122, 16
  %v1145 = vpop.permute.xlu0 %1144
  %1146 = vrot.lane.b32.xlu0 %v1123, 16
  %v1147 = vpop.permute.xlu0 %1146
  %1156 = vst.msk [vmem:[#allocation2 + $0x8] sm:$0xff] %vm237, %v1133
  %1157 = vst.msk [vmem:[#allocation2 + $0x28] sm:$0xff] %vm237, %v1135
  %1158 = vst.msk [vmem:[#allocation2 + $0x48] sm:$0xff] %vm237, %v1137
  %1159 = vst.msk [vmem:[#allocation2 + $0x68] sm:$0xff] %vm237, %v1139
  %1160 = vst.msk [vmem:[#allocation2 + $0x88] sm:$0xff] %vm237, %v1141
  %1161 = vst.msk [vmem:[#allocation2 + $0xa8] sm:$0xff] %vm237, %v1143
  %1162 = vst.msk [vmem:[#allocation2 + $0xc8] sm:$0xff] %vm237, %v1145
  %1163 = vst.msk [vmem:[#allocation2 + $0xe8] sm:$0xff] %vm237, %v1147
  %s1164 = scalar_lea.vmem %s0, 320
  %v1165 = vld [vmem:[%s1164] sm:$0xf]
  %v1166 = vld [vmem:[%s1164 + $0x4] sm:$0xf]
  %v1167 = vld [vmem:[%s1164 + $0x8] sm:$0xf]
  %v1168 = vld [vmem:[%s1164 + $0xc] sm:$0xf]
  %v1169 = vld [vmem:[%s1164 + $0x10] sm:$0xf]
  %v1170 = vld [vmem:[%s1164 + $0x14] sm:$0xf]
  %v1171 = vld [vmem:[%s1164 + $0x18] sm:$0xf]
  %v1172 = vld [vmem:[%s1164 + $0x1c] sm:$0xf]
  %v1181 = vunpack.c.l.b16 %v1165
  %v1182 = vunpack.c.l.b16 %v1166
  %v1183 = vunpack.c.l.b16 %v1167
  %v1184 = vunpack.c.l.b16 %v1168
  %v1185 = vunpack.c.l.b16 %v1169
  %v1186 = vunpack.c.l.b16 %v1170
  %v1187 = vunpack.c.l.b16 %v1171
  %v1188 = vunpack.c.l.b16 %v1172
  %v1189 = vpack.c.b16 %v1182, %v1181
  %v1190 = vpack.c.b16 %v1184, %v1183
  %v1191 = vpack.c.b16 %v1186, %v1185
  %v1192 = vpack.c.b16 %v1188, %v1187
  %v1194 = vsel %vm68, %v1189, 0
  %v1197 = vsel %vm68, %v1190, 0
  %v1200 = vsel %vm68, %v1191, 0
  %v1203 = vsel %vm68, %v1192, 0
  %1205 = vmatpush.bf16.msra.mxu0 0
  %1206 = vmatpush.bf16.msra.mxu0 0
  %1207 = vmatpush.bf16.msra.mxu0 0
  %1208 = vmatpush.bf16.msra.mxu0 0
  %1209 = vmatpush.bf16.msra.mxu0 0
  %1210 = vmatpush.bf16.msra.mxu0 0
  %1211 = vmatpush.bf16.msra.mxu0 %v65
  %1212 = vmatpush.bf16.msra.mxu0 %v64
  %1213 = vmatmul.bf16.gmra.mxu0 %v1194
  %v1214 = vpop.f32.mrf.mxu0
  %v1215 = vadd.f32 0.0, %v1214
  %v1216 = vpop.f32.mrf.mxu0
  %v1217 = vadd.f32 0.0, %v1216
  %1218 = vmatmul.bf16.gmra.mxu0 %v1197
  %v1219 = vpop.f32.mrf.mxu0
  %v1220 = vadd.f32 0.0, %v1219
  %v1221 = vpop.f32.mrf.mxu0
  %v1222 = vadd.f32 0.0, %v1221
  %1223 = vmatmul.bf16.gmra.mxu0 %v1200
  %v1224 = vpop.f32.mrf.mxu0
  %v1225 = vadd.f32 0.0, %v1224
  %v1226 = vpop.f32.mrf.mxu0
  %v1227 = vadd.f32 0.0, %v1226
  %1228 = vmatmul.bf16.gmra.mxu0 %v1203
  %v1229 = vpop.f32.mrf.mxu0
  %v1230 = vadd.f32 0.0, %v1229
  %v1231 = vpop.f32.mrf.mxu0
  %v1232 = vadd.f32 0.0, %v1231
  %1233 = vdwg.mxu0
  %v1234 = vmax.f32 %v1215, 0.0
  %v1235 = vmax.f32 %v1217, 0.0
  %v1236 = vmax.f32 %v1220, 0.0
  %v1237 = vmax.f32 %v1222, 0.0
  %v1238 = vmax.f32 %v1225, 0.0
  %v1239 = vmax.f32 %v1227, 0.0
  %v1240 = vmax.f32 %v1230, 0.0
  %v1241 = vmax.f32 %v1232, 0.0
  %1250 = vrot.lane.b32.xlu0 %v1234, 32
  %v1251 = vpop.permute.xlu0 %1250
  %1252 = vrot.lane.b32.xlu0 %v1235, 32
  %v1253 = vpop.permute.xlu0 %1252
  %1254 = vrot.lane.b32.xlu0 %v1236, 32
  %v1255 = vpop.permute.xlu0 %1254
  %1256 = vrot.lane.b32.xlu0 %v1237, 32
  %v1257 = vpop.permute.xlu0 %1256
  %1258 = vrot.lane.b32.xlu0 %v1238, 32
  %v1259 = vpop.permute.xlu0 %1258
  %1260 = vrot.lane.b32.xlu0 %v1239, 32
  %v1261 = vpop.permute.xlu0 %1260
  %1262 = vrot.lane.b32.xlu0 %v1240, 32
  %v1263 = vpop.permute.xlu0 %1262
  %1264 = vrot.lane.b32.xlu0 %v1241, 32
  %v1265 = vpop.permute.xlu0 %1264
  %1274 = vst.msk [vmem:[#allocation2 + $0x8] sm:$0xff] %vm356, %v1251
  %1275 = vst.msk [vmem:[#allocation2 + $0x28] sm:$0xff] %vm356, %v1253
  %1276 = vst.msk [vmem:[#allocation2 + $0x48] sm:$0xff] %vm356, %v1255
  %1277 = vst.msk [vmem:[#allocation2 + $0x68] sm:$0xff] %vm356, %v1257
  %1278 = vst.msk [vmem:[#allocation2 + $0x88] sm:$0xff] %vm356, %v1259
  %1279 = vst.msk [vmem:[#allocation2 + $0xa8] sm:$0xff] %vm356, %v1261
  %1280 = vst.msk [vmem:[#allocation2 + $0xc8] sm:$0xff] %vm356, %v1263
  %1281 = vst.msk [vmem:[#allocation2 + $0xe8] sm:$0xff] %vm356, %v1265
  %s1282 = scalar_lea.vmem %s0, 352
  %v1283 = vld [vmem:[%s1282] sm:$0xf]
  %v1284 = vld [vmem:[%s1282 + $0x4] sm:$0xf]
  %v1285 = vld [vmem:[%s1282 + $0x8] sm:$0xf]
  %v1286 = vld [vmem:[%s1282 + $0xc] sm:$0xf]
  %v1287 = vld [vmem:[%s1282 + $0x10] sm:$0xf]
  %v1288 = vld [vmem:[%s1282 + $0x14] sm:$0xf]
  %v1289 = vld [vmem:[%s1282 + $0x18] sm:$0xf]
  %v1290 = vld [vmem:[%s1282 + $0x1c] sm:$0xf]
  %v1299 = vunpack.c.l.b16 %v1283
  %v1300 = vunpack.c.l.b16 %v1284
  %v1301 = vunpack.c.l.b16 %v1285
  %v1302 = vunpack.c.l.b16 %v1286
  %v1303 = vunpack.c.l.b16 %v1287
  %v1304 = vunpack.c.l.b16 %v1288
  %v1305 = vunpack.c.l.b16 %v1289
  %v1306 = vunpack.c.l.b16 %v1290
  %v1307 = vpack.c.b16 %v1300, %v1299
  %v1308 = vpack.c.b16 %v1302, %v1301
  %v1309 = vpack.c.b16 %v1304, %v1303
  %v1310 = vpack.c.b16 %v1306, %v1305
  %v1312 = vsel %vm68, %v1307, 0
  %v1315 = vsel %vm68, %v1308, 0
  %v1318 = vsel %vm68, %v1309, 0
  %v1321 = vsel %vm68, %v1310, 0
  %1323 = vmatpush.bf16.msra.mxu0 0
  %1324 = vmatpush.bf16.msra.mxu0 0
  %1325 = vmatpush.bf16.msra.mxu0 0
  %1326 = vmatpush.bf16.msra.mxu0 0
  %1327 = vmatpush.bf16.msra.mxu0 0
  %1328 = vmatpush.bf16.msra.mxu0 0
  %1329 = vmatpush.bf16.msra.mxu0 %v65
  %1330 = vmatpush.bf16.msra.mxu0 %v64
  %1331 = vmatmul.bf16.gmra.mxu0 %v1312
  %v1332 = vpop.f32.mrf.mxu0
  %v1333 = vadd.f32 0.0, %v1332
  %v1334 = vpop.f32.mrf.mxu0
  %v1335 = vadd.f32 0.0, %v1334
  %1336 = vmatmul.bf16.gmra.mxu0 %v1315
  %v1337 = vpop.f32.mrf.mxu0
  %v1338 = vadd.f32 0.0, %v1337
  %v1339 = vpop.f32.mrf.mxu0
  %v1340 = vadd.f32 0.0, %v1339
  %1341 = vmatmul.bf16.gmra.mxu0 %v1318
  %v1342 = vpop.f32.mrf.mxu0
  %v1343 = vadd.f32 0.0, %v1342
  %v1344 = vpop.f32.mrf.mxu0
  %v1345 = vadd.f32 0.0, %v1344
  %1346 = vmatmul.bf16.gmra.mxu0 %v1321
  %v1347 = vpop.f32.mrf.mxu0
  %v1348 = vadd.f32 0.0, %v1347
  %v1349 = vpop.f32.mrf.mxu0
  %v1350 = vadd.f32 0.0, %v1349
  %1351 = vdwg.mxu0
  %v1352 = vmax.f32 %v1333, 0.0
  %v1353 = vmax.f32 %v1335, 0.0
  %v1354 = vmax.f32 %v1338, 0.0
  %v1355 = vmax.f32 %v1340, 0.0
  %v1356 = vmax.f32 %v1343, 0.0
  %v1357 = vmax.f32 %v1345, 0.0
  %v1358 = vmax.f32 %v1348, 0.0
  %v1359 = vmax.f32 %v1350, 0.0
  %1368 = vrot.lane.b32.xlu0 %v1352, 48
  %v1369 = vpop.permute.xlu0 %1368
  %1370 = vrot.lane.b32.xlu0 %v1353, 48
  %v1371 = vpop.permute.xlu0 %1370
  %1372 = vrot.lane.b32.xlu0 %v1354, 48
  %v1373 = vpop.permute.xlu0 %1372
  %1374 = vrot.lane.b32.xlu0 %v1355, 48
  %v1375 = vpop.permute.xlu0 %1374
  %1376 = vrot.lane.b32.xlu0 %v1356, 48
  %v1377 = vpop.permute.xlu0 %1376
  %1378 = vrot.lane.b32.xlu0 %v1357, 48
  %v1379 = vpop.permute.xlu0 %1378
  %1380 = vrot.lane.b32.xlu0 %v1358, 48
  %v1381 = vpop.permute.xlu0 %1380
  %1382 = vrot.lane.b32.xlu0 %v1359, 48
  %v1383 = vpop.permute.xlu0 %1382
  %1392 = vst.msk [vmem:[#allocation2 + $0x8] sm:$0xff] %vm475, %v1369
  %1393 = vst.msk [vmem:[#allocation2 + $0x28] sm:$0xff] %vm475, %v1371
  %1394 = vst.msk [vmem:[#allocation2 + $0x48] sm:$0xff] %vm475, %v1373
  %1395 = vst.msk [vmem:[#allocation2 + $0x68] sm:$0xff] %vm475, %v1375
  %1396 = vst.msk [vmem:[#allocation2 + $0x88] sm:$0xff] %vm475, %v1377
  %1397 = vst.msk [vmem:[#allocation2 + $0xa8] sm:$0xff] %vm475, %v1379
  %1398 = vst.msk [vmem:[#allocation2 + $0xc8] sm:$0xff] %vm475, %v1381
  %1399 = vst.msk [vmem:[#allocation2 + $0xe8] sm:$0xff] %vm475, %v1383
  %s1400 = scalar_lea.vmem %s0, 384
  %v1401 = vld [vmem:[%s1400] sm:$0xf]
  %v1402 = vld [vmem:[%s1400 + $0x4] sm:$0xf]
  %v1403 = vld [vmem:[%s1400 + $0x8] sm:$0xf]
  %v1404 = vld [vmem:[%s1400 + $0xc] sm:$0xf]
  %v1405 = vld [vmem:[%s1400 + $0x10] sm:$0xf]
  %v1406 = vld [vmem:[%s1400 + $0x14] sm:$0xf]
  %v1407 = vld [vmem:[%s1400 + $0x18] sm:$0xf]
  %v1408 = vld [vmem:[%s1400 + $0x1c] sm:$0xf]
  %v1417 = vunpack.c.l.b16 %v1401
  %v1418 = vunpack.c.l.b16 %v1402
  %v1419 = vunpack.c.l.b16 %v1403
  %v1420 = vunpack.c.l.b16 %v1404
  %v1421 = vunpack.c.l.b16 %v1405
  %v1422 = vunpack.c.l.b16 %v1406
  %v1423 = vunpack.c.l.b16 %v1407
  %v1424 = vunpack.c.l.b16 %v1408
  %v1425 = vpack.c.b16 %v1418, %v1417
  %v1426 = vpack.c.b16 %v1420, %v1419
  %v1427 = vpack.c.b16 %v1422, %v1421
  %v1428 = vpack.c.b16 %v1424, %v1423
  %v1430 = vsel %vm68, %v1425, 0
  %v1433 = vsel %vm68, %v1426, 0
  %v1436 = vsel %vm68, %v1427, 0
  %v1439 = vsel %vm68, %v1428, 0
  %1441 = vmatpush.bf16.msra.mxu0 0
  %1442 = vmatpush.bf16.msra.mxu0 0
  %1443 = vmatpush.bf16.msra.mxu0 0
  %1444 = vmatpush.bf16.msra.mxu0 0
  %1445 = vmatpush.bf16.msra.mxu0 0
  %1446 = vmatpush.bf16.msra.mxu0 0
  %1447 = vmatpush.bf16.msra.mxu0 %v65
  %1448 = vmatpush.bf16.msra.mxu0 %v64
  %1449 = vmatmul.bf16.gmra.mxu0 %v1430
  %v1450 = vpop.f32.mrf.mxu0
  %v1451 = vadd.f32 0.0, %v1450
  %v1452 = vpop.f32.mrf.mxu0
  %v1453 = vadd.f32 0.0, %v1452
  %1454 = vmatmul.bf16.gmra.mxu0 %v1433
  %v1455 = vpop.f32.mrf.mxu0
  %v1456 = vadd.f32 0.0, %v1455
  %v1457 = vpop.f32.mrf.mxu0
  %v1458 = vadd.f32 0.0, %v1457
  %1459 = vmatmul.bf16.gmra.mxu0 %v1436
  %v1460 = vpop.f32.mrf.mxu0
  %v1461 = vadd.f32 0.0, %v1460
  %v1462 = vpop.f32.mrf.mxu0
  %v1463 = vadd.f32 0.0, %v1462
  %1464 = vmatmul.bf16.gmra.mxu0 %v1439
  %v1465 = vpop.f32.mrf.mxu0
  %v1466 = vadd.f32 0.0, %v1465
  %v1467 = vpop.f32.mrf.mxu0
  %v1468 = vadd.f32 0.0, %v1467
  %1469 = vdwg.mxu0
  %v1470 = vmax.f32 %v1451, 0.0
  %v1471 = vmax.f32 %v1453, 0.0
  %v1472 = vmax.f32 %v1456, 0.0
  %v1473 = vmax.f32 %v1458, 0.0
  %v1474 = vmax.f32 %v1461, 0.0
  %v1475 = vmax.f32 %v1463, 0.0
  %v1476 = vmax.f32 %v1466, 0.0
  %v1477 = vmax.f32 %v1468, 0.0
  %1486 = vrot.lane.b32.xlu0 %v1470, 64
  %v1487 = vpop.permute.xlu0 %1486
  %1488 = vrot.lane.b32.xlu0 %v1471, 64
  %v1489 = vpop.permute.xlu0 %1488
  %1490 = vrot.lane.b32.xlu0 %v1472, 64
  %v1491 = vpop.permute.xlu0 %1490
  %1492 = vrot.lane.b32.xlu0 %v1473, 64
  %v1493 = vpop.permute.xlu0 %1492
  %1494 = vrot.lane.b32.xlu0 %v1474, 64
  %v1495 = vpop.permute.xlu0 %1494
  %1496 = vrot.lane.b32.xlu0 %v1475, 64
  %v1497 = vpop.permute.xlu0 %1496
  %1498 = vrot.lane.b32.xlu0 %v1476, 64
  %v1499 = vpop.permute.xlu0 %1498
  %1500 = vrot.lane.b32.xlu0 %v1477, 64
  %v1501 = vpop.permute.xlu0 %1500
  %1510 = vst.msk [vmem:[#allocation2 + $0x8] sm:$0xff] %vm594, %v1487
  %1511 = vst.msk [vmem:[#allocation2 + $0x28] sm:$0xff] %vm594, %v1489
  %1512 = vst.msk [vmem:[#allocation2 + $0x48] sm:$0xff] %vm594, %v1491
  %1513 = vst.msk [vmem:[#allocation2 + $0x68] sm:$0xff] %vm594, %v1493
  %1514 = vst.msk [vmem:[#allocation2 + $0x88] sm:$0xff] %vm594, %v1495
  %1515 = vst.msk [vmem:[#allocation2 + $0xa8] sm:$0xff] %vm594, %v1497
  %1516 = vst.msk [vmem:[#allocation2 + $0xc8] sm:$0xff] %vm594, %v1499
  %1517 = vst.msk [vmem:[#allocation2 + $0xe8] sm:$0xff] %vm594, %v1501
  %s1518 = scalar_lea.vmem %s0, 416
  %v1519 = vld [vmem:[%s1518] sm:$0xf]
  %v1520 = vld [vmem:[%s1518 + $0x4] sm:$0xf]
  %v1521 = vld [vmem:[%s1518 + $0x8] sm:$0xf]
  %v1522 = vld [vmem:[%s1518 + $0xc] sm:$0xf]
  %v1523 = vld [vmem:[%s1518 + $0x10] sm:$0xf]
  %v1524 = vld [vmem:[%s1518 + $0x14] sm:$0xf]
  %v1525 = vld [vmem:[%s1518 + $0x18] sm:$0xf]
  %v1526 = vld [vmem:[%s1518 + $0x1c] sm:$0xf]
  %v1535 = vunpack.c.l.b16 %v1519
  %v1536 = vunpack.c.l.b16 %v1520
  %v1537 = vunpack.c.l.b16 %v1521
  %v1538 = vunpack.c.l.b16 %v1522
  %v1539 = vunpack.c.l.b16 %v1523
  %v1540 = vunpack.c.l.b16 %v1524
  %v1541 = vunpack.c.l.b16 %v1525
  %v1542 = vunpack.c.l.b16 %v1526
  %v1543 = vpack.c.b16 %v1536, %v1535
  %v1544 = vpack.c.b16 %v1538, %v1537
  %v1545 = vpack.c.b16 %v1540, %v1539
  %v1546 = vpack.c.b16 %v1542, %v1541
  %v1548 = vsel %vm68, %v1543, 0
  %v1551 = vsel %vm68, %v1544, 0
  %v1554 = vsel %vm68, %v1545, 0
  %v1557 = vsel %vm68, %v1546, 0
  %1559 = vmatpush.bf16.msra.mxu0 0
  %1560 = vmatpush.bf16.msra.mxu0 0
  %1561 = vmatpush.bf16.msra.mxu0 0
  %1562 = vmatpush.bf16.msra.mxu0 0
  %1563 = vmatpush.bf16.msra.mxu0 0
  %1564 = vmatpush.bf16.msra.mxu0 0
  %1565 = vmatpush.bf16.msra.mxu0 %v65
  %1566 = vmatpush.bf16.msra.mxu0 %v64
  %1567 = vmatmul.bf16.gmra.mxu0 %v1548
  %v1568 = vpop.f32.mrf.mxu0
  %v1569 = vadd.f32 0.0, %v1568
  %v1570 = vpop.f32.mrf.mxu0
  %v1571 = vadd.f32 0.0, %v1570
  %1572 = vmatmul.bf16.gmra.mxu0 %v1551
  %v1573 = vpop.f32.mrf.mxu0
  %v1574 = vadd.f32 0.0, %v1573
  %v1575 = vpop.f32.mrf.mxu0
  %v1576 = vadd.f32 0.0, %v1575
  %1577 = vmatmul.bf16.gmra.mxu0 %v1554
  %v1578 = vpop.f32.mrf.mxu0
  %v1579 = vadd.f32 0.0, %v1578
  %v1580 = vpop.f32.mrf.mxu0
  %v1581 = vadd.f32 0.0, %v1580
  %1582 = vmatmul.bf16.gmra.mxu0 %v1557
  %v1583 = vpop.f32.mrf.mxu0
  %v1584 = vadd.f32 0.0, %v1583
  %v1585 = vpop.f32.mrf.mxu0
  %v1586 = vadd.f32 0.0, %v1585
  %1587 = vdwg.mxu0
  %v1588 = vmax.f32 %v1569, 0.0
  %v1589 = vmax.f32 %v1571, 0.0
  %v1590 = vmax.f32 %v1574, 0.0
  %v1591 = vmax.f32 %v1576, 0.0
  %v1592 = vmax.f32 %v1579, 0.0
  %v1593 = vmax.f32 %v1581, 0.0
  %v1594 = vmax.f32 %v1584, 0.0
  %v1595 = vmax.f32 %v1586, 0.0
  %1604 = vrot.lane.b32.xlu0 %v1588, 80
  %v1605 = vpop.permute.xlu0 %1604
  %1606 = vrot.lane.b32.xlu0 %v1589, 80
  %v1607 = vpop.permute.xlu0 %1606
  %1608 = vrot.lane.b32.xlu0 %v1590, 80
  %v1609 = vpop.permute.xlu0 %1608
  %1610 = vrot.lane.b32.xlu0 %v1591, 80
  %v1611 = vpop.permute.xlu0 %1610
  %1612 = vrot.lane.b32.xlu0 %v1592, 80
  %v1613 = vpop.permute.xlu0 %1612
  %1614 = vrot.lane.b32.xlu0 %v1593, 80
  %v1615 = vpop.permute.xlu0 %1614
  %1616 = vrot.lane.b32.xlu0 %v1594, 80
  %v1617 = vpop.permute.xlu0 %1616
  %1618 = vrot.lane.b32.xlu0 %v1595, 80
  %v1619 = vpop.permute.xlu0 %1618
  %1628 = vst.msk [vmem:[#allocation2 + $0x8] sm:$0xff] %vm713, %v1605
  %1629 = vst.msk [vmem:[#allocation2 + $0x28] sm:$0xff] %vm713, %v1607
  %1630 = vst.msk [vmem:[#allocation2 + $0x48] sm:$0xff] %vm713, %v1609
  %1631 = vst.msk [vmem:[#allocation2 + $0x68] sm:$0xff] %vm713, %v1611
  %1632 = vst.msk [vmem:[#allocation2 + $0x88] sm:$0xff] %vm713, %v1613
  %1633 = vst.msk [vmem:[#allocation2 + $0xa8] sm:$0xff] %vm713, %v1615
  %1634 = vst.msk [vmem:[#allocation2 + $0xc8] sm:$0xff] %vm713, %v1617
  %1635 = vst.msk [vmem:[#allocation2 + $0xe8] sm:$0xff] %vm713, %v1619
  %s1636 = scalar_lea.vmem %s0, 448
  %v1637 = vld [vmem:[%s1636] sm:$0xf]
  %v1638 = vld [vmem:[%s1636 + $0x4] sm:$0xf]
  %v1639 = vld [vmem:[%s1636 + $0x8] sm:$0xf]
  %v1640 = vld [vmem:[%s1636 + $0xc] sm:$0xf]
  %v1641 = vld [vmem:[%s1636 + $0x10] sm:$0xf]
  %v1642 = vld [vmem:[%s1636 + $0x14] sm:$0xf]
  %v1643 = vld [vmem:[%s1636 + $0x18] sm:$0xf]
  %v1644 = vld [vmem:[%s1636 + $0x1c] sm:$0xf]
  %v1653 = vunpack.c.l.b16 %v1637
  %v1654 = vunpack.c.l.b16 %v1638
  %v1655 = vunpack.c.l.b16 %v1639
  %v1656 = vunpack.c.l.b16 %v1640
  %v1657 = vunpack.c.l.b16 %v1641
  %v1658 = vunpack.c.l.b16 %v1642
  %v1659 = vunpack.c.l.b16 %v1643
  %v1660 = vunpack.c.l.b16 %v1644
  %v1661 = vpack.c.b16 %v1654, %v1653
  %v1662 = vpack.c.b16 %v1656, %v1655
  %v1663 = vpack.c.b16 %v1658, %v1657
  %v1664 = vpack.c.b16 %v1660, %v1659
  %v1666 = vsel %vm68, %v1661, 0
  %v1669 = vsel %vm68, %v1662, 0
  %v1672 = vsel %vm68, %v1663, 0
  %v1675 = vsel %vm68, %v1664, 0
  %1677 = vmatpush.bf16.msra.mxu0 0
  %1678 = vmatpush.bf16.msra.mxu0 0
  %1679 = vmatpush.bf16.msra.mxu0 0
  %1680 = vmatpush.bf16.msra.mxu0 0
  %1681 = vmatpush.bf16.msra.mxu0 0
  %1682 = vmatpush.bf16.msra.mxu0 0
  %1683 = vmatpush.bf16.msra.mxu0 %v65
  %1684 = vmatpush.bf16.msra.mxu0 %v64
  %1685 = vmatmul.bf16.gmra.mxu0 %v1666
  %v1686 = vpop.f32.mrf.mxu0
  %v1687 = vadd.f32 0.0, %v1686
  %v1688 = vpop.f32.mrf.mxu0
  %v1689 = vadd.f32 0.0, %v1688
  %1690 = vmatmul.bf16.gmra.mxu0 %v1669
  %v1691 = vpop.f32.mrf.mxu0
  %v1692 = vadd.f32 0.0, %v1691
  %v1693 = vpop.f32.mrf.mxu0
  %v1694 = vadd.f32 0.0, %v1693
  %1695 = vmatmul.bf16.gmra.mxu0 %v1672
  %v1696 = vpop.f32.mrf.mxu0
  %v1697 = vadd.f32 0.0, %v1696
  %v1698 = vpop.f32.mrf.mxu0
  %v1699 = vadd.f32 0.0, %v1698
  %1700 = vmatmul.bf16.gmra.mxu0 %v1675
  %v1701 = vpop.f32.mrf.mxu0
  %v1702 = vadd.f32 0.0, %v1701
  %v1703 = vpop.f32.mrf.mxu0
  %v1704 = vadd.f32 0.0, %v1703
  %1705 = vdwg.mxu0
  %v1706 = vmax.f32 %v1687, 0.0
  %v1707 = vmax.f32 %v1689, 0.0
  %v1708 = vmax.f32 %v1692, 0.0
  %v1709 = vmax.f32 %v1694, 0.0
  %v1710 = vmax.f32 %v1697, 0.0
  %v1711 = vmax.f32 %v1699, 0.0
  %v1712 = vmax.f32 %v1702, 0.0
  %v1713 = vmax.f32 %v1704, 0.0
  %1722 = vrot.lane.b32.xlu0 %v1706, 96
  %v1723 = vpop.permute.xlu0 %1722
  %1724 = vrot.lane.b32.xlu0 %v1707, 96
  %v1725 = vpop.permute.xlu0 %1724
  %1726 = vrot.lane.b32.xlu0 %v1708, 96
  %v1727 = vpop.permute.xlu0 %1726
  %1728 = vrot.lane.b32.xlu0 %v1709, 96
  %v1729 = vpop.permute.xlu0 %1728
  %1730 = vrot.lane.b32.xlu0 %v1710, 96
  %v1731 = vpop.permute.xlu0 %1730
  %1732 = vrot.lane.b32.xlu0 %v1711, 96
  %v1733 = vpop.permute.xlu0 %1732
  %1734 = vrot.lane.b32.xlu0 %v1712, 96
  %v1735 = vpop.permute.xlu0 %1734
  %1736 = vrot.lane.b32.xlu0 %v1713, 96
  %v1737 = vpop.permute.xlu0 %1736
  %1746 = vst.msk [vmem:[#allocation2 + $0x8] sm:$0xff] %vm832, %v1723
  %1747 = vst.msk [vmem:[#allocation2 + $0x28] sm:$0xff] %vm832, %v1725
  %1748 = vst.msk [vmem:[#allocation2 + $0x48] sm:$0xff] %vm832, %v1727
  %1749 = vst.msk [vmem:[#allocation2 + $0x68] sm:$0xff] %vm832, %v1729
  %1750 = vst.msk [vmem:[#allocation2 + $0x88] sm:$0xff] %vm832, %v1731
  %1751 = vst.msk [vmem:[#allocation2 + $0xa8] sm:$0xff] %vm832, %v1733
  %1752 = vst.msk [vmem:[#allocation2 + $0xc8] sm:$0xff] %vm832, %v1735
  %1753 = vst.msk [vmem:[#allocation2 + $0xe8] sm:$0xff] %vm832, %v1737
  %s1754 = scalar_lea.vmem %s0, 480
  %v1755 = vld [vmem:[%s1754] sm:$0xf]
  %v1756 = vld [vmem:[%s1754 + $0x4] sm:$0xf]
  %v1757 = vld [vmem:[%s1754 + $0x8] sm:$0xf]
  %v1758 = vld [vmem:[%s1754 + $0xc] sm:$0xf]
  %v1759 = vld [vmem:[%s1754 + $0x10] sm:$0xf]
  %v1760 = vld [vmem:[%s1754 + $0x14] sm:$0xf]
  %v1761 = vld [vmem:[%s1754 + $0x18] sm:$0xf]
  %v1762 = vld [vmem:[%s1754 + $0x1c] sm:$0xf]
  %v1771 = vunpack.c.l.b16 %v1755
  %v1772 = vunpack.c.l.b16 %v1756
  %v1773 = vunpack.c.l.b16 %v1757
  %v1774 = vunpack.c.l.b16 %v1758
  %v1775 = vunpack.c.l.b16 %v1759
  %v1776 = vunpack.c.l.b16 %v1760
  %v1777 = vunpack.c.l.b16 %v1761
  %v1778 = vunpack.c.l.b16 %v1762
  %v1779 = vpack.c.b16 %v1772, %v1771
  %v1780 = vpack.c.b16 %v1774, %v1773
  %v1781 = vpack.c.b16 %v1776, %v1775
  %v1782 = vpack.c.b16 %v1778, %v1777
  %v1784 = vsel %vm68, %v1779, 0
  %v1787 = vsel %vm68, %v1780, 0
  %v1790 = vsel %vm68, %v1781, 0
  %v1793 = vsel %vm68, %v1782, 0
  %1795 = vmatpush.bf16.msra.mxu0 0
  %1796 = vmatpush.bf16.msra.mxu0 0
  %1797 = vmatpush.bf16.msra.mxu0 0
  %1798 = vmatpush.bf16.msra.mxu0 0
  %1799 = vmatpush.bf16.msra.mxu0 0
  %1800 = vmatpush.bf16.msra.mxu0 0
  %1801 = vmatpush.bf16.msra.mxu0 %v65
  %1802 = vmatpush.bf16.msra.mxu0 %v64
  %1803 = vmatmul.bf16.gmra.mxu0 %v1784
  %v1804 = vpop.f32.mrf.mxu0
  %v1805 = vadd.f32 0.0, %v1804
  %v1806 = vpop.f32.mrf.mxu0
  %v1807 = vadd.f32 0.0, %v1806
  %1808 = vmatmul.bf16.gmra.mxu0 %v1787
  %v1809 = vpop.f32.mrf.mxu0
  %v1810 = vadd.f32 0.0, %v1809
  %v1811 = vpop.f32.mrf.mxu0
  %v1812 = vadd.f32 0.0, %v1811
  %1813 = vmatmul.bf16.gmra.mxu0 %v1790
  %v1814 = vpop.f32.mrf.mxu0
  %v1815 = vadd.f32 0.0, %v1814
  %v1816 = vpop.f32.mrf.mxu0
  %v1817 = vadd.f32 0.0, %v1816
  %1818 = vmatmul.bf16.gmra.mxu0 %v1793
  %v1819 = vpop.f32.mrf.mxu0
  %v1820 = vadd.f32 0.0, %v1819
  %v1821 = vpop.f32.mrf.mxu0
  %v1822 = vadd.f32 0.0, %v1821
  %1823 = vdwg.mxu0
  %v1824 = vmax.f32 %v1805, 0.0
  %v1825 = vmax.f32 %v1807, 0.0
  %v1826 = vmax.f32 %v1810, 0.0
  %v1827 = vmax.f32 %v1812, 0.0
  %v1828 = vmax.f32 %v1815, 0.0
  %v1829 = vmax.f32 %v1817, 0.0
  %v1830 = vmax.f32 %v1820, 0.0
  %v1831 = vmax.f32 %v1822, 0.0
  %1840 = vrot.lane.b32.xlu0 %v1824, 112
  %v1841 = vpop.permute.xlu0 %1840
  %1842 = vrot.lane.b32.xlu0 %v1825, 112
  %v1843 = vpop.permute.xlu0 %1842
  %1844 = vrot.lane.b32.xlu0 %v1826, 112
  %v1845 = vpop.permute.xlu0 %1844
  %1846 = vrot.lane.b32.xlu0 %v1827, 112
  %v1847 = vpop.permute.xlu0 %1846
  %1848 = vrot.lane.b32.xlu0 %v1828, 112
  %v1849 = vpop.permute.xlu0 %1848
  %1850 = vrot.lane.b32.xlu0 %v1829, 112
  %v1851 = vpop.permute.xlu0 %1850
  %1852 = vrot.lane.b32.xlu0 %v1830, 112
  %v1853 = vpop.permute.xlu0 %1852
  %1854 = vrot.lane.b32.xlu0 %v1831, 112
  %v1855 = vpop.permute.xlu0 %1854
  %1864 = vst.msk [vmem:[#allocation2 + $0x8] sm:$0xff] %vm951, %v1841
  %1865 = vst.msk [vmem:[#allocation2 + $0x28] sm:$0xff] %vm951, %v1843
  %1866 = vst.msk [vmem:[#allocation2 + $0x48] sm:$0xff] %vm951, %v1845
  %1867 = vst.msk [vmem:[#allocation2 + $0x68] sm:$0xff] %vm951, %v1847
  %1868 = vst.msk [vmem:[#allocation2 + $0x88] sm:$0xff] %vm951, %v1849
  %1869 = vst.msk [vmem:[#allocation2 + $0xa8] sm:$0xff] %vm951, %v1851
  %1870 = vst.msk [vmem:[#allocation2 + $0xc8] sm:$0xff] %vm951, %v1853
  %1871 = vst.msk [vmem:[#allocation2 + $0xe8] sm:$0xff] %vm951, %v1855
  %s1872 = scalar_lea.vmem %s0, 512
  %v1873 = vld [vmem:[%s1872] sm:$0xf]
  %v1874 = vld [vmem:[%s1872 + $0x4] sm:$0xf]
  %v1875 = vld [vmem:[%s1872 + $0x8] sm:$0xf]
  %v1876 = vld [vmem:[%s1872 + $0xc] sm:$0xf]
  %v1877 = vld [vmem:[%s1872 + $0x10] sm:$0xf]
  %v1878 = vld [vmem:[%s1872 + $0x14] sm:$0xf]
  %v1879 = vld [vmem:[%s1872 + $0x18] sm:$0xf]
  %v1880 = vld [vmem:[%s1872 + $0x1c] sm:$0xf]
  %v1889 = vunpack.c.l.b16 %v1873
  %v1890 = vunpack.c.l.b16 %v1874
  %v1891 = vunpack.c.l.b16 %v1875
  %v1892 = vunpack.c.l.b16 %v1876
  %v1893 = vunpack.c.l.b16 %v1877
  %v1894 = vunpack.c.l.b16 %v1878
  %v1895 = vunpack.c.l.b16 %v1879
  %v1896 = vunpack.c.l.b16 %v1880
  %v1897 = vpack.c.b16 %v1890, %v1889
  %v1898 = vpack.c.b16 %v1892, %v1891
  %v1899 = vpack.c.b16 %v1894, %v1893
  %v1900 = vpack.c.b16 %v1896, %v1895
  %v1902 = vsel %vm68, %v1897, 0
  %v1905 = vsel %vm68, %v1898, 0
  %v1908 = vsel %vm68, %v1899, 0
  %v1911 = vsel %vm68, %v1900, 0
  %1913 = vmatpush.bf16.msra.mxu0 0
  %1914 = vmatpush.bf16.msra.mxu0 0
  %1915 = vmatpush.bf16.msra.mxu0 0
  %1916 = vmatpush.bf16.msra.mxu0 0
  %1917 = vmatpush.bf16.msra.mxu0 0
  %1918 = vmatpush.bf16.msra.mxu0 0
  %1919 = vmatpush.bf16.msra.mxu0 %v65
  %1920 = vmatpush.bf16.msra.mxu0 %v64
  %1921 = vmatmul.bf16.gmra.mxu0 %v1902
  %v1922 = vpop.f32.mrf.mxu0
  %v1923 = vadd.f32 0.0, %v1922
  %v1924 = vpop.f32.mrf.mxu0
  %v1925 = vadd.f32 0.0, %v1924
  %1926 = vmatmul.bf16.gmra.mxu0 %v1905
  %v1927 = vpop.f32.mrf.mxu0
  %v1928 = vadd.f32 0.0, %v1927
  %v1929 = vpop.f32.mrf.mxu0
  %v1930 = vadd.f32 0.0, %v1929
  %1931 = vmatmul.bf16.gmra.mxu0 %v1908
  %v1932 = vpop.f32.mrf.mxu0
  %v1933 = vadd.f32 0.0, %v1932
  %v1934 = vpop.f32.mrf.mxu0
  %v1935 = vadd.f32 0.0, %v1934
  %1936 = vmatmul.bf16.gmra.mxu0 %v1911
  %v1937 = vpop.f32.mrf.mxu0
  %v1938 = vadd.f32 0.0, %v1937
  %v1939 = vpop.f32.mrf.mxu0
  %v1940 = vadd.f32 0.0, %v1939
  %1941 = vdwg.mxu0
  %v1942 = vmax.f32 %v1923, 0.0
  %v1943 = vmax.f32 %v1925, 0.0
  %v1944 = vmax.f32 %v1928, 0.0
  %v1945 = vmax.f32 %v1930, 0.0
  %v1946 = vmax.f32 %v1933, 0.0
  %v1947 = vmax.f32 %v1935, 0.0
  %v1948 = vmax.f32 %v1938, 0.0
  %v1949 = vmax.f32 %v1940, 0.0
  %1950 = vst.msk [vmem:[#allocation2 + $0x10] sm:$0xff] %vm118, %v1942
  %1951 = vst.msk [vmem:[#allocation2 + $0x30] sm:$0xff] %vm118, %v1943
  %1952 = vst.msk [vmem:[#allocation2 + $0x50] sm:$0xff] %vm118, %v1944
  %1953 = vst.msk [vmem:[#allocation2 + $0x70] sm:$0xff] %vm118, %v1945
  %1954 = vst.msk [vmem:[#allocation2 + $0x90] sm:$0xff] %vm118, %v1946
  %1955 = vst.msk [vmem:[#allocation2 + $0xb0] sm:$0xff] %vm118, %v1947
  %1956 = vst.msk [vmem:[#allocation2 + $0xd0] sm:$0xff] %vm118, %v1948
  %1957 = vst.msk [vmem:[#allocation2 + $0xf0] sm:$0xff] %vm118, %v1949
  %s1958 = scalar_lea.vmem %s0, 544
  %v1959 = vld [vmem:[%s1958] sm:$0xf]
  %v1960 = vld [vmem:[%s1958 + $0x4] sm:$0xf]
  %v1961 = vld [vmem:[%s1958 + $0x8] sm:$0xf]
  %v1962 = vld [vmem:[%s1958 + $0xc] sm:$0xf]
  %v1963 = vld [vmem:[%s1958 + $0x10] sm:$0xf]
  %v1964 = vld [vmem:[%s1958 + $0x14] sm:$0xf]
  %v1965 = vld [vmem:[%s1958 + $0x18] sm:$0xf]
  %v1966 = vld [vmem:[%s1958 + $0x1c] sm:$0xf]
  %v1975 = vunpack.c.l.b16 %v1959
  %v1976 = vunpack.c.l.b16 %v1960
  %v1977 = vunpack.c.l.b16 %v1961
  %v1978 = vunpack.c.l.b16 %v1962
  %v1979 = vunpack.c.l.b16 %v1963
  %v1980 = vunpack.c.l.b16 %v1964
  %v1981 = vunpack.c.l.b16 %v1965
  %v1982 = vunpack.c.l.b16 %v1966
  %v1983 = vpack.c.b16 %v1976, %v1975
  %v1984 = vpack.c.b16 %v1978, %v1977
  %v1985 = vpack.c.b16 %v1980, %v1979
  %v1986 = vpack.c.b16 %v1982, %v1981
  %v1988 = vsel %vm68, %v1983, 0
  %v1991 = vsel %vm68, %v1984, 0
  %v1994 = vsel %vm68, %v1985, 0
  %v1997 = vsel %vm68, %v1986, 0
  %1999 = vmatpush.bf16.msra.mxu0 0
  %2000 = vmatpush.bf16.msra.mxu0 0
  %2001 = vmatpush.bf16.msra.mxu0 0
  %2002 = vmatpush.bf16.msra.mxu0 0
  %2003 = vmatpush.bf16.msra.mxu0 0
  %2004 = vmatpush.bf16.msra.mxu0 0
  %2005 = vmatpush.bf16.msra.mxu0 %v65
  %2006 = vmatpush.bf16.msra.mxu0 %v64
  %2007 = vmatmul.bf16.gmra.mxu0 %v1988
  %v2008 = vpop.f32.mrf.mxu0
  %v2009 = vadd.f32 0.0, %v2008
  %v2010 = vpop.f32.mrf.mxu0
  %v2011 = vadd.f32 0.0, %v2010
  %2012 = vmatmul.bf16.gmra.mxu0 %v1991
  %v2013 = vpop.f32.mrf.mxu0
  %v2014 = vadd.f32 0.0, %v2013
  %v2015 = vpop.f32.mrf.mxu0
  %v2016 = vadd.f32 0.0, %v2015
  %2017 = vmatmul.bf16.gmra.mxu0 %v1994
  %v2018 = vpop.f32.mrf.mxu0
  %v2019 = vadd.f32 0.0, %v2018
  %v2020 = vpop.f32.mrf.mxu0
  %v2021 = vadd.f32 0.0, %v2020
  %2022 = vmatmul.bf16.gmra.mxu0 %v1997
  %v2023 = vpop.f32.mrf.mxu0
  %v2024 = vadd.f32 0.0, %v2023
  %v2025 = vpop.f32.mrf.mxu0
  %v2026 = vadd.f32 0.0, %v2025
  %2027 = vdwg.mxu0
  %v2028 = vmax.f32 %v2009, 0.0
  %v2029 = vmax.f32 %v2011, 0.0
  %v2030 = vmax.f32 %v2014, 0.0
  %v2031 = vmax.f32 %v2016, 0.0
  %v2032 = vmax.f32 %v2019, 0.0
  %v2033 = vmax.f32 %v2021, 0.0
  %v2034 = vmax.f32 %v2024, 0.0
  %v2035 = vmax.f32 %v2026, 0.0
  %2044 = vrot.lane.b32.xlu0 %v2028, 16
  %v2045 = vpop.permute.xlu0 %2044
  %2046 = vrot.lane.b32.xlu0 %v2029, 16
  %v2047 = vpop.permute.xlu0 %2046
  %2048 = vrot.lane.b32.xlu0 %v2030, 16
  %v2049 = vpop.permute.xlu0 %2048
  %2050 = vrot.lane.b32.xlu0 %v2031, 16
  %v2051 = vpop.permute.xlu0 %2050
  %2052 = vrot.lane.b32.xlu0 %v2032, 16
  %v2053 = vpop.permute.xlu0 %2052
  %2054 = vrot.lane.b32.xlu0 %v2033, 16
  %v2055 = vpop.permute.xlu0 %2054
  %2056 = vrot.lane.b32.xlu0 %v2034, 16
  %v2057 = vpop.permute.xlu0 %2056
  %2058 = vrot.lane.b32.xlu0 %v2035, 16
  %v2059 = vpop.permute.xlu0 %2058
  %2068 = vst.msk [vmem:[#allocation2 + $0x10] sm:$0xff] %vm237, %v2045
  %2069 = vst.msk [vmem:[#allocation2 + $0x30] sm:$0xff] %vm237, %v2047
  %2070 = vst.msk [vmem:[#allocation2 + $0x50] sm:$0xff] %vm237, %v2049
  %2071 = vst.msk [vmem:[#allocation2 + $0x70] sm:$0xff] %vm237, %v2051
  %2072 = vst.msk [vmem:[#allocation2 + $0x90] sm:$0xff] %vm237, %v2053
  %2073 = vst.msk [vmem:[#allocation2 + $0xb0] sm:$0xff] %vm237, %v2055
  %2074 = vst.msk [vmem:[#allocation2 + $0xd0] sm:$0xff] %vm237, %v2057
  %2075 = vst.msk [vmem:[#allocation2 + $0xf0] sm:$0xff] %vm237, %v2059
  %s2076 = scalar_lea.vmem %s0, 576
  %v2077 = vld [vmem:[%s2076] sm:$0xf]
  %v2078 = vld [vmem:[%s2076 + $0x4] sm:$0xf]
  %v2079 = vld [vmem:[%s2076 + $0x8] sm:$0xf]
  %v2080 = vld [vmem:[%s2076 + $0xc] sm:$0xf]
  %v2081 = vld [vmem:[%s2076 + $0x10] sm:$0xf]
  %v2082 = vld [vmem:[%s2076 + $0x14] sm:$0xf]
  %v2083 = vld [vmem:[%s2076 + $0x18] sm:$0xf]
  %v2084 = vld [vmem:[%s2076 + $0x1c] sm:$0xf]
  %v2093 = vunpack.c.l.b16 %v2077
  %v2094 = vunpack.c.l.b16 %v2078
  %v2095 = vunpack.c.l.b16 %v2079
  %v2096 = vunpack.c.l.b16 %v2080
  %v2097 = vunpack.c.l.b16 %v2081
  %v2098 = vunpack.c.l.b16 %v2082
  %v2099 = vunpack.c.l.b16 %v2083
  %v2100 = vunpack.c.l.b16 %v2084
  %v2101 = vpack.c.b16 %v2094, %v2093
  %v2102 = vpack.c.b16 %v2096, %v2095
  %v2103 = vpack.c.b16 %v2098, %v2097
  %v2104 = vpack.c.b16 %v2100, %v2099
  %v2106 = vsel %vm68, %v2101, 0
  %v2109 = vsel %vm68, %v2102, 0
  %v2112 = vsel %vm68, %v2103, 0
  %v2115 = vsel %vm68, %v2104, 0
  %2117 = vmatpush.bf16.msra.mxu0 0
  %2118 = vmatpush.bf16.msra.mxu0 0
  %2119 = vmatpush.bf16.msra.mxu0 0
  %2120 = vmatpush.bf16.msra.mxu0 0
  %2121 = vmatpush.bf16.msra.mxu0 0
  %2122 = vmatpush.bf16.msra.mxu0 0
  %2123 = vmatpush.bf16.msra.mxu0 %v65
  %2124 = vmatpush.bf16.msra.mxu0 %v64
  %2125 = vmatmul.bf16.gmra.mxu0 %v2106
  %v2126 = vpop.f32.mrf.mxu0
  %v2127 = vadd.f32 0.0, %v2126
  %v2128 = vpop.f32.mrf.mxu0
  %v2129 = vadd.f32 0.0, %v2128
  %2130 = vmatmul.bf16.gmra.mxu0 %v2109
  %v2131 = vpop.f32.mrf.mxu0
  %v2132 = vadd.f32 0.0, %v2131
  %v2133 = vpop.f32.mrf.mxu0
  %v2134 = vadd.f32 0.0, %v2133
  %2135 = vmatmul.bf16.gmra.mxu0 %v2112
  %v2136 = vpop.f32.mrf.mxu0
  %v2137 = vadd.f32 0.0, %v2136
  %v2138 = vpop.f32.mrf.mxu0
  %v2139 = vadd.f32 0.0, %v2138
  %2140 = vmatmul.bf16.gmra.mxu0 %v2115
  %v2141 = vpop.f32.mrf.mxu0
  %v2142 = vadd.f32 0.0, %v2141
  %v2143 = vpop.f32.mrf.mxu0
  %v2144 = vadd.f32 0.0, %v2143
  %2145 = vdwg.mxu0
  %v2146 = vmax.f32 %v2127, 0.0
  %v2147 = vmax.f32 %v2129, 0.0
  %v2148 = vmax.f32 %v2132, 0.0
  %v2149 = vmax.f32 %v2134, 0.0
  %v2150 = vmax.f32 %v2137, 0.0
  %v2151 = vmax.f32 %v2139, 0.0
  %v2152 = vmax.f32 %v2142, 0.0
  %v2153 = vmax.f32 %v2144, 0.0
  %2162 = vrot.lane.b32.xlu0 %v2146, 32
  %v2163 = vpop.permute.xlu0 %2162
  %2164 = vrot.lane.b32.xlu0 %v2147, 32
  %v2165 = vpop.permute.xlu0 %2164
  %2166 = vrot.lane.b32.xlu0 %v2148, 32
  %v2167 = vpop.permute.xlu0 %2166
  %2168 = vrot.lane.b32.xlu0 %v2149, 32
  %v2169 = vpop.permute.xlu0 %2168
  %2170 = vrot.lane.b32.xlu0 %v2150, 32
  %v2171 = vpop.permute.xlu0 %2170
  %2172 = vrot.lane.b32.xlu0 %v2151, 32
  %v2173 = vpop.permute.xlu0 %2172
  %2174 = vrot.lane.b32.xlu0 %v2152, 32
  %v2175 = vpop.permute.xlu0 %2174
  %2176 = vrot.lane.b32.xlu0 %v2153, 32
  %v2177 = vpop.permute.xlu0 %2176
  %2186 = vst.msk [vmem:[#allocation2 + $0x10] sm:$0xff] %vm356, %v2163
  %2187 = vst.msk [vmem:[#allocation2 + $0x30] sm:$0xff] %vm356, %v2165
  %2188 = vst.msk [vmem:[#allocation2 + $0x50] sm:$0xff] %vm356, %v2167
  %2189 = vst.msk [vmem:[#allocation2 + $0x70] sm:$0xff] %vm356, %v2169
  %2190 = vst.msk [vmem:[#allocation2 + $0x90] sm:$0xff] %vm356, %v2171
  %2191 = vst.msk [vmem:[#allocation2 + $0xb0] sm:$0xff] %vm356, %v2173
  %2192 = vst.msk [vmem:[#allocation2 + $0xd0] sm:$0xff] %vm356, %v2175
  %2193 = vst.msk [vmem:[#allocation2 + $0xf0] sm:$0xff] %vm356, %v2177
  %s2194 = scalar_lea.vmem %s0, 608
  %v2195 = vld [vmem:[%s2194] sm:$0xf]
  %v2196 = vld [vmem:[%s2194 + $0x4] sm:$0xf]
  %v2197 = vld [vmem:[%s2194 + $0x8] sm:$0xf]
  %v2198 = vld [vmem:[%s2194 + $0xc] sm:$0xf]
  %v2199 = vld [vmem:[%s2194 + $0x10] sm:$0xf]
  %v2200 = vld [vmem:[%s2194 + $0x14] sm:$0xf]
  %v2201 = vld [vmem:[%s2194 + $0x18] sm:$0xf]
  %v2202 = vld [vmem:[%s2194 + $0x1c] sm:$0xf]
  %v2211 = vunpack.c.l.b16 %v2195
  %v2212 = vunpack.c.l.b16 %v2196
  %v2213 = vunpack.c.l.b16 %v2197
  %v2214 = vunpack.c.l.b16 %v2198
  %v2215 = vunpack.c.l.b16 %v2199
  %v2216 = vunpack.c.l.b16 %v2200
  %v2217 = vunpack.c.l.b16 %v2201
  %v2218 = vunpack.c.l.b16 %v2202
  %v2219 = vpack.c.b16 %v2212, %v2211
  %v2220 = vpack.c.b16 %v2214, %v2213
  %v2221 = vpack.c.b16 %v2216, %v2215
  %v2222 = vpack.c.b16 %v2218, %v2217
  %v2224 = vsel %vm68, %v2219, 0
  %v2227 = vsel %vm68, %v2220, 0
  %v2230 = vsel %vm68, %v2221, 0
  %v2233 = vsel %vm68, %v2222, 0
  %2235 = vmatpush.bf16.msra.mxu0 0
  %2236 = vmatpush.bf16.msra.mxu0 0
  %2237 = vmatpush.bf16.msra.mxu0 0
  %2238 = vmatpush.bf16.msra.mxu0 0
  %2239 = vmatpush.bf16.msra.mxu0 0
  %2240 = vmatpush.bf16.msra.mxu0 0
  %2241 = vmatpush.bf16.msra.mxu0 %v65
  %2242 = vmatpush.bf16.msra.mxu0 %v64
  %2243 = vmatmul.bf16.gmra.mxu0 %v2224
  %v2244 = vpop.f32.mrf.mxu0
  %v2245 = vadd.f32 0.0, %v2244
  %v2246 = vpop.f32.mrf.mxu0
  %v2247 = vadd.f32 0.0, %v2246
  %2248 = vmatmul.bf16.gmra.mxu0 %v2227
  %v2249 = vpop.f32.mrf.mxu0
  %v2250 = vadd.f32 0.0, %v2249
  %v2251 = vpop.f32.mrf.mxu0
  %v2252 = vadd.f32 0.0, %v2251
  %2253 = vmatmul.bf16.gmra.mxu0 %v2230
  %v2254 = vpop.f32.mrf.mxu0
  %v2255 = vadd.f32 0.0, %v2254
  %v2256 = vpop.f32.mrf.mxu0
  %v2257 = vadd.f32 0.0, %v2256
  %2258 = vmatmul.bf16.gmra.mxu0 %v2233
  %v2259 = vpop.f32.mrf.mxu0
  %v2260 = vadd.f32 0.0, %v2259
  %v2261 = vpop.f32.mrf.mxu0
  %v2262 = vadd.f32 0.0, %v2261
  %2263 = vdwg.mxu0
  %v2264 = vmax.f32 %v2245, 0.0
  %v2265 = vmax.f32 %v2247, 0.0
  %v2266 = vmax.f32 %v2250, 0.0
  %v2267 = vmax.f32 %v2252, 0.0
  %v2268 = vmax.f32 %v2255, 0.0
  %v2269 = vmax.f32 %v2257, 0.0
  %v2270 = vmax.f32 %v2260, 0.0
  %v2271 = vmax.f32 %v2262, 0.0
  %2280 = vrot.lane.b32.xlu0 %v2264, 48
  %v2281 = vpop.permute.xlu0 %2280
  %2282 = vrot.lane.b32.xlu0 %v2265, 48
  %v2283 = vpop.permute.xlu0 %2282
  %2284 = vrot.lane.b32.xlu0 %v2266, 48
  %v2285 = vpop.permute.xlu0 %2284
  %2286 = vrot.lane.b32.xlu0 %v2267, 48
  %v2287 = vpop.permute.xlu0 %2286
  %2288 = vrot.lane.b32.xlu0 %v2268, 48
  %v2289 = vpop.permute.xlu0 %2288
  %2290 = vrot.lane.b32.xlu0 %v2269, 48
  %v2291 = vpop.permute.xlu0 %2290
  %2292 = vrot.lane.b32.xlu0 %v2270, 48
  %v2293 = vpop.permute.xlu0 %2292
  %2294 = vrot.lane.b32.xlu0 %v2271, 48
  %v2295 = vpop.permute.xlu0 %2294
  %2304 = vst.msk [vmem:[#allocation2 + $0x10] sm:$0xff] %vm475, %v2281
  %2305 = vst.msk [vmem:[#allocation2 + $0x30] sm:$0xff] %vm475, %v2283
  %2306 = vst.msk [vmem:[#allocation2 + $0x50] sm:$0xff] %vm475, %v2285
  %2307 = vst.msk [vmem:[#allocation2 + $0x70] sm:$0xff] %vm475, %v2287
  %2308 = vst.msk [vmem:[#allocation2 + $0x90] sm:$0xff] %vm475, %v2289
  %2309 = vst.msk [vmem:[#allocation2 + $0xb0] sm:$0xff] %vm475, %v2291
  %2310 = vst.msk [vmem:[#allocation2 + $0xd0] sm:$0xff] %vm475, %v2293
  %2311 = vst.msk [vmem:[#allocation2 + $0xf0] sm:$0xff] %vm475, %v2295
  %s2312 = scalar_lea.vmem %s0, 640
  %v2313 = vld [vmem:[%s2312] sm:$0xf]
  %v2314 = vld [vmem:[%s2312 + $0x4] sm:$0xf]
  %v2315 = vld [vmem:[%s2312 + $0x8] sm:$0xf]
  %v2316 = vld [vmem:[%s2312 + $0xc] sm:$0xf]
  %v2317 = vld [vmem:[%s2312 + $0x10] sm:$0xf]
  %v2318 = vld [vmem:[%s2312 + $0x14] sm:$0xf]
  %v2319 = vld [vmem:[%s2312 + $0x18] sm:$0xf]
  %v2320 = vld [vmem:[%s2312 + $0x1c] sm:$0xf]
  %v2329 = vunpack.c.l.b16 %v2313
  %v2330 = vunpack.c.l.b16 %v2314
  %v2331 = vunpack.c.l.b16 %v2315
  %v2332 = vunpack.c.l.b16 %v2316
  %v2333 = vunpack.c.l.b16 %v2317
  %v2334 = vunpack.c.l.b16 %v2318
  %v2335 = vunpack.c.l.b16 %v2319
  %v2336 = vunpack.c.l.b16 %v2320
  %v2337 = vpack.c.b16 %v2330, %v2329
  %v2338 = vpack.c.b16 %v2332, %v2331
  %v2339 = vpack.c.b16 %v2334, %v2333
  %v2340 = vpack.c.b16 %v2336, %v2335
  %v2342 = vsel %vm68, %v2337, 0
  %v2345 = vsel %vm68, %v2338, 0
  %v2348 = vsel %vm68, %v2339, 0
  %v2351 = vsel %vm68, %v2340, 0
  %2353 = vmatpush.bf16.msra.mxu0 0
  %2354 = vmatpush.bf16.msra.mxu0 0
  %2355 = vmatpush.bf16.msra.mxu0 0
  %2356 = vmatpush.bf16.msra.mxu0 0
  %2357 = vmatpush.bf16.msra.mxu0 0
  %2358 = vmatpush.bf16.msra.mxu0 0
  %2359 = vmatpush.bf16.msra.mxu0 %v65
  %2360 = vmatpush.bf16.msra.mxu0 %v64
  %2361 = vmatmul.bf16.gmra.mxu0 %v2342
  %v2362 = vpop.f32.mrf.mxu0
  %v2363 = vadd.f32 0.0, %v2362
  %v2364 = vpop.f32.mrf.mxu0
  %v2365 = vadd.f32 0.0, %v2364
  %2366 = vmatmul.bf16.gmra.mxu0 %v2345
  %v2367 = vpop.f32.mrf.mxu0
  %v2368 = vadd.f32 0.0, %v2367
  %v2369 = vpop.f32.mrf.mxu0
  %v2370 = vadd.f32 0.0, %v2369
  %2371 = vmatmul.bf16.gmra.mxu0 %v2348
  %v2372 = vpop.f32.mrf.mxu0
  %v2373 = vadd.f32 0.0, %v2372
  %v2374 = vpop.f32.mrf.mxu0
  %v2375 = vadd.f32 0.0, %v2374
  %2376 = vmatmul.bf16.gmra.mxu0 %v2351
  %v2377 = vpop.f32.mrf.mxu0
  %v2378 = vadd.f32 0.0, %v2377
  %v2379 = vpop.f32.mrf.mxu0
  %v2380 = vadd.f32 0.0, %v2379
  %2381 = vdwg.mxu0
  %v2382 = vmax.f32 %v2363, 0.0
  %v2383 = vmax.f32 %v2365, 0.0
  %v2384 = vmax.f32 %v2368, 0.0
  %v2385 = vmax.f32 %v2370, 0.0
  %v2386 = vmax.f32 %v2373, 0.0
  %v2387 = vmax.f32 %v2375, 0.0
  %v2388 = vmax.f32 %v2378, 0.0
  %v2389 = vmax.f32 %v2380, 0.0
  %2398 = vrot.lane.b32.xlu0 %v2382, 64
  %v2399 = vpop.permute.xlu0 %2398
  %2400 = vrot.lane.b32.xlu0 %v2383, 64
  %v2401 = vpop.permute.xlu0 %2400
  %2402 = vrot.lane.b32.xlu0 %v2384, 64
  %v2403 = vpop.permute.xlu0 %2402
  %2404 = vrot.lane.b32.xlu0 %v2385, 64
  %v2405 = vpop.permute.xlu0 %2404
  %2406 = vrot.lane.b32.xlu0 %v2386, 64
  %v2407 = vpop.permute.xlu0 %2406
  %2408 = vrot.lane.b32.xlu0 %v2387, 64
  %v2409 = vpop.permute.xlu0 %2408
  %2410 = vrot.lane.b32.xlu0 %v2388, 64
  %v2411 = vpop.permute.xlu0 %2410
  %2412 = vrot.lane.b32.xlu0 %v2389, 64
  %v2413 = vpop.permute.xlu0 %2412
  %2422 = vst.msk [vmem:[#allocation2 + $0x10] sm:$0xff] %vm594, %v2399
  %2423 = vst.msk [vmem:[#allocation2 + $0x30] sm:$0xff] %vm594, %v2401
  %2424 = vst.msk [vmem:[#allocation2 + $0x50] sm:$0xff] %vm594, %v2403
  %2425 = vst.msk [vmem:[#allocation2 + $0x70] sm:$0xff] %vm594, %v2405
  %2426 = vst.msk [vmem:[#allocation2 + $0x90] sm:$0xff] %vm594, %v2407
  %2427 = vst.msk [vmem:[#allocation2 + $0xb0] sm:$0xff] %vm594, %v2409
  %2428 = vst.msk [vmem:[#allocation2 + $0xd0] sm:$0xff] %vm594, %v2411
  %2429 = vst.msk [vmem:[#allocation2 + $0xf0] sm:$0xff] %vm594, %v2413
  %s2430 = scalar_lea.vmem %s0, 672
  %v2431 = vld [vmem:[%s2430] sm:$0xf]
  %v2432 = vld [vmem:[%s2430 + $0x4] sm:$0xf]
  %v2433 = vld [vmem:[%s2430 + $0x8] sm:$0xf]
  %v2434 = vld [vmem:[%s2430 + $0xc] sm:$0xf]
  %v2435 = vld [vmem:[%s2430 + $0x10] sm:$0xf]
  %v2436 = vld [vmem:[%s2430 + $0x14] sm:$0xf]
  %v2437 = vld [vmem:[%s2430 + $0x18] sm:$0xf]
  %v2438 = vld [vmem:[%s2430 + $0x1c] sm:$0xf]
  %v2447 = vunpack.c.l.b16 %v2431
  %v2448 = vunpack.c.l.b16 %v2432
  %v2449 = vunpack.c.l.b16 %v2433
  %v2450 = vunpack.c.l.b16 %v2434
  %v2451 = vunpack.c.l.b16 %v2435
  %v2452 = vunpack.c.l.b16 %v2436
  %v2453 = vunpack.c.l.b16 %v2437
  %v2454 = vunpack.c.l.b16 %v2438
  %v2455 = vpack.c.b16 %v2448, %v2447
  %v2456 = vpack.c.b16 %v2450, %v2449
  %v2457 = vpack.c.b16 %v2452, %v2451
  %v2458 = vpack.c.b16 %v2454, %v2453
  %v2460 = vsel %vm68, %v2455, 0
  %v2463 = vsel %vm68, %v2456, 0
  %v2466 = vsel %vm68, %v2457, 0
  %v2469 = vsel %vm68, %v2458, 0
  %2471 = vmatpush.bf16.msra.mxu0 0
  %2472 = vmatpush.bf16.msra.mxu0 0
  %2473 = vmatpush.bf16.msra.mxu0 0
  %2474 = vmatpush.bf16.msra.mxu0 0
  %2475 = vmatpush.bf16.msra.mxu0 0
  %2476 = vmatpush.bf16.msra.mxu0 0
  %2477 = vmatpush.bf16.msra.mxu0 %v65
  %2478 = vmatpush.bf16.msra.mxu0 %v64
  %2479 = vmatmul.bf16.gmra.mxu0 %v2460
  %v2480 = vpop.f32.mrf.mxu0
  %v2481 = vadd.f32 0.0, %v2480
  %v2482 = vpop.f32.mrf.mxu0
  %v2483 = vadd.f32 0.0, %v2482
  %2484 = vmatmul.bf16.gmra.mxu0 %v2463
  %v2485 = vpop.f32.mrf.mxu0
  %v2486 = vadd.f32 0.0, %v2485
  %v2487 = vpop.f32.mrf.mxu0
  %v2488 = vadd.f32 0.0, %v2487
  %2489 = vmatmul.bf16.gmra.mxu0 %v2466
  %v2490 = vpop.f32.mrf.mxu0
  %v2491 = vadd.f32 0.0, %v2490
  %v2492 = vpop.f32.mrf.mxu0
  %v2493 = vadd.f32 0.0, %v2492
  %2494 = vmatmul.bf16.gmra.mxu0 %v2469
  %v2495 = vpop.f32.mrf.mxu0
  %v2496 = vadd.f32 0.0, %v2495
  %v2497 = vpop.f32.mrf.mxu0
  %v2498 = vadd.f32 0.0, %v2497
  %2499 = vdwg.mxu0
  %v2500 = vmax.f32 %v2481, 0.0
  %v2501 = vmax.f32 %v2483, 0.0
  %v2502 = vmax.f32 %v2486, 0.0
  %v2503 = vmax.f32 %v2488, 0.0
  %v2504 = vmax.f32 %v2491, 0.0
  %v2505 = vmax.f32 %v2493, 0.0
  %v2506 = vmax.f32 %v2496, 0.0
  %v2507 = vmax.f32 %v2498, 0.0
  %2516 = vrot.lane.b32.xlu0 %v2500, 80
  %v2517 = vpop.permute.xlu0 %2516
  %2518 = vrot.lane.b32.xlu0 %v2501, 80
  %v2519 = vpop.permute.xlu0 %2518
  %2520 = vrot.lane.b32.xlu0 %v2502, 80
  %v2521 = vpop.permute.xlu0 %2520
  %2522 = vrot.lane.b32.xlu0 %v2503, 80
  %v2523 = vpop.permute.xlu0 %2522
  %2524 = vrot.lane.b32.xlu0 %v2504, 80
  %v2525 = vpop.permute.xlu0 %2524
  %2526 = vrot.lane.b32.xlu0 %v2505, 80
  %v2527 = vpop.permute.xlu0 %2526
  %2528 = vrot.lane.b32.xlu0 %v2506, 80
  %v2529 = vpop.permute.xlu0 %2528
  %2530 = vrot.lane.b32.xlu0 %v2507, 80
  %v2531 = vpop.permute.xlu0 %2530
  %2540 = vst.msk [vmem:[#allocation2 + $0x10] sm:$0xff] %vm713, %v2517
  %2541 = vst.msk [vmem:[#allocation2 + $0x30] sm:$0xff] %vm713, %v2519
  %2542 = vst.msk [vmem:[#allocation2 + $0x50] sm:$0xff] %vm713, %v2521
  %2543 = vst.msk [vmem:[#allocation2 + $0x70] sm:$0xff] %vm713, %v2523
  %2544 = vst.msk [vmem:[#allocation2 + $0x90] sm:$0xff] %vm713, %v2525
  %2545 = vst.msk [vmem:[#allocation2 + $0xb0] sm:$0xff] %vm713, %v2527
  %2546 = vst.msk [vmem:[#allocation2 + $0xd0] sm:$0xff] %vm713, %v2529
  %2547 = vst.msk [vmem:[#allocation2 + $0xf0] sm:$0xff] %vm713, %v2531
  %s2548 = scalar_lea.vmem %s0, 704
  %v2549 = vld [vmem:[%s2548] sm:$0xf]
  %v2550 = vld [vmem:[%s2548 + $0x4] sm:$0xf]
  %v2551 = vld [vmem:[%s2548 + $0x8] sm:$0xf]
  %v2552 = vld [vmem:[%s2548 + $0xc] sm:$0xf]
  %v2553 = vld [vmem:[%s2548 + $0x10] sm:$0xf]
  %v2554 = vld [vmem:[%s2548 + $0x14] sm:$0xf]
  %v2555 = vld [vmem:[%s2548 + $0x18] sm:$0xf]
  %v2556 = vld [vmem:[%s2548 + $0x1c] sm:$0xf]
  %v2565 = vunpack.c.l.b16 %v2549
  %v2566 = vunpack.c.l.b16 %v2550
  %v2567 = vunpack.c.l.b16 %v2551
  %v2568 = vunpack.c.l.b16 %v2552
  %v2569 = vunpack.c.l.b16 %v2553
  %v2570 = vunpack.c.l.b16 %v2554
  %v2571 = vunpack.c.l.b16 %v2555
  %v2572 = vunpack.c.l.b16 %v2556
  %v2573 = vpack.c.b16 %v2566, %v2565
  %v2574 = vpack.c.b16 %v2568, %v2567
  %v2575 = vpack.c.b16 %v2570, %v2569
  %v2576 = vpack.c.b16 %v2572, %v2571
  %v2578 = vsel %vm68, %v2573, 0
  %v2581 = vsel %vm68, %v2574, 0
  %v2584 = vsel %vm68, %v2575, 0
  %v2587 = vsel %vm68, %v2576, 0
  %2589 = vmatpush.bf16.msra.mxu0 0
  %2590 = vmatpush.bf16.msra.mxu0 0
  %2591 = vmatpush.bf16.msra.mxu0 0
  %2592 = vmatpush.bf16.msra.mxu0 0
  %2593 = vmatpush.bf16.msra.mxu0 0
  %2594 = vmatpush.bf16.msra.mxu0 0
  %2595 = vmatpush.bf16.msra.mxu0 %v65
  %2596 = vmatpush.bf16.msra.mxu0 %v64
  %2597 = vmatmul.bf16.gmra.mxu0 %v2578
  %v2598 = vpop.f32.mrf.mxu0
  %v2599 = vadd.f32 0.0, %v2598
  %v2600 = vpop.f32.mrf.mxu0
  %v2601 = vadd.f32 0.0, %v2600
  %2602 = vmatmul.bf16.gmra.mxu0 %v2581
  %v2603 = vpop.f32.mrf.mxu0
  %v2604 = vadd.f32 0.0, %v2603
  %v2605 = vpop.f32.mrf.mxu0
  %v2606 = vadd.f32 0.0, %v2605
  %2607 = vmatmul.bf16.gmra.mxu0 %v2584
  %v2608 = vpop.f32.mrf.mxu0
  %v2609 = vadd.f32 0.0, %v2608
  %v2610 = vpop.f32.mrf.mxu0
  %v2611 = vadd.f32 0.0, %v2610
  %2612 = vmatmul.bf16.gmra.mxu0 %v2587
  %v2613 = vpop.f32.mrf.mxu0
  %v2614 = vadd.f32 0.0, %v2613
  %v2615 = vpop.f32.mrf.mxu0
  %v2616 = vadd.f32 0.0, %v2615
  %2617 = vdwg.mxu0
  %v2618 = vmax.f32 %v2599, 0.0
  %v2619 = vmax.f32 %v2601, 0.0
  %v2620 = vmax.f32 %v2604, 0.0
  %v2621 = vmax.f32 %v2606, 0.0
  %v2622 = vmax.f32 %v2609, 0.0
  %v2623 = vmax.f32 %v2611, 0.0
  %v2624 = vmax.f32 %v2614, 0.0
  %v2625 = vmax.f32 %v2616, 0.0
  %2634 = vrot.lane.b32.xlu0 %v2618, 96
  %v2635 = vpop.permute.xlu0 %2634
  %2636 = vrot.lane.b32.xlu0 %v2619, 96
  %v2637 = vpop.permute.xlu0 %2636
  %2638 = vrot.lane.b32.xlu0 %v2620, 96
  %v2639 = vpop.permute.xlu0 %2638
  %2640 = vrot.lane.b32.xlu0 %v2621, 96
  %v2641 = vpop.permute.xlu0 %2640
  %2642 = vrot.lane.b32.xlu0 %v2622, 96
  %v2643 = vpop.permute.xlu0 %2642
  %2644 = vrot.lane.b32.xlu0 %v2623, 96
  %v2645 = vpop.permute.xlu0 %2644
  %2646 = vrot.lane.b32.xlu0 %v2624, 96
  %v2647 = vpop.permute.xlu0 %2646
  %2648 = vrot.lane.b32.xlu0 %v2625, 96
  %v2649 = vpop.permute.xlu0 %2648
  %2658 = vst.msk [vmem:[#allocation2 + $0x10] sm:$0xff] %vm832, %v2635
  %2659 = vst.msk [vmem:[#allocation2 + $0x30] sm:$0xff] %vm832, %v2637
  %2660 = vst.msk [vmem:[#allocation2 + $0x50] sm:$0xff] %vm832, %v2639
  %2661 = vst.msk [vmem:[#allocation2 + $0x70] sm:$0xff] %vm832, %v2641
  %2662 = vst.msk [vmem:[#allocation2 + $0x90] sm:$0xff] %vm832, %v2643
  %2663 = vst.msk [vmem:[#allocation2 + $0xb0] sm:$0xff] %vm832, %v2645
  %2664 = vst.msk [vmem:[#allocation2 + $0xd0] sm:$0xff] %vm832, %v2647
  %2665 = vst.msk [vmem:[#allocation2 + $0xf0] sm:$0xff] %vm832, %v2649
  %s2666 = scalar_lea.vmem %s0, 736
  %v2667 = vld [vmem:[%s2666] sm:$0xf]
  %v2668 = vld [vmem:[%s2666 + $0x4] sm:$0xf]
  %v2669 = vld [vmem:[%s2666 + $0x8] sm:$0xf]
  %v2670 = vld [vmem:[%s2666 + $0xc] sm:$0xf]
  %v2671 = vld [vmem:[%s2666 + $0x10] sm:$0xf]
  %v2672 = vld [vmem:[%s2666 + $0x14] sm:$0xf]
  %v2673 = vld [vmem:[%s2666 + $0x18] sm:$0xf]
  %v2674 = vld [vmem:[%s2666 + $0x1c] sm:$0xf]
  %v2683 = vunpack.c.l.b16 %v2667
  %v2684 = vunpack.c.l.b16 %v2668
  %v2685 = vunpack.c.l.b16 %v2669
  %v2686 = vunpack.c.l.b16 %v2670
  %v2687 = vunpack.c.l.b16 %v2671
  %v2688 = vunpack.c.l.b16 %v2672
  %v2689 = vunpack.c.l.b16 %v2673
  %v2690 = vunpack.c.l.b16 %v2674
  %v2691 = vpack.c.b16 %v2684, %v2683
  %v2692 = vpack.c.b16 %v2686, %v2685
  %v2693 = vpack.c.b16 %v2688, %v2687
  %v2694 = vpack.c.b16 %v2690, %v2689
  %v2696 = vsel %vm68, %v2691, 0
  %v2699 = vsel %vm68, %v2692, 0
  %v2702 = vsel %vm68, %v2693, 0
  %v2705 = vsel %vm68, %v2694, 0
  %2707 = vmatpush.bf16.msra.mxu0 0
  %2708 = vmatpush.bf16.msra.mxu0 0
  %2709 = vmatpush.bf16.msra.mxu0 0
  %2710 = vmatpush.bf16.msra.mxu0 0
  %2711 = vmatpush.bf16.msra.mxu0 0
  %2712 = vmatpush.bf16.msra.mxu0 0
  %2713 = vmatpush.bf16.msra.mxu0 %v65
  %2714 = vmatpush.bf16.msra.mxu0 %v64
  %2715 = vmatmul.bf16.gmra.mxu0 %v2696
  %v2716 = vpop.f32.mrf.mxu0
  %v2717 = vadd.f32 0.0, %v2716
  %v2718 = vpop.f32.mrf.mxu0
  %v2719 = vadd.f32 0.0, %v2718
  %2720 = vmatmul.bf16.gmra.mxu0 %v2699
  %v2721 = vpop.f32.mrf.mxu0
  %v2722 = vadd.f32 0.0, %v2721
  %v2723 = vpop.f32.mrf.mxu0
  %v2724 = vadd.f32 0.0, %v2723
  %2725 = vmatmul.bf16.gmra.mxu0 %v2702
  %v2726 = vpop.f32.mrf.mxu0
  %v2727 = vadd.f32 0.0, %v2726
  %v2728 = vpop.f32.mrf.mxu0
  %v2729 = vadd.f32 0.0, %v2728
  %2730 = vmatmul.bf16.gmra.mxu0 %v2705
  %v2731 = vpop.f32.mrf.mxu0
  %v2732 = vadd.f32 0.0, %v2731
  %v2733 = vpop.f32.mrf.mxu0
  %v2734 = vadd.f32 0.0, %v2733
  %2735 = vdwg.mxu0
  %v2736 = vmax.f32 %v2717, 0.0
  %v2737 = vmax.f32 %v2719, 0.0
  %v2738 = vmax.f32 %v2722, 0.0
  %v2739 = vmax.f32 %v2724, 0.0
  %v2740 = vmax.f32 %v2727, 0.0
  %v2741 = vmax.f32 %v2729, 0.0
  %v2742 = vmax.f32 %v2732, 0.0
  %v2743 = vmax.f32 %v2734, 0.0
  %2752 = vrot.lane.b32.xlu0 %v2736, 112
  %v2753 = vpop.permute.xlu0 %2752
  %2754 = vrot.lane.b32.xlu0 %v2737, 112
  %v2755 = vpop.permute.xlu0 %2754
  %2756 = vrot.lane.b32.xlu0 %v2738, 112
  %v2757 = vpop.permute.xlu0 %2756
  %2758 = vrot.lane.b32.xlu0 %v2739, 112
  %v2759 = vpop.permute.xlu0 %2758
  %2760 = vrot.lane.b32.xlu0 %v2740, 112
  %v2761 = vpop.permute.xlu0 %2760
  %2762 = vrot.lane.b32.xlu0 %v2741, 112
  %v2763 = vpop.permute.xlu0 %2762
  %2764 = vrot.lane.b32.xlu0 %v2742, 112
  %v2765 = vpop.permute.xlu0 %2764
  %2766 = vrot.lane.b32.xlu0 %v2743, 112
  %v2767 = vpop.permute.xlu0 %2766
  %2776 = vst.msk [vmem:[#allocation2 + $0x10] sm:$0xff] %vm951, %v2753
  %2777 = vst.msk [vmem:[#allocation2 + $0x30] sm:$0xff] %vm951, %v2755
  %2778 = vst.msk [vmem:[#allocation2 + $0x50] sm:$0xff] %vm951, %v2757
  %2779 = vst.msk [vmem:[#allocation2 + $0x70] sm:$0xff] %vm951, %v2759
  %2780 = vst.msk [vmem:[#allocation2 + $0x90] sm:$0xff] %vm951, %v2761
  %2781 = vst.msk [vmem:[#allocation2 + $0xb0] sm:$0xff] %vm951, %v2763
  %2782 = vst.msk [vmem:[#allocation2 + $0xd0] sm:$0xff] %vm951, %v2765
  %2783 = vst.msk [vmem:[#allocation2 + $0xf0] sm:$0xff] %vm951, %v2767
  %s2784 = scalar_lea.vmem %s0, 768
  %v2785 = vld [vmem:[%s2784] sm:$0xf]
  %v2786 = vld [vmem:[%s2784 + $0x4] sm:$0xf]
  %v2787 = vld [vmem:[%s2784 + $0x8] sm:$0xf]
  %v2788 = vld [vmem:[%s2784 + $0xc] sm:$0xf]
  %v2789 = vld [vmem:[%s2784 + $0x10] sm:$0xf]
  %v2790 = vld [vmem:[%s2784 + $0x14] sm:$0xf]
  %v2791 = vld [vmem:[%s2784 + $0x18] sm:$0xf]
  %v2792 = vld [vmem:[%s2784 + $0x1c] sm:$0xf]
  %v2801 = vunpack.c.l.b16 %v2785
  %v2802 = vunpack.c.l.b16 %v2786
  %v2803 = vunpack.c.l.b16 %v2787
  %v2804 = vunpack.c.l.b16 %v2788
  %v2805 = vunpack.c.l.b16 %v2789
  %v2806 = vunpack.c.l.b16 %v2790
  %v2807 = vunpack.c.l.b16 %v2791
  %v2808 = vunpack.c.l.b16 %v2792
  %v2809 = vpack.c.b16 %v2802, %v2801
  %v2810 = vpack.c.b16 %v2804, %v2803
  %v2811 = vpack.c.b16 %v2806, %v2805
  %v2812 = vpack.c.b16 %v2808, %v2807
  %v2814 = vsel %vm68, %v2809, 0
  %v2817 = vsel %vm68, %v2810, 0
  %v2820 = vsel %vm68, %v2811, 0
  %v2823 = vsel %vm68, %v2812, 0
  %2825 = vmatpush.bf16.msra.mxu0 0
  %2826 = vmatpush.bf16.msra.mxu0 0
  %2827 = vmatpush.bf16.msra.mxu0 0
  %2828 = vmatpush.bf16.msra.mxu0 0
  %2829 = vmatpush.bf16.msra.mxu0 0
  %2830 = vmatpush.bf16.msra.mxu0 0
  %2831 = vmatpush.bf16.msra.mxu0 %v65
  %2832 = vmatpush.bf16.msra.mxu0 %v64
  %2833 = vmatmul.bf16.gmra.mxu0 %v2814
  %v2834 = vpop.f32.mrf.mxu0
  %v2835 = vadd.f32 0.0, %v2834
  %v2836 = vpop.f32.mrf.mxu0
  %v2837 = vadd.f32 0.0, %v2836
  %2838 = vmatmul.bf16.gmra.mxu0 %v2817
  %v2839 = vpop.f32.mrf.mxu0
  %v2840 = vadd.f32 0.0, %v2839
  %v2841 = vpop.f32.mrf.mxu0
  %v2842 = vadd.f32 0.0, %v2841
  %2843 = vmatmul.bf16.gmra.mxu0 %v2820
  %v2844 = vpop.f32.mrf.mxu0
  %v2845 = vadd.f32 0.0, %v2844
  %v2846 = vpop.f32.mrf.mxu0
  %v2847 = vadd.f32 0.0, %v2846
  %2848 = vmatmul.bf16.gmra.mxu0 %v2823
  %v2849 = vpop.f32.mrf.mxu0
  %v2850 = vadd.f32 0.0, %v2849
  %v2851 = vpop.f32.mrf.mxu0
  %v2852 = vadd.f32 0.0, %v2851
  %2853 = vdwg.mxu0
  %v2854 = vmax.f32 %v2835, 0.0
  %v2855 = vmax.f32 %v2837, 0.0
  %v2856 = vmax.f32 %v2840, 0.0
  %v2857 = vmax.f32 %v2842, 0.0
  %v2858 = vmax.f32 %v2845, 0.0
  %v2859 = vmax.f32 %v2847, 0.0
  %v2860 = vmax.f32 %v2850, 0.0
  %v2861 = vmax.f32 %v2852, 0.0
  %2862 = vst.msk [vmem:[#allocation2 + $0x18] sm:$0xff] %vm118, %v2854
  %2863 = vst.msk [vmem:[#allocation2 + $0x38] sm:$0xff] %vm118, %v2855
  %2864 = vst.msk [vmem:[#allocation2 + $0x58] sm:$0xff] %vm118, %v2856
  %2865 = vst.msk [vmem:[#allocation2 + $0x78] sm:$0xff] %vm118, %v2857
  %2866 = vst.msk [vmem:[#allocation2 + $0x98] sm:$0xff] %vm118, %v2858
  %2867 = vst.msk [vmem:[#allocation2 + $0xb8] sm:$0xff] %vm118, %v2859
  %2868 = vst.msk [vmem:[#allocation2 + $0xd8] sm:$0xff] %vm118, %v2860
  %2869 = vst.msk [vmem:[#allocation2 + $0xf8] sm:$0xff] %vm118, %v2861
  %v2870 = vld [vmem:[#allocation2] sm:$0xff]
  %v2871 = vld [vmem:[#allocation2 + $0x8] sm:$0xff]
  %v2872 = vld [vmem:[#allocation2 + $0x10] sm:$0xff]
  %v2873 = vld [vmem:[#allocation2 + $0x18] sm:$0xff]
  %v2874 = vld [vmem:[#allocation2 + $0x20] sm:$0xff]
  %v2875 = vld [vmem:[#allocation2 + $0x28] sm:$0xff]
  %v2876 = vld [vmem:[#allocation2 + $0x30] sm:$0xff]
  %v2877 = vld [vmem:[#allocation2 + $0x38] sm:$0xff]
  %v2878 = vld [vmem:[#allocation2 + $0x40] sm:$0xff]
  %v2879 = vld [vmem:[#allocation2 + $0x48] sm:$0xff]
  %v2880 = vld [vmem:[#allocation2 + $0x50] sm:$0xff]
  %v2881 = vld [vmem:[#allocation2 + $0x58] sm:$0xff]
  %v2882 = vld [vmem:[#allocation2 + $0x60] sm:$0xff]
  %v2883 = vld [vmem:[#allocation2 + $0x68] sm:$0xff]
  %v2884 = vld [vmem:[#allocation2 + $0x70] sm:$0xff]
  %v2885 = vld [vmem:[#allocation2 + $0x78] sm:$0xff]
  %v2886 = vld [vmem:[#allocation2 + $0x80] sm:$0xff]
  %v2887 = vld [vmem:[#allocation2 + $0x88] sm:$0xff]
  %v2888 = vld [vmem:[#allocation2 + $0x90] sm:$0xff]
  %v2889 = vld [vmem:[#allocation2 + $0x98] sm:$0xff]
  %v2890 = vld [vmem:[#allocation2 + $0xa0] sm:$0xff]
  %v2891 = vld [vmem:[#allocation2 + $0xa8] sm:$0xff]
  %v2892 = vld [vmem:[#allocation2 + $0xb0] sm:$0xff]
  %v2893 = vld [vmem:[#allocation2 + $0xb8] sm:$0xff]
  %v2894 = vld [vmem:[#allocation2 + $0xc0] sm:$0xff]
  %v2895 = vld [vmem:[#allocation2 + $0xc8] sm:$0xff]
  %v2896 = vld [vmem:[#allocation2 + $0xd0] sm:$0xff]
  %v2897 = vld [vmem:[#allocation2 + $0xd8] sm:$0xff]
  %v2898 = vld [vmem:[#allocation2 + $0xe0] sm:$0xff]
  %v2899 = vld [vmem:[#allocation2 + $0xe8] sm:$0xff]
  %v2900 = vld [vmem:[#allocation2 + $0xf0] sm:$0xff]
  %v2901 = vld [vmem:[#allocation2 + $0xf8] sm:$0xff]
  %v2902 = vpack.c.bf16 %v2874, %v2870
  %v2903 = vpack.c.bf16 %v2875, %v2871
  %v2904 = vpack.c.bf16 %v2876, %v2872
  %v2905 = vpack.c.bf16 %v2877, %v2873
  %v2906 = vpack.c.bf16 %v2882, %v2878
  %v2907 = vpack.c.bf16 %v2883, %v2879
  %v2908 = vpack.c.bf16 %v2884, %v2880
  %v2909 = vpack.c.bf16 %v2885, %v2881
  %v2910 = vpack.c.bf16 %v2890, %v2886
  %v2911 = vpack.c.bf16 %v2891, %v2887
  %v2912 = vpack.c.bf16 %v2892, %v2888
  %v2913 = vpack.c.bf16 %v2893, %v2889
  %v2914 = vpack.c.bf16 %v2898, %v2894
  %v2915 = vpack.c.bf16 %v2899, %v2895
  %v2916 = vpack.c.bf16 %v2900, %v2896
  %v2917 = vpack.c.bf16 %v2901, %v2897
  %v2918 = vld [vmem:[%s2] sm:$0xf]
  %v2919 = vld [vmem:[%s2 + $0x4] sm:$0xf]
  %v2920 = vld [vmem:[%s2 + $0x8] sm:$0xf]
  %v2921 = vld [vmem:[%s2 + $0xc] sm:$0xf]
  %v2922 = vld [vmem:[%s2 + $0x10] sm:$0xf]
  %v2923 = vld [vmem:[%s2 + $0x14] sm:$0xf]
  %v2924 = vld [vmem:[%s2 + $0x18] sm:$0xf]
  %v2925 = vld [vmem:[%s2 + $0x1c] sm:$0xf]
  %v2926 = vld [vmem:[%s2 + $0x20] sm:$0xf]
  %v2927 = vld [vmem:[%s2 + $0x24] sm:$0xf]
  %v2928 = vld [vmem:[%s2 + $0x28] sm:$0xf]
  %v2929 = vld [vmem:[%s2 + $0x2c] sm:$0xf]
  %v2930 = vld [vmem:[%s2 + $0x30] sm:$0xf]
  %v2931 = vld [vmem:[%s2 + $0x34] sm:$0xf]
  %v2932 = vld [vmem:[%s2 + $0x38] sm:$0xf]
  %v2933 = vld [vmem:[%s2 + $0x3c] sm:$0xf]
  %v2934 = vld [vmem:[%s2 + $0x40] sm:$0xf]
  %v2935 = vld [vmem:[%s2 + $0x44] sm:$0xf]
  %v2936 = vld [vmem:[%s2 + $0x48] sm:$0xf]
  %v2937 = vld [vmem:[%s2 + $0x4c] sm:$0xf]
  %v2938 = vld [vmem:[%s2 + $0x50] sm:$0xf]
  %v2939 = vld [vmem:[%s2 + $0x54] sm:$0xf]
  %v2940 = vld [vmem:[%s2 + $0x58] sm:$0xf]
  %v2941 = vld [vmem:[%s2 + $0x5c] sm:$0xf]
  %v2942 = vld [vmem:[%s2 + $0x60] sm:$0xf]
  %v2943 = vld [vmem:[%s2 + $0x64] sm:$0xf]
  %v2944 = vld [vmem:[%s2 + $0x68] sm:$0xf]
  %v2945 = vld [vmem:[%s2 + $0x6c] sm:$0xf]
  %v2946 = vld [vmem:[%s2 + $0x70] sm:$0xf]
  %v2947 = vld [vmem:[%s2 + $0x74] sm:$0xf]
  %v2948 = vld [vmem:[%s2 + $0x78] sm:$0xf]
  %v2949 = vld [vmem:[%s2 + $0x7c] sm:$0xf]
  %v2950 = vld [vmem:[%s2 + $0x80] sm:$0xf]
  %v2951 = vld [vmem:[%s2 + $0x84] sm:$0xf]
  %v2952 = vld [vmem:[%s2 + $0x88] sm:$0xf]
  %v2953 = vld [vmem:[%s2 + $0x8c] sm:$0xf]
  %v2954 = vld [vmem:[%s2 + $0x90] sm:$0xf]
  %v2955 = vld [vmem:[%s2 + $0x94] sm:$0xf]
  %v2956 = vld [vmem:[%s2 + $0x98] sm:$0xf]
  %v2957 = vld [vmem:[%s2 + $0x9c] sm:$0xf]
  %v2958 = vld [vmem:[%s2 + $0xa0] sm:$0xf]
  %v2959 = vld [vmem:[%s2 + $0xa4] sm:$0xf]
  %v2960 = vld [vmem:[%s2 + $0xa8] sm:$0xf]
  %v2961 = vld [vmem:[%s2 + $0xac] sm:$0xf]
  %v2962 = vld [vmem:[%s2 + $0xb0] sm:$0xf]
  %v2963 = vld [vmem:[%s2 + $0xb4] sm:$0xf]
  %v2964 = vld [vmem:[%s2 + $0xb8] sm:$0xf]
  %v2965 = vld [vmem:[%s2 + $0xbc] sm:$0xf]
  %v2966 = vld [vmem:[%s2 + $0xc0] sm:$0xf]
  %v2967 = vld [vmem:[%s2 + $0xc4] sm:$0xf]
  %v2968 = vld [vmem:[%s3] sm:$0x1]
  %v2970 = vperm.slane %v2968, 0
  %v3022 = vunpack.c.l.b16 %v2918
  %v3023 = vunpack.c.l.b16 %v2919
  %v3024 = vunpack.c.l.b16 %v2920
  %v3025 = vunpack.c.l.b16 %v2921
  %v3026 = vunpack.c.l.b16 %v2922
  %v3027 = vunpack.c.l.b16 %v2923
  %v3028 = vunpack.c.l.b16 %v2924
  %v3029 = vunpack.c.l.b16 %v2925
  %v3030 = vunpack.c.l.b16 %v2926
  %v3031 = vunpack.c.l.b16 %v2927
  %v3032 = vunpack.c.l.b16 %v2928
  %v3033 = vunpack.c.l.b16 %v2929
  %v3034 = vunpack.c.l.b16 %v2930
  %v3035 = vunpack.c.l.b16 %v2931
  %v3036 = vunpack.c.l.b16 %v2932
  %v3037 = vunpack.c.l.b16 %v2933
  %v3038 = vunpack.c.l.b16 %v2934
  %v3039 = vunpack.c.l.b16 %v2935
  %v3040 = vunpack.c.l.b16 %v2936
  %v3041 = vunpack.c.l.b16 %v2937
  %v3042 = vunpack.c.l.b16 %v2938
  %v3043 = vunpack.c.l.b16 %v2939
  %v3044 = vunpack.c.l.b16 %v2940
  %v3045 = vunpack.c.l.b16 %v2941
  %v3046 = vunpack.c.l.b16 %v2942
  %v3047 = vunpack.c.l.b16 %v2943
  %v3048 = vunpack.c.l.b16 %v2944
  %v3049 = vunpack.c.l.b16 %v2945
  %v3050 = vunpack.c.l.b16 %v2946
  %v3051 = vunpack.c.l.b16 %v2947
  %v3052 = vunpack.c.l.b16 %v2948
  %v3053 = vunpack.c.l.b16 %v2949
  %v3054 = vunpack.c.l.b16 %v2950
  %v3055 = vunpack.c.l.b16 %v2951
  %v3056 = vunpack.c.l.b16 %v2952
  %v3057 = vunpack.c.l.b16 %v2953
  %v3058 = vunpack.c.l.b16 %v2954
  %v3059 = vunpack.c.l.b16 %v2955
  %v3060 = vunpack.c.l.b16 %v2956
  %v3061 = vunpack.c.l.b16 %v2957
  %v3062 = vunpack.c.l.b16 %v2958
  %v3063 = vunpack.c.l.b16 %v2959
  %v3064 = vunpack.c.l.b16 %v2960
  %v3065 = vunpack.c.l.b16 %v2961
  %v3066 = vunpack.c.l.b16 %v2962
  %v3067 = vunpack.c.l.b16 %v2963
  %v3068 = vunpack.c.l.b16 %v2964
  %v3069 = vunpack.c.l.b16 %v2965
  %v3070 = vunpack.c.l.b16 %v2966
  %v3071 = vunpack.c.l.b16 %v2967
  %v3072 = vpack.c.b16 %v3023, %v3022
  %v3073 = vpack.c.b16 %v3025, %v3024
  %v3074 = vpack.c.b16 %v3027, %v3026
  %v3075 = vpack.c.b16 %v3029, %v3028
  %v3076 = vpack.c.b16 %v3031, %v3030
  %v3077 = vpack.c.b16 %v3033, %v3032
  %v3078 = vpack.c.b16 %v3035, %v3034
  %v3079 = vpack.c.b16 %v3037, %v3036
  %v3080 = vpack.c.b16 %v3039, %v3038
  %v3081 = vpack.c.b16 %v3041, %v3040
  %v3082 = vpack.c.b16 %v3043, %v3042
  %v3083 = vpack.c.b16 %v3045, %v3044
  %v3084 = vpack.c.b16 %v3047, %v3046
  %v3085 = vpack.c.b16 %v3049, %v3048
  %v3086 = vpack.c.b16 %v3051, %v3050
  %v3087 = vpack.c.b16 %v3053, %v3052
  %v3088 = vpack.c.b16 %v3055, %v3054
  %v3089 = vpack.c.b16 %v3057, %v3056
  %v3090 = vpack.c.b16 %v3059, %v3058
  %v3091 = vpack.c.b16 %v3061, %v3060
  %v3092 = vpack.c.b16 %v3063, %v3062
  %v3093 = vpack.c.b16 %v3065, %v3064
  %v3094 = vpack.c.b16 %v3067, %v3066
  %v3095 = vpack.c.b16 %v3069, %v3068
  %v3096 = vpack.c.b16 %v3071, %v3070
  %v3123 = vsel %vm118, %v2905, 0
  %v3126 = vsel %vm118, %v2909, 0
  %v3129 = vsel %vm118, %v2913, 0
  %v3132 = vsel %vm118, %v2917, 0
  %3134 = vmatpush.bf16.msra.mxu0 %v3079
  %3135 = vmatpush.bf16.msra.mxu0 %v3078
  %3136 = vmatpush.bf16.msra.mxu0 %v3077
  %3137 = vmatpush.bf16.msra.mxu0 %v3076
  %3138 = vmatpush.bf16.msra.mxu0 %v3075
  %3139 = vmatpush.bf16.msra.mxu0 %v3074
  %3140 = vmatpush.bf16.msra.mxu0 %v3073
  %3141 = vmatpush.bf16.msra.mxu0 %v3072
  %3142 = vmatmul.bf16.gmra.mxu0 %v2902
  %v3143 = vpop.f32.mrf.mxu0
  %v3144 = vadd.f32 %v2970, %v3143
  %v3145 = vpop.f32.mrf.mxu0
  %v3146 = vadd.f32 %v2970, %v3145
  %3147 = vmatmul.bf16.gmra.mxu0 %v2906
  %v3148 = vpop.f32.mrf.mxu0
  %v3149 = vadd.f32 %v2970, %v3148
  %v3150 = vpop.f32.mrf.mxu0
  %v3151 = vadd.f32 %v2970, %v3150
  %3152 = vmatmul.bf16.gmra.mxu0 %v2910
  %v3153 = vpop.f32.mrf.mxu0
  %v3154 = vadd.f32 %v2970, %v3153
  %v3155 = vpop.f32.mrf.mxu0
  %v3156 = vadd.f32 %v2970, %v3155
  %3157 = vmatmul.bf16.gmra.mxu0 %v2914
  %v3158 = vpop.f32.mrf.mxu0
  %v3159 = vadd.f32 %v2970, %v3158
  %v3160 = vpop.f32.mrf.mxu0
  %v3161 = vadd.f32 %v2970, %v3160
  %3162 = vdwg.mxu0
  %3163 = vmatpush.bf16.msra.mxu0 %v3087
  %3164 = vmatpush.bf16.msra.mxu0 %v3086
  %3165 = vmatpush.bf16.msra.mxu0 %v3085
  %3166 = vmatpush.bf16.msra.mxu0 %v3084
  %3167 = vmatpush.bf16.msra.mxu0 %v3083
  %3168 = vmatpush.bf16.msra.mxu0 %v3082
  %3169 = vmatpush.bf16.msra.mxu0 %v3081
  %3170 = vmatpush.bf16.msra.mxu0 %v3080
  %3171 = vmatmul.bf16.gmra.mxu0 %v2903
  %v3172 = vpop.f32.mrf.mxu0
  %v3173 = vadd.f32 %v3144, %v3172
  %v3174 = vpop.f32.mrf.mxu0
  %v3175 = vadd.f32 %v3146, %v3174
  %3176 = vmatmul.bf16.gmra.mxu0 %v2907
  %v3177 = vpop.f32.mrf.mxu0
  %v3178 = vadd.f32 %v3149, %v3177
  %v3179 = vpop.f32.mrf.mxu0
  %v3180 = vadd.f32 %v3151, %v3179
  %3181 = vmatmul.bf16.gmra.mxu0 %v2911
  %v3182 = vpop.f32.mrf.mxu0
  %v3183 = vadd.f32 %v3154, %v3182
  %v3184 = vpop.f32.mrf.mxu0
  %v3185 = vadd.f32 %v3156, %v3184
  %3186 = vmatmul.bf16.gmra.mxu0 %v2915
  %v3187 = vpop.f32.mrf.mxu0
  %v3188 = vadd.f32 %v3159, %v3187
  %v3189 = vpop.f32.mrf.mxu0
  %v3190 = vadd.f32 %v3161, %v3189
  %3191 = vdwg.mxu0
  %3192 = vmatpush.bf16.msra.mxu0 %v3095
  %3193 = vmatpush.bf16.msra.mxu0 %v3094
  %3194 = vmatpush.bf16.msra.mxu0 %v3093
  %3195 = vmatpush.bf16.msra.mxu0 %v3092
  %3196 = vmatpush.bf16.msra.mxu0 %v3091
  %3197 = vmatpush.bf16.msra.mxu0 %v3090
  %3198 = vmatpush.bf16.msra.mxu0 %v3089
  %3199 = vmatpush.bf16.msra.mxu0 %v3088
  %3200 = vmatmul.bf16.gmra.mxu0 %v2904
  %v3201 = vpop.f32.mrf.mxu0
  %v3202 = vadd.f32 %v3173, %v3201
  %v3203 = vpop.f32.mrf.mxu0
  %v3204 = vadd.f32 %v3175, %v3203
  %3205 = vmatmul.bf16.gmra.mxu0 %v2908
  %v3206 = vpop.f32.mrf.mxu0
  %v3207 = vadd.f32 %v3178, %v3206
  %v3208 = vpop.f32.mrf.mxu0
  %v3209 = vadd.f32 %v3180, %v3208
  %3210 = vmatmul.bf16.gmra.mxu0 %v2912
  %v3211 = vpop.f32.mrf.mxu0
  %v3212 = vadd.f32 %v3183, %v3211
  %v3213 = vpop.f32.mrf.mxu0
  %v3214 = vadd.f32 %v3185, %v3213
  %3215 = vmatmul.bf16.gmra.mxu0 %v2916
  %v3216 = vpop.f32.mrf.mxu0
  %v3217 = vadd.f32 %v3188, %v3216
  %v3218 = vpop.f32.mrf.mxu0
  %v3219 = vadd.f32 %v3190, %v3218
  %3220 = vdwg.mxu0
  %3221 = vmatpush.bf16.msra.mxu0 0
  %3222 = vmatpush.bf16.msra.mxu0 0
  %3223 = vmatpush.bf16.msra.mxu0 0
  %3224 = vmatpush.bf16.msra.mxu0 0
  %3225 = vmatpush.bf16.msra.mxu0 0
  %3226 = vmatpush.bf16.msra.mxu0 0
  %3227 = vmatpush.bf16.msra.mxu0 0
  %3228 = vmatpush.bf16.msra.mxu0 %v3096
  %3229 = vmatmul.bf16.gmra.mxu0 %v3123
  %v3230 = vpop.f32.mrf.mxu0
  %v3231 = vadd.f32 %v3202, %v3230
  %v3232 = vpop.f32.mrf.mxu0
  %v3233 = vadd.f32 %v3204, %v3232
  %3234 = vmatmul.bf16.gmra.mxu0 %v3126
  %v3235 = vpop.f32.mrf.mxu0
  %v3236 = vadd.f32 %v3207, %v3235
  %v3237 = vpop.f32.mrf.mxu0
  %v3238 = vadd.f32 %v3209, %v3237
  %3239 = vmatmul.bf16.gmra.mxu0 %v3129
  %v3240 = vpop.f32.mrf.mxu0
  %v3241 = vadd.f32 %v3212, %v3240
  %v3242 = vpop.f32.mrf.mxu0
  %v3243 = vadd.f32 %v3214, %v3242
  %3244 = vmatmul.bf16.gmra.mxu0 %v3132
  %v3245 = vpop.f32.mrf.mxu0
  %v3246 = vadd.f32 %v3217, %v3245
  %v3247 = vpop.f32.mrf.mxu0
  %v3248 = vadd.f32 %v3219, %v3247
  %3249 = vdwg.mxu0
  %v3250 = vmax.f32 %v3231, 0.0
  %v3251 = vmax.f32 %v3233, 0.0
  %v3252 = vmax.f32 %v3236, 0.0
  %v3253 = vmax.f32 %v3238, 0.0
  %v3254 = vmax.f32 %v3241, 0.0
  %v3255 = vmax.f32 %v3243, 0.0
  %v3256 = vmax.f32 %v3246, 0.0
  %v3257 = vmax.f32 %v3248, 0.0
  %3258 = vst.msk [vmem:[#allocation3] sm:$0xff] %vm68, %v3250
  %3259 = vst.msk [vmem:[#allocation3 + $0x8] sm:$0xff] %vm68, %v3251
  %3260 = vst.msk [vmem:[#allocation3 + $0x10] sm:$0xff] %vm68, %v3252
  %3261 = vst.msk [vmem:[#allocation3 + $0x18] sm:$0xff] %vm68, %v3253
  %3262 = vst.msk [vmem:[#allocation3 + $0x20] sm:$0xff] %vm68, %v3254
  %3263 = vst.msk [vmem:[#allocation3 + $0x28] sm:$0xff] %vm68, %v3255
  %3264 = vst.msk [vmem:[#allocation3 + $0x30] sm:$0xff] %vm68, %v3256
  %3265 = vst.msk [vmem:[#allocation3 + $0x38] sm:$0xff] %vm68, %v3257
  %3266 = vst [vmem:[#allocation4] sm:$0xff] 0.0
  %3267 = vst [vmem:[#allocation4 + $0x8] sm:$0xff] 0.0
  %3268 = vst [vmem:[#allocation4 + $0x10] sm:$0xff] 0.0
  %3269 = vst [vmem:[#allocation4 + $0x18] sm:$0xff] 0.0
  %3270 = vst [vmem:[#allocation4 + $0x20] sm:$0xff] 0.0
  %3271 = vst [vmem:[#allocation4 + $0x28] sm:$0xff] 0.0
  %3272 = vst.msk [vmem:[#allocation4 + $0x30] sm:$0xff] %vm68, 0.0
  %v3273 = vld [vmem:[#allocation3] sm:$0x3]
  %vm3274 = vcmask 254976
  %3275 = vst.msk [vmem:[#allocation4] sm:$0x3] %vm3274, %v3273
  %v3276 = vld [vmem:[#allocation3 + $0x2] sm:$0x3]
  %3278 = vrot.lane.b32.xlu0 %v3276, 32
  %v3279 = vpop.permute.xlu0 %3278
  %vm3281 = vcmask 517376
  %3282 = vst.msk [vmem:[#allocation4] sm:$0x3] %vm3281, %v3279
  %v3283 = vld [vmem:[#allocation3 + $0x4] sm:$0x3]
  %3285 = vrot.lane.b32.xlu0 %v3283, 64
  %v3286 = vpop.permute.xlu0 %3285
  %vm3288 = vcmask 779776
  %3289 = vst.msk [vmem:[#allocation4] sm:$0x3] %vm3288, %v3286
  %v3290 = vld [vmem:[#allocation3 + $0x6] sm:$0x3]
  %3292 = vrot.lane.b32.xlu0 %v3290, 96
  %v3293 = vpop.permute.xlu0 %3292
  %vm3295 = vcmask 1042176
  %3296 = vst.msk [vmem:[#allocation4] sm:$0x3] %vm3295, %v3293
  %v3297 = vld [vmem:[#allocation3 + $0x8] sm:$0x3]
  %3298 = vst.msk [vmem:[#allocation4 + $0x8] sm:$0x3] %vm3274, %v3297
  %v3299 = vld [vmem:[#allocation3 + $0xa] sm:$0x3]
  %3301 = vrot.lane.b32.xlu0 %v3299, 32
  %v3302 = vpop.permute.xlu0 %3301
  %3304 = vst.msk [vmem:[#allocation4 + $0x8] sm:$0x3] %vm3281, %v3302
  %v3305 = vld [vmem:[#allocation3 + $0xc] sm:$0x3]
  %3307 = vrot.lane.b32.xlu0 %v3305, 64
  %v3308 = vpop.permute.xlu0 %3307
  %3310 = vst.msk [vmem:[#allocation4 + $0x8] sm:$0x3] %vm3288, %v3308
  %v3311 = vld [vmem:[#allocation3 + $0xe] sm:$0x3]
  %3313 = vrot.lane.b32.xlu0 %v3311, 96
  %v3314 = vpop.permute.xlu0 %3313
  %3316 = vst.msk [vmem:[#allocation4 + $0x8] sm:$0x3] %vm3295, %v3314
  %v3317 = vld [vmem:[#allocation3 + $0x10] sm:$0x3]
  %3318 = vst.msk [vmem:[#allocation4 + $0x10] sm:$0x3] %vm3274, %v3317
  %v3319 = vld [vmem:[#allocation3 + $0x12] sm:$0x3]
  %3321 = vrot.lane.b32.xlu0 %v3319, 32
  %v3322 = vpop.permute.xlu0 %3321
  %3324 = vst.msk [vmem:[#allocation4 + $0x10] sm:$0x3] %vm3281, %v3322
  %v3325 = vld [vmem:[#allocation3 + $0x14] sm:$0x3]
  %3327 = vrot.lane.b32.xlu0 %v3325, 64
  %v3328 = vpop.permute.xlu0 %3327
  %3330 = vst.msk [vmem:[#allocation4 + $0x10] sm:$0x3] %vm3288, %v3328
  %v3331 = vld [vmem:[#allocation3 + $0x16] sm:$0x3]
  %3333 = vrot.lane.b32.xlu0 %v3331, 96
  %v3334 = vpop.permute.xlu0 %3333
  %3336 = vst.msk [vmem:[#allocation4 + $0x10] sm:$0x3] %vm3295, %v3334
  %v3337 = vld [vmem:[#allocation3 + $0x18] sm:$0x3]
  %3338 = vst.msk [vmem:[#allocation4 + $0x18] sm:$0x3] %vm3274, %v3337
  %v3339 = vld [vmem:[#allocation3 + $0x1a] sm:$0x3]
  %3341 = vrot.lane.b32.xlu0 %v3339, 32
  %v3342 = vpop.permute.xlu0 %3341
  %3344 = vst.msk [vmem:[#allocation4 + $0x18] sm:$0x3] %vm3281, %v3342
  %v3345 = vld [vmem:[#allocation3 + $0x1c] sm:$0x3]
  %3347 = vrot.lane.b32.xlu0 %v3345, 64
  %v3348 = vpop.permute.xlu0 %3347
  %3350 = vst.msk [vmem:[#allocation4 + $0x18] sm:$0x3] %vm3288, %v3348
  %v3351 = vld [vmem:[#allocation3 + $0x1e] sm:$0x3]
  %3353 = vrot.lane.b32.xlu0 %v3351, 96
  %v3354 = vpop.permute.xlu0 %3353
  %3356 = vst.msk [vmem:[#allocation4 + $0x18] sm:$0x3] %vm3295, %v3354
  %v3357 = vld [vmem:[#allocation3 + $0x20] sm:$0x3]
  %3358 = vst.msk [vmem:[#allocation4 + $0x20] sm:$0x3] %vm3274, %v3357
  %v3359 = vld [vmem:[#allocation3 + $0x22] sm:$0x3]
  %3361 = vrot.lane.b32.xlu0 %v3359, 32
  %v3362 = vpop.permute.xlu0 %3361
  %3364 = vst.msk [vmem:[#allocation4 + $0x20] sm:$0x3] %vm3281, %v3362
  %v3365 = vld [vmem:[#allocation3 + $0x24] sm:$0x3]
  %3367 = vrot.lane.b32.xlu0 %v3365, 64
  %v3368 = vpop.permute.xlu0 %3367
  %3370 = vst.msk [vmem:[#allocation4 + $0x20] sm:$0x3] %vm3288, %v3368
  %v3371 = vld [vmem:[#allocation3 + $0x26] sm:$0x3]
  %3373 = vrot.lane.b32.xlu0 %v3371, 96
  %v3374 = vpop.permute.xlu0 %3373
  %3376 = vst.msk [vmem:[#allocation4 + $0x20] sm:$0x3] %vm3295, %v3374
  %v3377 = vld [vmem:[#allocation3 + $0x28] sm:$0x3]
  %3378 = vst.msk [vmem:[#allocation4 + $0x28] sm:$0x3] %vm3274, %v3377
  %v3379 = vld [vmem:[#allocation3 + $0x2a] sm:$0x3]
  %3381 = vrot.lane.b32.xlu0 %v3379, 32
  %v3382 = vpop.permute.xlu0 %3381
  %3384 = vst.msk [vmem:[#allocation4 + $0x28] sm:$0x3] %vm3281, %v3382
  %v3385 = vld [vmem:[#allocation3 + $0x2c] sm:$0x3]
  %3387 = vrot.lane.b32.xlu0 %v3385, 64
  %v3388 = vpop.permute.xlu0 %3387
  %3390 = vst.msk [vmem:[#allocation4 + $0x28] sm:$0x3] %vm3288, %v3388
  %v3391 = vld [vmem:[#allocation3 + $0x2e] sm:$0x3]
  %3393 = vrot.lane.b32.xlu0 %v3391, 96
  %v3394 = vpop.permute.xlu0 %3393
  %3396 = vst.msk [vmem:[#allocation4 + $0x28] sm:$0x3] %vm3295, %v3394
  %v3397 = vld [vmem:[#allocation3 + $0x30] sm:$0x3]
  %3398 = vst.msk [vmem:[#allocation4 + $0x30] sm:$0x3] %vm3274, %v3397
  %v3399 = vld [vmem:[#allocation4] sm:$0xff]
  %v3400 = vld [vmem:[#allocation4 + $0x8] sm:$0xff]
  %v3401 = vld [vmem:[#allocation4 + $0x10] sm:$0xff]
  %v3402 = vld [vmem:[#allocation4 + $0x18] sm:$0xff]
  %v3403 = vld [vmem:[#allocation4 + $0x20] sm:$0xff]
  %v3404 = vld [vmem:[#allocation4 + $0x28] sm:$0xff]
  %v3405 = vld [vmem:[#allocation4 + $0x30] sm:$0xff]
  %v3406 = vpack.c.bf16 %v3399, %v3399
  %v3407 = vpack.c.bf16 %v3400, %v3400
  %v3408 = vpack.c.bf16 %v3401, %v3401
  %v3409 = vpack.c.bf16 %v3402, %v3402
  %v3410 = vpack.c.bf16 %v3403, %v3403
  %v3411 = vpack.c.bf16 %v3404, %v3404
  %v3412 = vpack.c.bf16 %v3405, %v3405
  %v3413 = vld [vmem:[%s4] sm:$0xf]
  %v3414 = vld [vmem:[%s4 + $0x4] sm:$0xf]
  %v3415 = vld [vmem:[%s4 + $0x8] sm:$0xf]
  %v3416 = vld [vmem:[%s4 + $0xc] sm:$0xf]
  %v3417 = vld [vmem:[%s4 + $0x10] sm:$0xf]
  %v3418 = vld [vmem:[%s4 + $0x14] sm:$0xf]
  %v3419 = vld [vmem:[%s4 + $0x18] sm:$0xf]
  %v3420 = vld [vmem:[%s4 + $0x1c] sm:$0xf]
  %v3421 = vld [vmem:[%s4 + $0x20] sm:$0xf]
  %v3422 = vld [vmem:[%s4 + $0x24] sm:$0xf]
  %v3423 = vld [vmem:[%s4 + $0x28] sm:$0xf]
  %v3424 = vld [vmem:[%s4 + $0x2c] sm:$0xf]
  %v3425 = vld [vmem:[%s4 + $0x30] sm:$0xf]
  %v3426 = vld [vmem:[%s4 + $0x34] sm:$0xf]
  %v3427 = vld [vmem:[%s4 + $0x38] sm:$0xf]
  %v3428 = vld [vmem:[%s4 + $0x3c] sm:$0xf]
  %v3429 = vld [vmem:[%s4 + $0x40] sm:$0xf]
  %v3430 = vld [vmem:[%s4 + $0x44] sm:$0xf]
  %v3431 = vld [vmem:[%s4 + $0x48] sm:$0xf]
  %v3432 = vld [vmem:[%s4 + $0x4c] sm:$0xf]
  %v3433 = vld [vmem:[%s4 + $0x50] sm:$0xf]
  %v3434 = vld [vmem:[%s4 + $0x54] sm:$0xf]
  %v3435 = vld [vmem:[%s4 + $0x58] sm:$0xf]
  %v3436 = vld [vmem:[%s4 + $0x5c] sm:$0xf]
  %v3437 = vld [vmem:[%s4 + $0x60] sm:$0xf]
  %v3438 = vld [vmem:[%s4 + $0x64] sm:$0xf]
  %v3439 = vld [vmem:[%s4 + $0x68] sm:$0xf]
  %v3440 = vld [vmem:[%s4 + $0x6c] sm:$0xf]
  %v3441 = vld [vmem:[%s4 + $0x70] sm:$0xf]
  %v3442 = vld [vmem:[%s4 + $0x74] sm:$0xf]
  %v3443 = vld [vmem:[%s4 + $0x78] sm:$0xf]
  %v3444 = vld [vmem:[%s4 + $0x7c] sm:$0xf]
  %v3445 = vld [vmem:[%s4 + $0x80] sm:$0xf]
  %v3446 = vld [vmem:[%s4 + $0x84] sm:$0xf]
  %v3447 = vld [vmem:[%s4 + $0x88] sm:$0xf]
  %v3448 = vld [vmem:[%s4 + $0x8c] sm:$0xf]
  %v3449 = vld [vmem:[%s4 + $0x90] sm:$0xf]
  %v3450 = vld [vmem:[%s4 + $0x94] sm:$0xf]
  %v3451 = vld [vmem:[%s4 + $0x98] sm:$0xf]
  %v3452 = vld [vmem:[%s4 + $0x9c] sm:$0xf]
  %v3453 = vld [vmem:[%s4 + $0xa0] sm:$0xf]
  %v3454 = vld [vmem:[%s4 + $0xa4] sm:$0xf]
  %v3455 = vld [vmem:[%s4 + $0xa8] sm:$0xf]
  %v3456 = vld [vmem:[%s4 + $0xac] sm:$0xf]
  %v3457 = vld [vmem:[%s4 + $0xb0] sm:$0xf]
  %v3458 = vld [vmem:[%s4 + $0xb4] sm:$0xf]
  %v3459 = vld [vmem:[%s4 + $0xb8] sm:$0xf]
  %v3460 = vld [vmem:[%s4 + $0xbc] sm:$0xf]
  %v3461 = vld [vmem:[%s4 + $0xc0] sm:$0xf]
  %v3462 = vld [vmem:[%s4 + $0xc4] sm:$0xf]
  %v3463 = vld [vmem:[%s4 + $0xc8] sm:$0xf]
  %v3464 = vld [vmem:[%s4 + $0xcc] sm:$0xf]
  %v3465 = vld [vmem:[%s4 + $0xd0] sm:$0xf]
  %v3466 = vld [vmem:[%s4 + $0xd4] sm:$0xf]
  %v3467 = vld [vmem:[%s4 + $0xd8] sm:$0xf]
  %v3468 = vld [vmem:[%s4 + $0xdc] sm:$0xf]
  %v3469 = vld [vmem:[%s4 + $0xe0] sm:$0xf]
  %v3470 = vld [vmem:[%s4 + $0xe4] sm:$0xf]
  %v3471 = vld [vmem:[%s4 + $0xe8] sm:$0xf]
  %v3472 = vld [vmem:[%s4 + $0xec] sm:$0xf]
  %v3473 = vld [vmem:[%s4 + $0xf0] sm:$0xf]
  %v3474 = vld [vmem:[%s4 + $0xf4] sm:$0xf]
  %v3475 = vld [vmem:[%s4 + $0xf8] sm:$0xf]
  %v3476 = vld [vmem:[%s4 + $0xfc] sm:$0xf]
  %v3477 = vld [vmem:[%s4 + $0x100] sm:$0xf]
  %v3478 = vld [vmem:[%s4 + $0x104] sm:$0xf]
  %v3479 = vld [vmem:[%s4 + $0x108] sm:$0xf]
  %v3480 = vld [vmem:[%s4 + $0x10c] sm:$0xf]
  %v3481 = vld [vmem:[%s4 + $0x110] sm:$0xf]
  %v3482 = vld [vmem:[%s4 + $0x114] sm:$0xf]
  %v3483 = vld [vmem:[%s4 + $0x118] sm:$0xf]
  %v3484 = vld [vmem:[%s4 + $0x11c] sm:$0xf]
  %v3485 = vld [vmem:[%s4 + $0x120] sm:$0xf]
  %v3486 = vld [vmem:[%s4 + $0x124] sm:$0xf]
  %v3487 = vld [vmem:[%s4 + $0x128] sm:$0xf]
  %v3488 = vld [vmem:[%s4 + $0x12c] sm:$0xf]
  %v3489 = vld [vmem:[%s4 + $0x130] sm:$0xf]
  %v3490 = vld [vmem:[%s4 + $0x134] sm:$0xf]
  %v3491 = vld [vmem:[%s4 + $0x138] sm:$0xf]
  %v3492 = vld [vmem:[%s4 + $0x13c] sm:$0xf]
  %v3493 = vld [vmem:[%s4 + $0x140] sm:$0xf]
  %v3494 = vld [vmem:[%s4 + $0x144] sm:$0xf]
  %v3495 = vld [vmem:[%s4 + $0x148] sm:$0xf]
  %v3496 = vld [vmem:[%s4 + $0x14c] sm:$0xf]
  %v3497 = vld [vmem:[%s4 + $0x150] sm:$0xf]
  %v3498 = vld [vmem:[%s4 + $0x154] sm:$0xf]
  %v3499 = vld [vmem:[%s4 + $0x158] sm:$0xf]
  %v3500 = vld [vmem:[%s4 + $0x15c] sm:$0xf]
  %v3501 = vld [vmem:[%s4 + $0x160] sm:$0xf]
  %v3502 = vld [vmem:[%s4 + $0x164] sm:$0xf]
  %v3503 = vld [vmem:[%s4 + $0x168] sm:$0xf]
  %v3504 = vld [vmem:[%s4 + $0x16c] sm:$0xf]
  %v3505 = vld [vmem:[%s4 + $0x170] sm:$0xf]
  %v3506 = vld [vmem:[%s4 + $0x174] sm:$0xf]
  %v3507 = vld [vmem:[%s4 + $0x178] sm:$0xf]
  %v3508 = vld [vmem:[%s4 + $0x17c] sm:$0xf]
  %v3509 = vld [vmem:[%s4 + $0x180] sm:$0xf]
  %v3510 = vld [vmem:[%s4 + $0x184] sm:$0xf]
  %v3511 = vld [vmem:[%s4 + $0x188] sm:$0xf]
  %v3512 = vld [vmem:[%s4 + $0x18c] sm:$0xf]
  %v3513 = vld [vmem:[%s5] sm:$0x1]
  %v3515 = vperm.slane %v3513, 0
  %v3617 = vunpack.c.l.b16 %v3413
  %v3618 = vunpack.c.l.b16 %v3414
  %v3619 = vunpack.c.l.b16 %v3415
  %v3620 = vunpack.c.l.b16 %v3416
  %v3621 = vunpack.c.l.b16 %v3417
  %v3622 = vunpack.c.l.b16 %v3418
  %v3623 = vunpack.c.l.b16 %v3419
  %v3624 = vunpack.c.l.b16 %v3420
  %v3625 = vunpack.c.l.b16 %v3421
  %v3626 = vunpack.c.l.b16 %v3422
  %v3627 = vunpack.c.l.b16 %v3423
  %v3628 = vunpack.c.l.b16 %v3424
  %v3629 = vunpack.c.l.b16 %v3425
  %v3630 = vunpack.c.l.b16 %v3426
  %v3631 = vunpack.c.l.b16 %v3427
  %v3632 = vunpack.c.l.b16 %v3428
  %v3633 = vunpack.c.l.b16 %v3429
  %v3634 = vunpack.c.l.b16 %v3430
  %v3635 = vunpack.c.l.b16 %v3431
  %v3636 = vunpack.c.l.b16 %v3432
  %v3637 = vunpack.c.l.b16 %v3433
  %v3638 = vunpack.c.l.b16 %v3434
  %v3639 = vunpack.c.l.b16 %v3435
  %v3640 = vunpack.c.l.b16 %v3436
  %v3641 = vunpack.c.l.b16 %v3437
  %v3642 = vunpack.c.l.b16 %v3438
  %v3643 = vunpack.c.l.b16 %v3439
  %v3644 = vunpack.c.l.b16 %v3440
  %v3645 = vunpack.c.l.b16 %v3441
  %v3646 = vunpack.c.l.b16 %v3442
  %v3647 = vunpack.c.l.b16 %v3443
  %v3648 = vunpack.c.l.b16 %v3444
  %v3649 = vunpack.c.l.b16 %v3445
  %v3650 = vunpack.c.l.b16 %v3446
  %v3651 = vunpack.c.l.b16 %v3447
  %v3652 = vunpack.c.l.b16 %v3448
  %v3653 = vunpack.c.l.b16 %v3449
  %v3654 = vunpack.c.l.b16 %v3450
  %v3655 = vunpack.c.l.b16 %v3451
  %v3656 = vunpack.c.l.b16 %v3452
  %v3657 = vunpack.c.l.b16 %v3453
  %v3658 = vunpack.c.l.b16 %v3454
  %v3659 = vunpack.c.l.b16 %v3455
  %v3660 = vunpack.c.l.b16 %v3456
  %v3661 = vunpack.c.l.b16 %v3457
  %v3662 = vunpack.c.l.b16 %v3458
  %v3663 = vunpack.c.l.b16 %v3459
  %v3664 = vunpack.c.l.b16 %v3460
  %v3665 = vunpack.c.l.b16 %v3461
  %v3666 = vunpack.c.l.b16 %v3462
  %v3667 = vunpack.c.l.b16 %v3463
  %v3668 = vunpack.c.l.b16 %v3464
  %v3669 = vunpack.c.l.b16 %v3465
  %v3670 = vunpack.c.l.b16 %v3466
  %v3671 = vunpack.c.l.b16 %v3467
  %v3672 = vunpack.c.l.b16 %v3468
  %v3673 = vunpack.c.l.b16 %v3469
  %v3674 = vunpack.c.l.b16 %v3470
  %v3675 = vunpack.c.l.b16 %v3471
  %v3676 = vunpack.c.l.b16 %v3472
  %v3677 = vunpack.c.l.b16 %v3473
  %v3678 = vunpack.c.l.b16 %v3474
  %v3679 = vunpack.c.l.b16 %v3475
  %v3680 = vunpack.c.l.b16 %v3476
  %v3681 = vunpack.c.l.b16 %v3477
  %v3682 = vunpack.c.l.b16 %v3478
  %v3683 = vunpack.c.l.b16 %v3479
  %v3684 = vunpack.c.l.b16 %v3480
  %v3685 = vunpack.c.l.b16 %v3481
  %v3686 = vunpack.c.l.b16 %v3482
  %v3687 = vunpack.c.l.b16 %v3483
  %v3688 = vunpack.c.l.b16 %v3484
  %v3689 = vunpack.c.l.b16 %v3485
  %v3690 = vunpack.c.l.b16 %v3486
  %v3691 = vunpack.c.l.b16 %v3487
  %v3692 = vunpack.c.l.b16 %v3488
  %v3693 = vunpack.c.l.b16 %v3489
  %v3694 = vunpack.c.l.b16 %v3490
  %v3695 = vunpack.c.l.b16 %v3491
  %v3696 = vunpack.c.l.b16 %v3492
  %v3697 = vunpack.c.l.b16 %v3493
  %v3698 = vunpack.c.l.b16 %v3494
  %v3699 = vunpack.c.l.b16 %v3495
  %v3700 = vunpack.c.l.b16 %v3496
  %v3701 = vunpack.c.l.b16 %v3497
  %v3702 = vunpack.c.l.b16 %v3498
  %v3703 = vunpack.c.l.b16 %v3499
  %v3704 = vunpack.c.l.b16 %v3500
  %v3705 = vunpack.c.l.b16 %v3501
  %v3706 = vunpack.c.l.b16 %v3502
  %v3707 = vunpack.c.l.b16 %v3503
  %v3708 = vunpack.c.l.b16 %v3504
  %v3709 = vunpack.c.l.b16 %v3505
  %v3710 = vunpack.c.l.b16 %v3506
  %v3711 = vunpack.c.l.b16 %v3507
  %v3712 = vunpack.c.l.b16 %v3508
  %v3713 = vunpack.c.l.b16 %v3509
  %v3714 = vunpack.c.l.b16 %v3510
  %v3715 = vunpack.c.l.b16 %v3511
  %v3716 = vunpack.c.l.b16 %v3512
  %v3717 = vpack.c.b16 %v3618, %v3617
  %v3718 = vpack.c.b16 %v3620, %v3619
  %v3719 = vpack.c.b16 %v3622, %v3621
  %v3720 = vpack.c.b16 %v3624, %v3623
  %v3721 = vpack.c.b16 %v3626, %v3625
  %v3722 = vpack.c.b16 %v3628, %v3627
  %v3723 = vpack.c.b16 %v3630, %v3629
  %v3724 = vpack.c.b16 %v3632, %v3631
  %v3725 = vpack.c.b16 %v3634, %v3633
  %v3726 = vpack.c.b16 %v3636, %v3635
  %v3727 = vpack.c.b16 %v3638, %v3637
  %v3728 = vpack.c.b16 %v3640, %v3639
  %v3729 = vpack.c.b16 %v3642, %v3641
  %v3730 = vpack.c.b16 %v3644, %v3643
  %v3731 = vpack.c.b16 %v3646, %v3645
  %v3732 = vpack.c.b16 %v3648, %v3647
  %v3733 = vpack.c.b16 %v3650, %v3649
  %v3734 = vpack.c.b16 %v3652, %v3651
  %v3735 = vpack.c.b16 %v3654, %v3653
  %v3736 = vpack.c.b16 %v3656, %v3655
  %v3737 = vpack.c.b16 %v3658, %v3657
  %v3738 = vpack.c.b16 %v3660, %v3659
  %v3739 = vpack.c.b16 %v3662, %v3661
  %v3740 = vpack.c.b16 %v3664, %v3663
  %v3741 = vpack.c.b16 %v3666, %v3665
  %v3742 = vpack.c.b16 %v3668, %v3667
  %v3743 = vpack.c.b16 %v3670, %v3669
  %v3744 = vpack.c.b16 %v3672, %v3671
  %v3745 = vpack.c.b16 %v3674, %v3673
  %v3746 = vpack.c.b16 %v3676, %v3675
  %v3747 = vpack.c.b16 %v3678, %v3677
  %v3748 = vpack.c.b16 %v3680, %v3679
  %v3749 = vpack.c.b16 %v3682, %v3681
  %v3750 = vpack.c.b16 %v3684, %v3683
  %v3751 = vpack.c.b16 %v3686, %v3685
  %v3752 = vpack.c.b16 %v3688, %v3687
  %v3753 = vpack.c.b16 %v3690, %v3689
  %v3754 = vpack.c.b16 %v3692, %v3691
  %v3755 = vpack.c.b16 %v3694, %v3693
  %v3756 = vpack.c.b16 %v3696, %v3695
  %v3757 = vpack.c.b16 %v3698, %v3697
  %v3758 = vpack.c.b16 %v3700, %v3699
  %v3759 = vpack.c.b16 %v3702, %v3701
  %v3760 = vpack.c.b16 %v3704, %v3703
  %v3761 = vpack.c.b16 %v3706, %v3705
  %v3762 = vpack.c.b16 %v3708, %v3707
  %v3763 = vpack.c.b16 %v3710, %v3709
  %v3764 = vpack.c.b16 %v3712, %v3711
  %v3765 = vpack.c.b16 %v3714, %v3713
  %v3766 = vpack.c.b16 %v3716, %v3715
  %v3818 = vsel %vm68, %v3412, 0
  %3820 = vmatpush.bf16.msra.mxu0 %v3724
  %3821 = vmatpush.bf16.msra.mxu0 %v3723
  %3822 = vmatpush.bf16.msra.mxu0 %v3722
  %3823 = vmatpush.bf16.msra.mxu0 %v3721
  %3824 = vmatpush.bf16.msra.mxu0 %v3720
  %3825 = vmatpush.bf16.msra.mxu0 %v3719
  %3826 = vmatpush.bf16.msra.mxu0 %v3718
  %3827 = vmatpush.bf16.msra.mxu0 %v3717
  %3828 = vmatmul.bf16.gmra.mxu0 %v3406
  %v3829 = vpop.f32.mrf.mxu0
  %v3830 = vadd.f32 %v3515, %v3829
  %v3831 = vpop.f32.mrf.mxu0
  %3832 = vdwg.mxu0
  %3833 = vmatpush.bf16.msra.mxu0 %v3732
  %3834 = vmatpush.bf16.msra.mxu0 %v3731
  %3835 = vmatpush.bf16.msra.mxu0 %v3730
  %3836 = vmatpush.bf16.msra.mxu0 %v3729
  %3837 = vmatpush.bf16.msra.mxu0 %v3728
  %3838 = vmatpush.bf16.msra.mxu0 %v3727
  %3839 = vmatpush.bf16.msra.mxu0 %v3726
  %3840 = vmatpush.bf16.msra.mxu0 %v3725
  %3841 = vmatmul.bf16.gmra.mxu0 %v3407
  %v3842 = vpop.f32.mrf.mxu0
  %v3843 = vadd.f32 %v3830, %v3842
  %v3844 = vpop.f32.mrf.mxu0
  %3845 = vdwg.mxu0
  %3846 = vmatpush.bf16.msra.mxu0 %v3740
  %3847 = vmatpush.bf16.msra.mxu0 %v3739
  %3848 = vmatpush.bf16.msra.mxu0 %v3738
  %3849 = vmatpush.bf16.msra.mxu0 %v3737
  %3850 = vmatpush.bf16.msra.mxu0 %v3736
  %3851 = vmatpush.bf16.msra.mxu0 %v3735
  %3852 = vmatpush.bf16.msra.mxu0 %v3734
  %3853 = vmatpush.bf16.msra.mxu0 %v3733
  %3854 = vmatmul.bf16.gmra.mxu0 %v3408
  %v3855 = vpop.f32.mrf.mxu0
  %v3856 = vadd.f32 %v3843, %v3855
  %v3857 = vpop.f32.mrf.mxu0
  %3858 = vdwg.mxu0
  %3859 = vmatpush.bf16.msra.mxu0 %v3748
  %3860 = vmatpush.bf16.msra.mxu0 %v3747
  %3861 = vmatpush.bf16.msra.mxu0 %v3746
  %3862 = vmatpush.bf16.msra.mxu0 %v3745
  %3863 = vmatpush.bf16.msra.mxu0 %v3744
  %3864 = vmatpush.bf16.msra.mxu0 %v3743
  %3865 = vmatpush.bf16.msra.mxu0 %v3742
  %3866 = vmatpush.bf16.msra.mxu0 %v3741
  %3867 = vmatmul.bf16.gmra.mxu0 %v3409
  %v3868 = vpop.f32.mrf.mxu0
  %v3869 = vadd.f32 %v3856, %v3868
  %v3870 = vpop.f32.mrf.mxu0
  %3871 = vdwg.mxu0
  %3872 = vmatpush.bf16.msra.mxu0 %v3756
  %3873 = vmatpush.bf16.msra.mxu0 %v3755
  %3874 = vmatpush.bf16.msra.mxu0 %v3754
  %3875 = vmatpush.bf16.msra.mxu0 %v3753
  %3876 = vmatpush.bf16.msra.mxu0 %v3752
  %3877 = vmatpush.bf16.msra.mxu0 %v3751
  %3878 = vmatpush.bf16.msra.mxu0 %v3750
  %3879 = vmatpush.bf16.msra.mxu0 %v3749
  %3880 = vmatmul.bf16.gmra.mxu0 %v3410
  %v3881 = vpop.f32.mrf.mxu0
  %v3882 = vadd.f32 %v3869, %v3881
  %v3883 = vpop.f32.mrf.mxu0
  %3884 = vdwg.mxu0
  %3885 = vmatpush.bf16.msra.mxu0 %v3764
  %3886 = vmatpush.bf16.msra.mxu0 %v3763
  %3887 = vmatpush.bf16.msra.mxu0 %v3762
  %3888 = vmatpush.bf16.msra.mxu0 %v3761
  %3889 = vmatpush.bf16.msra.mxu0 %v3760
  %3890 = vmatpush.bf16.msra.mxu0 %v3759
  %3891 = vmatpush.bf16.msra.mxu0 %v3758
  %3892 = vmatpush.bf16.msra.mxu0 %v3757
  %3893 = vmatmul.bf16.gmra.mxu0 %v3411
  %v3894 = vpop.f32.mrf.mxu0
  %v3895 = vadd.f32 %v3882, %v3894
  %v3896 = vpop.f32.mrf.mxu0
  %3897 = vdwg.mxu0
  %3898 = vmatpush.bf16.msra.mxu0 0
  %3899 = vmatpush.bf16.msra.mxu0 0
  %3900 = vmatpush.bf16.msra.mxu0 0
  %3901 = vmatpush.bf16.msra.mxu0 0
  %3902 = vmatpush.bf16.msra.mxu0 0
  %3903 = vmatpush.bf16.msra.mxu0 0
  %3904 = vmatpush.bf16.msra.mxu0 %v3766
  %3905 = vmatpush.bf16.msra.mxu0 %v3765
  %3906 = vmatmul.bf16.gmra.mxu0 %v3818
  %v3907 = vpop.f32.mrf.mxu0
  %v3908 = vadd.f32 %v3895, %v3907
  %v3909 = vpop.f32.mrf.mxu0
  %3910 = vdwg.mxu0
  %3911 = vst [vmem:[%s6] sm:$0xff] %v3908
  // Predicated region
  $region26: #{dqn_cnn2layer_forward.1} parent=0 // pred_check
    _
  $region27: #{dqn_cnn2layer_forward.1} parent=0 // pred_check_branch
    %3913 = sbr.rel (0) target = $region29
  $region28: #{dqn_cnn2layer_forward.1} parent=0 // pred_region
    _
  $region29: #{dqn_cnn2layer_forward.1} parent=0 // pred_fallthru
    _
  // Predicated region
  $region30: #{dqn_cnn2layer_forward.1} parent=0 // pred_check
    _
  $region31: #{dqn_cnn2layer_forward.1} parent=0 // pred_check_branch
    %3915 = sbr.rel (0) target = $region33
  $region32: #{dqn_cnn2layer_forward.1} parent=0 // pred_region
    _
  $region33: #{dqn_cnn2layer_forward.1} parent=0 // pred_fallthru
    _

</llo_original>
